<compile_context>
chip_gen: v5e
topology: v5e:2x2
jax: 0.10.0
libtpu: 0.0.40
codegen_flags: <defaults>
</compile_context>

<pallas_src>
import math
import functools

import jax
import jax.numpy as jnp
from jax.experimental import pallas as pl
from jax.experimental.pallas import tpu as pltpu

EPS = 1e-5
# f32 matches the reference bit-for-bit-ish; jnp.bfloat16 gives ~3x MXU
# throughput (f32 accumulation kept) if the downstream tolerance allows it.
MATMUL_DTYPE = jnp.float32
# Explicit scoped-VMEM budget: fits under v7x's 64 MiB physical with headroom,
# larger than the 16/32 MiB defaults on v5e/v6e.
VMEM_LIMIT_BYTES = 48 * 1024 * 1024


# ---------------------------------------------------------------------------
# In-kernel helpers (operate on loaded VMEM values / refs)
# ---------------------------------------------------------------------------

def _mm(a, b):
    """a @ b with MXU-friendly input dtype and f32 accumulation."""
    return jnp.dot(a.astype(MATMUL_DTYPE), b.astype(MATMUL_DTYPE),
                   preferred_element_type=jnp.float32)


def _mm_nt(a, b):
    """a [M,K] @ b[N,K]^T -> [M,N] (q k^T) with f32 accumulation."""
    return jax.lax.dot_general(a.astype(MATMUL_DTYPE), b.astype(MATMUL_DTYPE),
                               (((1,), (1,)), ((), ())),
                               preferred_element_type=jnp.float32)


def _ln_rows(x, g, b, eps):
    mean = jnp.mean(x, axis=-1, keepdims=True)
    c = x - mean
    var = jnp.mean(c * c, axis=-1, keepdims=True)
    return c * jax.lax.rsqrt(var + eps) * g + b


def _softmax_last(s):
    m = jnp.max(s, axis=-1, keepdims=True)
    p = jnp.exp(s - m)
    return p / jnp.sum(p, axis=-1, keepdims=True)   # exact reciprocal


def _mha(x_q, x_kv, wq_ref, wk_ref, wv_ref, bq_ref, bk_ref, bv_ref,
         wo_ref, bo_ref, nhead):
    """Multi-head attention with per-head weights streamed via leading-axis
    indices (no lane slicing) and the head concat folded into the output
    projection (f32 accumulate).  x_q: [S,D], x_kv: [T,D] -> [S,D]."""
    S = x_q.shape[0]
    D = wo_ref.shape[-1]
    Dh = wq_ref.shape[-1]
    scale = 1.0 / math.sqrt(Dh)
    acc = jnp.zeros((S, D), jnp.float32)
    for h in range(nhead):                       # static unroll, tiny H
        q = _mm(x_q, wq_ref[0, h]) + bq_ref[0, h]
        k = _mm(x_kv, wk_ref[0, h]) + bk_ref[0, h]
        v = _mm(x_kv, wv_ref[0, h]) + bv_ref[0, h]
        s = _mm_nt(q, k) * scale
        p = _softmax_last(s)
        acc = acc + _mm(_mm(p, v), wo_ref[0, h])
    return acc + bo_ref[0]


def _ffn(x, w1_ref, b1_ref, w2_ref, b2_ref):
    h = jnp.maximum(_mm(x, w1_ref[0]) + b1_ref[0], 0.0)
    return _mm(h, w2_ref[0]) + b2_ref[0]


# ---------------------------------------------------------------------------
# Kernel bodies: one kernel per stack, grid = (B, L), activations VMEM-resident
# ---------------------------------------------------------------------------

def _encoder_stack_kernel(
        xin_ref, w_in_ref, b_in_ref, pe_ref,
        wq_ref, wk_ref, wv_ref, bq_ref, bk_ref, bv_ref, wo_ref, bo_ref,
        ln1g_ref, ln1b_ref,
        w1_ref, b1_ref, w2_ref, b2_ref, ln2g_ref, ln2b_ref,
        o_ref, x_sc, *, nhead, eps):
    l = pl.program_id(1)

    @pl.when(l == 0)
    def _():
        # Fused input projection + positional encoding (layer 0 only).
        x_sc[...] = _mm(xin_ref[0], w_in_ref[...]) + b_in_ref[...] + pe_ref[0]

    x = x_sc[...]
    attn = _mha(x, x, wq_ref, wk_ref, wv_ref, bq_ref, bk_ref, bv_ref,
                wo_ref, bo_ref, nhead)
    x = _ln_rows(x + attn, ln1g_ref[0], ln1b_ref[0], eps)
    x = _ln_rows(x + _ffn(x, w1_ref, b1_ref, w2_ref, b2_ref),
                 ln2g_ref[0], ln2b_ref[0], eps)
    x_sc[...] = x

    @pl.when(l == pl.num_programs(1) - 1)
    def _():
        o_ref[0] = x


def _decoder_stack_kernel(
        enc_ref, pe_s_ref, prev_ref, w_mem_ref, b_mem_ref, pe_m_ref,
        swq, swk, swv, sbq, sbk, sbv, swo, sbo, ln1g, ln1b,
        cwq, cwk, cwv, cbq, cbk, cbv, cwo, cbo, ln2g, ln2b,
        w1_ref, b1_ref, w2_ref, b2_ref, ln3g, ln3b,
        w_op_ref, b_op_ref,
        o_ref, x_sc, mem_sc, *, nhead, eps):
    l = pl.program_id(1)

    @pl.when(l == 0)
    def _():
        # pos_query on encoder features + fused memory projection + pos_memory.
        x_sc[...] = enc_ref[0] + pe_s_ref[0]
        mem_sc[...] = (_mm(prev_ref[0], w_mem_ref[...]) + b_mem_ref[...]
                       + pe_m_ref[0])

    x = x_sc[...]
    mem = mem_sc[...]
    sa = _mha(x, x, swq, swk, swv, sbq, sbk, sbv, swo, sbo, nhead)
    x = _ln_rows(x + sa, ln1g[0], ln1b[0], eps)
    # TODO(synk): for very long memories (n_frame*seq_len such that the [S,T]
    # score tile would blow VMEM, esp. v7x 64 MiB) switch the cross-attention
    # to a KV-tiled online-softmax (flash) loop.
    ca = _mha(x, mem, cwq, cwk, cwv, cbq, cbk, cbv, cwo, cbo, nhead)
    x = _ln_rows(x + ca, ln2g[0], ln2b[0], eps)
    x = _ln_rows(x + _ffn(x, w1_ref, b1_ref, w2_ref, b2_ref),
                 ln3g[0], ln3b[0], eps)
    x_sc[...] = x

    @pl.when(l == pl.num_programs(1) - 1)
    def _():
        # Fused output projection (written once, lane/sublane-dense block).
        o_ref[0] = _mm(x, w_op_ref[...]) + b_op_ref[...]


# ---------------------------------------------------------------------------
# BlockSpec builders for the (B, L) grid
# ---------------------------------------------------------------------------

def _spec_batch(shape):
    nz = (0,) * len(shape)
    return pl.BlockSpec((1,) + tuple(shape), lambda b, l: (b,) + nz)


def _spec_layer(shape):
    nz = (0,) * len(shape)
    return pl.BlockSpec((1,) + tuple(shape), lambda b, l: (l,) + nz)


def _spec_const(shape):
    nz = (0,) * len(shape)
    return pl.BlockSpec(tuple(shape), lambda b, l: nz)


def _attn_specs(H, D, Dh):
    return [_spec_layer((H, D, Dh)), _spec_layer((H, D, Dh)),
            _spec_layer((H, D, Dh)), _spec_layer((H, 1, Dh)),
            _spec_layer((H, 1, Dh)), _spec_layer((H, 1, Dh)),
            _spec_layer((H, Dh, D)), _spec_layer((1, D))]


def _attn_args(p, prefix):
    return [p[f'{prefix}_{k}']
            for k in ('wq', 'wk', 'wv', 'bq', 'bk', 'bv', 'wo', 'bo')]


# ---------------------------------------------------------------------------
# pallas_call wrappers
# ---------------------------------------------------------------------------

def encoder_forward(xin, pe_s, p):
    """xin: [B, S, Fin] -> encoder features [B, S, D] in one pallas_call."""
    B, S, Fin = xin.shape
    L, H, D, Dh = p['sa_wq'].shape
    F = p['w1'].shape[-1]

    return pl.pallas_call(
        functools.partial(_encoder_stack_kernel, nhead=int(H), eps=EPS),
        out_shape=jax.ShapeDtypeStruct((B, S, D), jnp.float32),
        grid=(B, L),
        in_specs=[
            _spec_batch((S, Fin)),          # csi_ls (flattened)
            _spec_const((Fin, D)),          # input_proj w
            _spec_const((1, D)),            # input_proj b
            _spec_const((1, S, D)),         # positional encoding
        ] + _attn_specs(H, D, Dh) + [
            _spec_layer((1, D)), _spec_layer((1, D)),    # ln1 gamma/beta
            _spec_layer((D, F)), _spec_layer((1, F)),    # lin1
            _spec_layer((F, D)), _spec_layer((1, D)),    # lin2
            _spec_layer((1, D)), _spec_layer((1, D)),    # ln2 gamma/beta
        ],
        out_specs=pl.BlockSpec((1, S, D), lambda b, l: (b, 0, 0)),
        scratch_shapes=[pltpu.VMEM((S, D), jnp.float32)],
        compiler_params=pltpu.CompilerParams(
            dimension_semantics=("parallel", "arbitrary"),
            vmem_limit_bytes=VMEM_LIMIT_BYTES),
    )(xin, p['in_w'], p['in_b'], pe_s,
      *_attn_args(p, 'sa'),
      p['ln1_g'], p['ln1_b'],
      p['w1'], p['b1'], p['w2'], p['b2'],
      p['ln2_g'], p['ln2_b'])


def decoder_forward(csi_enc, mem_flat, pe_s, pe_m, p):
    """csi_enc: [B, S, D], mem_flat: [B, T, Fmem] -> [B, S, Fout]."""
    B, S, D = csi_enc.shape
    T, Fmem = mem_flat.shape[1], mem_flat.shape[2]
    L, H, _, Dh = p['sa_wq'].shape
    F = p['w1'].shape[-1]
    Fout = p['out_w'].shape[-1]

    return pl.pallas_call(
        functools.partial(_decoder_stack_kernel, nhead=int(H), eps=EPS),
        out_shape=jax.ShapeDtypeStruct((B, S, Fout), jnp.float32),
        grid=(B, L),
        in_specs=[
            _spec_batch((S, D)),            # encoder features (query)
            _spec_const((1, S, D)),         # pos_query PE
            _spec_batch((T, Fmem)),         # previous_csi (flattened)
            _spec_const((Fmem, D)),         # memory_proj w
            _spec_const((1, D)),            # memory_proj b
            _spec_const((1, T, D)),         # pos_memory PE
        ] + _attn_specs(H, D, Dh) + [       # self-attention stack
            _spec_layer((1, D)), _spec_layer((1, D)),    # ln1
        ] + _attn_specs(H, D, Dh) + [       # cross-attention stack
            _spec_layer((1, D)), _spec_layer((1, D)),    # ln2
            _spec_layer((D, F)), _spec_layer((1, F)),    # lin1
            _spec_layer((F, D)), _spec_layer((1, D)),    # lin2
            _spec_layer((1, D)), _spec_layer((1, D)),    # ln3
            _spec_const((D, Fout)), _spec_const((1, Fout)),  # output_proj
        ],
        out_specs=pl.BlockSpec((1, S, Fout), lambda b, l: (b, 0, 0)),
        scratch_shapes=[pltpu.VMEM((S, D), jnp.float32),
                        pltpu.VMEM((T, D), jnp.float32)],
        compiler_params=pltpu.CompilerParams(
            dimension_semantics=("parallel", "arbitrary"),
            vmem_limit_bytes=VMEM_LIMIT_BYTES),
    )(csi_enc, pe_s, mem_flat, p['mem_w'], p['mem_b'], pe_m,
      *_attn_args(p, 'sa'), p['ln1_g'], p['ln1_b'],
      *_attn_args(p, 'ca'), p['ln2_g'], p['ln2_b'],
      p['w1'], p['b1'], p['w2'], p['b2'], p['ln3_g'], p['ln3_b'],
      p['out_w'], p['out_b'])


# ---------------------------------------------------------------------------
# Model composition (plain JAX glue: reshapes + PE tables)
# ---------------------------------------------------------------------------

def positional_encoding(seq_len, d_model):
    position = jnp.arange(seq_len, dtype=jnp.float32)[:, None]
    div_term = jnp.exp(jnp.arange(0, d_model, 2, dtype=jnp.float32)
                       * (-math.log(10000.0) / d_model))
    pe = jnp.zeros((seq_len, d_model), jnp.float32)
    pe = pe.at[:, 0::2].set(jnp.sin(position * div_term))
    pe = pe.at[:, 1::2].set(jnp.cos(position * div_term))
    return pe[None]  # [1, seq_len, d_model]


def csiformer_student_forward(params, csi_ls, previous_csi):
    B, n_subc, n_sym, n_tx, n_rx, _ = csi_ls.shape
    n_frame = previous_csi.shape[1]
    S = n_subc * n_sym
    T = n_frame * S
    D = params['enc']['in_w'].shape[-1]

    pe_s = positional_encoding(S, D)
    pe_m = positional_encoding(T, D)

    # ---- CSIEncoder: input proj + PE + encoder stack, one pallas_call ----
    x = csi_ls.reshape(B, S, n_tx * n_rx * 2)
    csi_enc = encoder_forward(x, pe_s, params['enc'])

    # ---- EnhancedCSIDecoder: mem proj + PEs + decoder stack + out proj ----
    mem = previous_csi.reshape(B, T, n_tx * n_rx * 2)
    out = decoder_forward(csi_enc, mem, pe_s, pe_m, params['dec'])
    return out.reshape(B, n_subc, n_sym, n_tx, n_rx, 2)


# ---------------------------------------------------------------------------
# Parameter construction: per-layer weights stacked along a leading L axis,
# attention weights pre-split per head ([L, H, D, Dh] / [L, H, Dh, D]),
# all linear weights stored as x @ w ([K, N]) layouts, biases [*, 1, N].
# ---------------------------------------------------------------------------

def init_params(key, d_model, nhead, n_layers, n_tx, n_rx, dim_ff):
    H = nhead
    Dh = d_model // nhead
    keys = iter(jax.random.split(key, 256))

    def nrm(shape, scale=0.05):
        return scale * jax.random.normal(next(keys), shape, jnp.float32)

    def attn_stack(prefix):
        return {
            f'{prefix}_wq': nrm((n_layers, H, d_model, Dh)),
            f'{prefix}_wk': nrm((n_layers, H, d_model, Dh)),
            f'{prefix}_wv': nrm((n_layers, H, d_model, Dh)),
            f'{prefix}_bq': nrm((n_layers, H, 1, Dh)),
            f'{prefix}_bk': nrm((n_layers, H, 1, Dh)),
            f'{prefix}_bv': nrm((n_layers, H, 1, Dh)),
            f'{prefix}_wo': nrm((n_layers, H, Dh, d_model)),
            f'{prefix}_bo': nrm((n_layers, 1, d_model)),
        }

    def ln_stack():
        return (jnp.ones((n_layers, 1, d_model), jnp.float32),
                jnp.zeros((n_layers, 1, d_model), jnp.float32))

    # NOTE: the reference builds CSIEncoder(..., n_rx, n_rx, ...) so the
    # encoder input projection expects n_rx*n_rx*2 input features (only valid
    # when n_tx == n_rx, exactly like the PyTorch module).
    enc_in = n_rx * n_rx * 2
    feat = n_tx * n_rx * 2

    e_ln1_g, e_ln1_b = ln_stack()
    e_ln2_g, e_ln2_b = ln_stack()
    enc = dict(
        in_w=nrm((enc_in, d_model)), in_b=nrm((1, d_model)),
        w1=nrm((n_layers, d_model, dim_ff)), b1=nrm((n_layers, 1, dim_ff)),
        w2=nrm((n_layers, dim_ff, d_model)), b2=nrm((n_layers, 1, d_model)),
        ln1_g=e_ln1_g, ln1_b=e_ln1_b, ln2_g=e_ln2_g, ln2_b=e_ln2_b,
        **attn_stack('sa'),
    )

    d_ln1_g, d_ln1_b = ln_stack()
    d_ln2_g, d_ln2_b = ln_stack()
    d_ln3_g, d_ln3_b = ln_stack()
    dec = dict(
        mem_w=nrm((feat, d_model)), mem_b=nrm((1, d_model)),
        out_w=nrm((d_model, feat)), out_b=nrm((1, feat)),
        w1=nrm((n_layers, d_model, dim_ff)), b1=nrm((n_layers, 1, dim_ff)),
        w2=nrm((n_layers, dim_ff, d_model)), b2=nrm((n_layers, 1, d_model)),
        ln1_g=d_ln1_g, ln1_b=d_ln1_b, ln2_g=d_ln2_g, ln2_b=d_ln2_b,
        ln3_g=d_ln3_g, ln3_b=d_ln3_b,
        **attn_stack('sa'), **attn_stack('ca'),
    )
    return {'enc': enc, 'dec': dec}


if __name__ == "__main__":
    # Small, forward-consistent shapes.
    B, n_frame, n_subc, n_sym, n_tx, n_rx = 2, 2, 4, 2, 2, 2
    d_model, nhead, n_layers, dim_ff = 32, 2, 2, 64

    key = jax.random.PRNGKey(0)
    k_x, k_prev, k_params = jax.random.split(key, 3)
    csi_ls = jax.random.normal(k_x, (B, n_subc, n_sym, n_tx, n_rx, 2),
                               jnp.float32)
    previous_csi = jax.random.normal(
        k_prev, (B, n_frame, n_subc, n_sym, n_tx, n_rx, 2), jnp.float32)

    params = init_params(k_params, d_model, nhead, n_layers, n_tx, n_rx,
                         dim_ff)

    fwd = jax.jit(csiformer_student_forward)
    csi_dec = fwd(params, csi_ls, previous_csi)
    jax.block_until_ready(csi_dec)
    assert csi_dec.shape == (B, n_subc, n_sym, n_tx, n_rx, 2)
    assert csi_dec.dtype == jnp.float32
    print("KERNEL_OK")
</pallas_src>

<mosaic_0001>
module attributes {stable_mosaic.version = 11 : i64} {
  func.func @_encoder_stack_kernel(%arg0: i32, %arg1: i32, %arg2: memref<1x8x8xf32, #tpu.memory_space<vmem>>, %arg3: memref<8x32xf32, #tpu.memory_space<vmem>>, %arg4: memref<1x32xf32, #tpu.memory_space<vmem>>, %arg5: memref<1x8x32xf32, #tpu.memory_space<vmem>>, %arg6: memref<1x2x32x16xf32, #tpu.memory_space<vmem>>, %arg7: memref<1x2x32x16xf32, #tpu.memory_space<vmem>>, %arg8: memref<1x2x32x16xf32, #tpu.memory_space<vmem>>, %arg9: memref<1x2x1x16xf32, #tpu.memory_space<vmem>>, %arg10: memref<1x2x1x16xf32, #tpu.memory_space<vmem>>, %arg11: memref<1x2x1x16xf32, #tpu.memory_space<vmem>>, %arg12: memref<1x2x16x32xf32, #tpu.memory_space<vmem>>, %arg13: memref<1x1x32xf32, #tpu.memory_space<vmem>>, %arg14: memref<1x1x32xf32, #tpu.memory_space<vmem>>, %arg15: memref<1x1x32xf32, #tpu.memory_space<vmem>>, %arg16: memref<1x32x64xf32, #tpu.memory_space<vmem>>, %arg17: memref<1x1x64xf32, #tpu.memory_space<vmem>>, %arg18: memref<1x64x32xf32, #tpu.memory_space<vmem>>, %arg19: memref<1x1x32xf32, #tpu.memory_space<vmem>>, %arg20: memref<1x1x32xf32, #tpu.memory_space<vmem>>, %arg21: memref<1x1x32xf32, #tpu.memory_space<vmem>>, %arg22: memref<1x8x32xf32, #tpu.memory_space<vmem>>, %arg23: memref<8x32xf32, #tpu.memory_space<vmem>>) attributes {dimension_semantics = [#tpu.dimension_semantics<parallel>, #tpu.dimension_semantics<arbitrary>], iteration_bounds = array<i64: 2, 2>, scalar_prefetch = 0 : i64, scratch_operands = 1 : i64, tpu.core_type = #tpu.core_type<tc>, window_params = [{transform_indices = @transform_0, window_bounds = array<i64: 1, 8, 8>}, {pipeline_mode = #tpu.pipeline_mode<synchronous>, transform_indices = @transform_1, window_bounds = array<i64: 8, 32>}, {pipeline_mode = #tpu.pipeline_mode<synchronous>, transform_indices = @transform_2, window_bounds = array<i64: 1, 32>}, {pipeline_mode = #tpu.pipeline_mode<synchronous>, transform_indices = @transform_3, window_bounds = array<i64: 1, 8, 32>}, {transform_indices = @transform_4, window_bounds = array<i64: 1, 2, 32, 16>}, {transform_indices = @transform_5, window_bounds = array<i64: 1, 2, 32, 16>}, {transform_indices = @transform_6, window_bounds = array<i64: 1, 2, 32, 16>}, {transform_indices = @transform_7, window_bounds = array<i64: 1, 2, 1, 16>}, {transform_indices = @transform_8, window_bounds = array<i64: 1, 2, 1, 16>}, {transform_indices = @transform_9, window_bounds = array<i64: 1, 2, 1, 16>}, {transform_indices = @transform_10, window_bounds = array<i64: 1, 2, 16, 32>}, {transform_indices = @transform_11, window_bounds = array<i64: 1, 1, 32>}, {transform_indices = @transform_12, window_bounds = array<i64: 1, 1, 32>}, {transform_indices = @transform_13, window_bounds = array<i64: 1, 1, 32>}, {transform_indices = @transform_14, window_bounds = array<i64: 1, 32, 64>}, {transform_indices = @transform_15, window_bounds = array<i64: 1, 1, 64>}, {transform_indices = @transform_16, window_bounds = array<i64: 1, 64, 32>}, {transform_indices = @transform_17, window_bounds = array<i64: 1, 1, 32>}, {transform_indices = @transform_18, window_bounds = array<i64: 1, 1, 32>}, {transform_indices = @transform_19, window_bounds = array<i64: 1, 1, 32>}, {transform_indices = @transform_20, window_bounds = array<i64: 1, 8, 32>}]} {
    %c0_i32 = arith.constant 0 : i32
    %0 = arith.cmpi eq, %arg1, %c0_i32 : i32
    %1 = arith.extui %0 : i1 to i32
    %c0_i32_0 = arith.constant 0 : i32
    %2 = arith.cmpi ne, %1, %c0_i32_0 : i32
    scf.if %2 {
      %c0_118 = arith.constant 0 : index
      %c0_119 = arith.constant 0 : index
      %c0_120 = arith.constant 0 : index
      %155 = vector.load %arg2[%c0_118, %c0_119, %c0_120] : memref<1x8x8xf32, #tpu.memory_space<vmem>>, vector<1x8x8xf32>
      %156 = vector.shape_cast %155 : vector<1x8x8xf32> to vector<8x8xf32>
      %c0_121 = arith.constant 0 : index
      %c0_122 = arith.constant 0 : index
      %157 = vector.load %arg3[%c0_121, %c0_122] : memref<8x32xf32, #tpu.memory_space<vmem>>, vector<8x32xf32>
      %cst_123 = arith.constant dense<0.000000e+00> : vector<8x32xf32>
      %158 = tpu.matmul %156, %157, %cst_123 {dimension_numbers = #tpu.dot_dimension_numbers<[1], [0], [0], [1], [0, 0, 1, 1], [], []>} : vector<8x8xf32>, vector<8x32xf32>, vector<8x32xf32> -> vector<8x32xf32>
      %c0_124 = arith.constant 0 : index
      %c0_125 = arith.constant 0 : index
      %159 = vector.load %arg4[%c0_124, %c0_125] : memref<1x32xf32, #tpu.memory_space<vmem>>, vector<1x32xf32>
      %160 = vector.broadcast %159 : vector<1x32xf32> to vector<8x32xf32>
      %161 = arith.addf %158, %160 : vector<8x32xf32>
      %c0_126 = arith.constant 0 : index
      %c0_127 = arith.constant 0 : index
      %c0_128 = arith.constant 0 : index
      %162 = vector.load %arg5[%c0_126, %c0_127, %c0_128] : memref<1x8x32xf32, #tpu.memory_space<vmem>>, vector<1x8x32xf32>
      %163 = vector.shape_cast %162 : vector<1x8x32xf32> to vector<8x32xf32>
      %164 = arith.addf %161, %163 : vector<8x32xf32>
      %c0_129 = arith.constant 0 : index
      %c0_130 = arith.constant 0 : index
      %165 = vector.load %arg23[%c0_129, %c0_130] : memref<8x32xf32, #tpu.memory_space<vmem>>, vector<8x32xf32>
      tpu.vector_store %arg23[%c0_129, %c0_130], %164 {strides = array<i32>} : memref<8x32xf32, #tpu.memory_space<vmem>>, vector<8x32xf32>,
    } else {
    }
    %c0 = arith.constant 0 : index
    %c0_1 = arith.constant 0 : index
    %3 = vector.load %arg23[%c0, %c0_1] : memref<8x32xf32, #tpu.memory_space<vmem>>, vector<8x32xf32>
    %cst = arith.constant 0.000000e+00 : f32
    %4 = vector.broadcast %cst : f32 to vector<8x32xf32>
    %c0_2 = arith.constant 0 : index
    %c0_3 = arith.constant 0 : index
    %c0_4 = arith.constant 0 : index
    %c0_5 = arith.constant 0 : index
    %5 = vector.load %arg6[%c0_2, %c0_3, %c0_4, %c0_5] : memref<1x2x32x16xf32, #tpu.memory_space<vmem>>, vector<1x1x32x16xf32>
    %6 = vector.shape_cast %5 : vector<1x1x32x16xf32> to vector<32x16xf32>
    %cst_6 = arith.constant dense<0.000000e+00> : vector<8x16xf32>
    %7 = tpu.matmul %3, %6, %cst_6 {dimension_numbers = #tpu.dot_dimension_numbers<[1], [0], [0], [1], [0, 0, 1, 1], [], []>} : vector<8x32xf32>, vector<32x16xf32>, vector<8x16xf32> -> vector<8x16xf32>
    %c0_7 = arith.constant 0 : index
    %c0_8 = arith.constant 0 : index
    %c0_9 = arith.constant 0 : index
    %c0_10 = arith.constant 0 : index
    %8 = vector.load %arg9[%c0_7, %c0_8, %c0_9, %c0_10] : memref<1x2x1x16xf32, #tpu.memory_space<vmem>>, vector<1x1x1x16xf32>
    %9 = vector.shape_cast %8 : vector<1x1x1x16xf32> to vector<1x16xf32>
    %10 = vector.broadcast %9 : vector<1x16xf32> to vector<8x16xf32>
    %11 = arith.addf %7, %10 : vector<8x16xf32>
    %c0_11 = arith.constant 0 : index
    %c0_12 = arith.constant 0 : index
    %c0_13 = arith.constant 0 : index
    %c0_14 = arith.constant 0 : index
    %12 = vector.load %arg7[%c0_11, %c0_12, %c0_13, %c0_14] : memref<1x2x32x16xf32, #tpu.memory_space<vmem>>, vector<1x1x32x16xf32>
    %13 = vector.shape_cast %12 : vector<1x1x32x16xf32> to vector<32x16xf32>
    %cst_15 = arith.constant dense<0.000000e+00> : vector<8x16xf32>
    %14 = tpu.matmul %3, %13, %cst_15 {dimension_numbers = #tpu.dot_dimension_numbers<[1], [0], [0], [1], [0, 0, 1, 1], [], []>} : vector<8x32xf32>, vector<32x16xf32>, vector<8x16xf32> -> vector<8x16xf32>
    %c0_16 = arith.constant 0 : index
    %c0_17 = arith.constant 0 : index
    %c0_18 = arith.constant 0 : index
    %c0_19 = arith.constant 0 : index
    %15 = vector.load %arg10[%c0_16, %c0_17, %c0_18, %c0_19] : memref<1x2x1x16xf32, #tpu.memory_space<vmem>>, vector<1x1x1x16xf32>
    %16 = vector.shape_cast %15 : vector<1x1x1x16xf32> to vector<1x16xf32>
    %17 = vector.broadcast %16 : vector<1x16xf32> to vector<8x16xf32>
    %18 = arith.addf %14, %17 : vector<8x16xf32>
    %c0_20 = arith.constant 0 : index
    %c0_21 = arith.constant 0 : index
    %c0_22 = arith.constant 0 : index
    %c0_23 = arith.constant 0 : index
    %19 = vector.load %arg8[%c0_20, %c0_21, %c0_22, %c0_23] : memref<1x2x32x16xf32, #tpu.memory_space<vmem>>, vector<1x1x32x16xf32>
    %20 = vector.shape_cast %19 : vector<1x1x32x16xf32> to vector<32x16xf32>
    %cst_24 = arith.constant dense<0.000000e+00> : vector<8x16xf32>
    %21 = tpu.matmul %3, %20, %cst_24 {dimension_numbers = #tpu.dot_dimension_numbers<[1], [0], [0], [1], [0, 0, 1, 1], [], []>} : vector<8x32xf32>, vector<32x16xf32>, vector<8x16xf32> -> vector<8x16xf32>
    %c0_25 = arith.constant 0 : index
    %c0_26 = arith.constant 0 : index
    %c0_27 = arith.constant 0 : index
    %c0_28 = arith.constant 0 : index
    %22 = vector.load %arg11[%c0_25, %c0_26, %c0_27, %c0_28] : memref<1x2x1x16xf32, #tpu.memory_space<vmem>>, vector<1x1x1x16xf32>
    %23 = vector.shape_cast %22 : vector<1x1x1x16xf32> to vector<1x16xf32>
    %24 = vector.broadcast %23 : vector<1x16xf32> to vector<8x16xf32>
    %25 = arith.addf %21, %24 : vector<8x16xf32>
    %cst_29 = arith.constant dense<0.000000e+00> : vector<8x8xf32>
    %26 = tpu.matmul %11, %18, %cst_29 {dimension_numbers = #tpu.dot_dimension_numbers<[1], [1], [0], [0], [0, 0, 1, 0], [], []>} : vector<8x16xf32>, vector<8x16xf32>, vector<8x8xf32> -> vector<8x8xf32>
    %cst_30 = arith.constant 2.500000e-01 : f32
    %27 = vector.broadcast %cst_30 : f32 to vector<8x8xf32>
    %28 = arith.mulf %26, %27 : vector<8x8xf32>
    %cst_31 = arith.constant dense<0xFF800000> : vector<8xf32>
    %29 = vector.multi_reduction <maximumf>, %28, %cst_31 [1] : vector<8x8xf32> to vector<8xf32>
    %30 = vector.shape_cast %29 : vector<8xf32> to vector<8x1xf32>
    %31 = vector.broadcast %30 : vector<8x1xf32> to vector<8x8xf32>
    %32 = arith.subf %28, %31 : vector<8x8xf32>
    %33 = math.exp %32 : vector<8x8xf32>
    %cst_32 = arith.constant dense<0.000000e+00> : vector<8xf32>
    %34 = vector.multi_reduction <add>, %33, %cst_32 [1] : vector<8x8xf32> to vector<8xf32>
    %35 = vector.shape_cast %34 : vector<8xf32> to vector<8x1xf32>
    %36 = vector.broadcast %35 : vector<8x1xf32> to vector<8x8xf32>
    %37 = arith.divf %33, %36 : vector<8x8xf32>
    %cst_33 = arith.constant dense<0.000000e+00> : vector<8x16xf32>
    %38 = tpu.matmul %37, %25, %cst_33 {dimension_numbers = #tpu.dot_dimension_numbers<[1], [0], [0], [1], [0, 0, 1, 1], [], []>} : vector<8x8xf32>, vector<8x16xf32>, vector<8x16xf32> -> vector<8x16xf32>
    %c0_34 = arith.constant 0 : index
    %c0_35 = arith.constant 0 : index
    %c0_36 = arith.constant 0 : index
    %c0_37 = arith.constant 0 : index
    %39 = vector.load %arg12[%c0_34, %c0_35, %c0_36, %c0_37] : memref<1x2x16x32xf32, #tpu.memory_space<vmem>>, vector<1x1x16x32xf32>
    %40 = vector.shape_cast %39 : vector<1x1x16x32xf32> to vector<16x32xf32>
    %cst_38 = arith.constant dense<0.000000e+00> : vector<8x32xf32>
    %41 = tpu.matmul %38, %40, %cst_38 {dimension_numbers = #tpu.dot_dimension_numbers<[1], [0], [0], [1], [0, 0, 1, 1], [], []>} : vector<8x16xf32>, vector<16x32xf32>, vector<8x32xf32> -> vector<8x32xf32>
    %42 = arith.addf %4, %41 : vector<8x32xf32>
    %c0_39 = arith.constant 0 : index
    %c1 = arith.constant 1 : index
    %c0_40 = arith.constant 0 : index
    %c0_41 = arith.constant 0 : index
    %43 = vector.load %arg6[%c0_39, %c1, %c0_40, %c0_41] : memref<1x2x32x16xf32, #tpu.memory_space<vmem>>, vector<1x1x32x16xf32>
    %44 = vector.shape_cast %43 : vector<1x1x32x16xf32> to vector<32x16xf32>
    %cst_42 = arith.constant dense<0.000000e+00> : vector<8x16xf32>
    %45 = tpu.matmul %3, %44, %cst_42 {dimension_numbers = #tpu.dot_dimension_numbers<[1], [0], [0], [1], [0, 0, 1, 1], [], []>} : vector<8x32xf32>, vector<32x16xf32>, vector<8x16xf32> -> vector<8x16xf32>
    %c0_43 = arith.constant 0 : index
    %c1_44 = arith.constant 1 : index
    %c0_45 = arith.constant 0 : index
    %c0_46 = arith.constant 0 : index
    %46 = vector.load %arg9[%c0_43, %c1_44, %c0_45, %c0_46] : memref<1x2x1x16xf32, #tpu.memory_space<vmem>>, vector<1x1x1x16xf32>
    %47 = vector.shape_cast %46 : vector<1x1x1x16xf32> to vector<1x16xf32>
    %48 = vector.broadcast %47 : vector<1x16xf32> to vector<8x16xf32>
    %49 = arith.addf %45, %48 : vector<8x16xf32>
    %c0_47 = arith.constant 0 : index
    %c1_48 = arith.constant 1 : index
    %c0_49 = arith.constant 0 : index
    %c0_50 = arith.constant 0 : index
    %50 = vector.load %arg7[%c0_47, %c1_48, %c0_49, %c0_50] : memref<1x2x32x16xf32, #tpu.memory_space<vmem>>, vector<1x1x32x16xf32>
    %51 = vector.shape_cast %50 : vector<1x1x32x16xf32> to vector<32x16xf32>
    %cst_51 = arith.constant dense<0.000000e+00> : vector<8x16xf32>
    %52 = tpu.matmul %3, %51, %cst_51 {dimension_numbers = #tpu.dot_dimension_numbers<[1], [0], [0], [1], [0, 0, 1, 1], [], []>} : vector<8x32xf32>, vector<32x16xf32>, vector<8x16xf32> -> vector<8x16xf32>
    %c0_52 = arith.constant 0 : index
    %c1_53 = arith.constant 1 : index
    %c0_54 = arith.constant 0 : index
    %c0_55 = arith.constant 0 : index
    %53 = vector.load %arg10[%c0_52, %c1_53, %c0_54, %c0_55] : memref<1x2x1x16xf32, #tpu.memory_space<vmem>>, vector<1x1x1x16xf32>
    %54 = vector.shape_cast %53 : vector<1x1x1x16xf32> to vector<1x16xf32>
    %55 = vector.broadcast %54 : vector<1x16xf32> to vector<8x16xf32>
    %56 = arith.addf %52, %55 : vector<8x16xf32>
    %c0_56 = arith.constant 0 : index
    %c1_57 = arith.constant 1 : index
    %c0_58 = arith.constant 0 : index
    %c0_59 = arith.constant 0 : index
    %57 = vector.load %arg8[%c0_56, %c1_57, %c0_58, %c0_59] : memref<1x2x32x16xf32, #tpu.memory_space<vmem>>, vector<1x1x32x16xf32>
    %58 = vector.shape_cast %57 : vector<1x1x32x16xf32> to vector<32x16xf32>
    %cst_60 = arith.constant dense<0.000000e+00> : vector<8x16xf32>
    %59 = tpu.matmul %3, %58, %cst_60 {dimension_numbers = #tpu.dot_dimension_numbers<[1], [0], [0], [1], [0, 0, 1, 1], [], []>} : vector<8x32xf32>, vector<32x16xf32>, vector<8x16xf32> -> vector<8x16xf32>
    %c0_61 = arith.constant 0 : index
    %c1_62 = arith.constant 1 : index
    %c0_63 = arith.constant 0 : index
    %c0_64 = arith.constant 0 : index
    %60 = vector.load %arg11[%c0_61, %c1_62, %c0_63, %c0_64] : memref<1x2x1x16xf32, #tpu.memory_space<vmem>>, vector<1x1x1x16xf32>
    %61 = vector.shape_cast %60 : vector<1x1x1x16xf32> to vector<1x16xf32>
    %62 = vector.broadcast %61 : vector<1x16xf32> to vector<8x16xf32>
    %63 = arith.addf %59, %62 : vector<8x16xf32>
    %cst_65 = arith.constant dense<0.000000e+00> : vector<8x8xf32>
    %64 = tpu.matmul %49, %56, %cst_65 {dimension_numbers = #tpu.dot_dimension_numbers<[1], [1], [0], [0], [0, 0, 1, 0], [], []>} : vector<8x16xf32>, vector<8x16xf32>, vector<8x8xf32> -> vector<8x8xf32>
    %cst_66 = arith.constant 2.500000e-01 : f32
    %65 = vector.broadcast %cst_66 : f32 to vector<8x8xf32>
    %66 = arith.mulf %64, %65 : vector<8x8xf32>
    %cst_67 = arith.constant dense<0xFF800000> : vector<8xf32>
    %67 = vector.multi_reduction <maximumf>, %66, %cst_67 [1] : vector<8x8xf32> to vector<8xf32>
    %68 = vector.shape_cast %67 : vector<8xf32> to vector<8x1xf32>
    %69 = vector.broadcast %68 : vector<8x1xf32> to vector<8x8xf32>
    %70 = arith.subf %66, %69 : vector<8x8xf32>
    %71 = math.exp %70 : vector<8x8xf32>
    %cst_68 = arith.constant dense<0.000000e+00> : vector<8xf32>
    %72 = vector.multi_reduction <add>, %71, %cst_68 [1] : vector<8x8xf32> to vector<8xf32>
    %73 = vector.shape_cast %72 : vector<8xf32> to vector<8x1xf32>
    %74 = vector.broadcast %73 : vector<8x1xf32> to vector<8x8xf32>
    %75 = arith.divf %71, %74 : vector<8x8xf32>
    %cst_69 = arith.constant dense<0.000000e+00> : vector<8x16xf32>
    %76 = tpu.matmul %75, %63, %cst_69 {dimension_numbers = #tpu.dot_dimension_numbers<[1], [0], [0], [1], [0, 0, 1, 1], [], []>} : vector<8x8xf32>, vector<8x16xf32>, vector<8x16xf32> -> vector<8x16xf32>
    %c0_70 = arith.constant 0 : index
    %c1_71 = arith.constant 1 : index
    %c0_72 = arith.constant 0 : index
    %c0_73 = arith.constant 0 : index
    %77 = vector.load %arg12[%c0_70, %c1_71, %c0_72, %c0_73] : memref<1x2x16x32xf32, #tpu.memory_space<vmem>>, vector<1x1x16x32xf32>
    %78 = vector.shape_cast %77 : vector<1x1x16x32xf32> to vector<16x32xf32>
    %cst_74 = arith.constant dense<0.000000e+00> : vector<8x32xf32>
    %79 = tpu.matmul %76, %78, %cst_74 {dimension_numbers = #tpu.dot_dimension_numbers<[1], [0], [0], [1], [0, 0, 1, 1], [], []>} : vector<8x16xf32>, vector<16x32xf32>, vector<8x32xf32> -> vector<8x32xf32>
    %80 = arith.addf %42, %79 : vector<8x32xf32>
    %c0_75 = arith.constant 0 : index
    %c0_76 = arith.constant 0 : index
    %c0_77 = arith.constant 0 : index
    %81 = vector.load %arg13[%c0_75, %c0_76, %c0_77] : memref<1x1x32xf32, #tpu.memory_space<vmem>>, vector<1x1x32xf32>
    %82 = vector.shape_cast %81 : vector<1x1x32xf32> to vector<1x32xf32>
    %83 = vector.broadcast %82 : vector<1x32xf32> to vector<8x32xf32>
    %84 = arith.addf %80, %83 : vector<8x32xf32>
    %85 = arith.addf %3, %84 : vector<8x32xf32>
    %c0_78 = arith.constant 0 : index
    %c0_79 = arith.constant 0 : index
    %c0_80 = arith.constant 0 : index
    %86 = vector.load %arg14[%c0_78, %c0_79, %c0_80] : memref<1x1x32xf32, #tpu.memory_space<vmem>>, vector<1x1x32xf32>
    %87 = vector.shape_cast %86 : vector<1x1x32xf32> to vector<1x32xf32>
    %c0_81 = arith.constant 0 : index
    %c0_82 = arith.constant 0 : index
    %c0_83 = arith.constant 0 : index
    %88 = vector.load %arg15[%c0_81, %c0_82, %c0_83] : memref<1x1x32xf32, #tpu.memory_space<vmem>>, vector<1x1x32xf32>
    %89 = vector.shape_cast %88 : vector<1x1x32xf32> to vector<1x32xf32>
    %cst_84 = arith.constant dense<0.000000e+00> : vector<8xf32>
    %90 = vector.multi_reduction <add>, %85, %cst_84 [1] : vector<8x32xf32> to vector<8xf32>
    %91 = vector.shape_cast %90 : vector<8xf32> to vector<8x1xf32>
    %cst_85 = arith.constant 3.200000e+01 : f32
    %92 = vector.broadcast %cst_85 : f32 to vector<8x1xf32>
    %93 = arith.divf %91, %92 : vector<8x1xf32>
    %94 = vector.broadcast %93 : vector<8x1xf32> to vector<8x32xf32>
    %95 = arith.subf %85, %94 : vector<8x32xf32>
    %96 = arith.mulf %95, %95 : vector<8x32xf32>
    %cst_86 = arith.constant dense<0.000000e+00> : vector<8xf32>
    %97 = vector.multi_reduction <add>, %96, %cst_86 [1] : vector<8x32xf32> to vector<8xf32>
    %98 = vector.shape_cast %97 : vector<8xf32> to vector<8x1xf32>
    %cst_87 = arith.constant 3.200000e+01 : f32
    %99 = vector.broadcast %cst_87 : f32 to vector<8x1xf32>
    %100 = arith.divf %98, %99 : vector<8x1xf32>
    %cst_88 = arith.constant 9.99999974E-6 : f32
    %101 = vector.broadcast %cst_88 : f32 to vector<8x1xf32>
    %102 = arith.addf %100, %101 : vector<8x1xf32>
    %103 = math.rsqrt %102 : vector<8x1xf32>
    %104 = vector.broadcast %103 : vector<8x1xf32> to vector<8x32xf32>
    %105 = arith.mulf %95, %104 : vector<8x32xf32>
    %106 = vector.broadcast %87 : vector<1x32xf32> to vector<8x32xf32>
    %107 = arith.mulf %105, %106 : vector<8x32xf32>
    %108 = vector.broadcast %89 : vector<1x32xf32> to vector<8x32xf32>
    %109 = arith.addf %107, %108 : vector<8x32xf32>
    %c0_89 = arith.constant 0 : index
    %c0_90 = arith.constant 0 : index
    %c0_91 = arith.constant 0 : index
    %110 = vector.load %arg16[%c0_89, %c0_90, %c0_91] : memref<1x32x64xf32, #tpu.memory_space<vmem>>, vector<1x32x64xf32>
    %111 = vector.shape_cast %110 : vector<1x32x64xf32> to vector<32x64xf32>
    %cst_92 = arith.constant dense<0.000000e+00> : vector<8x64xf32>
    %112 = tpu.matmul %109, %111, %cst_92 {dimension_numbers = #tpu.dot_dimension_numbers<[1], [0], [0], [1], [0, 0, 1, 1], [], []>} : vector<8x32xf32>, vector<32x64xf32>, vector<8x64xf32> -> vector<8x64xf32>
    %c0_93 = arith.constant 0 : index
    %c0_94 = arith.constant 0 : index
    %c0_95 = arith.constant 0 : index
    %113 = vector.load %arg17[%c0_93, %c0_94, %c0_95] : memref<1x1x64xf32, #tpu.memory_space<vmem>>, vector<1x1x64xf32>
    %114 = vector.shape_cast %113 : vector<1x1x64xf32> to vector<1x64xf32>
    %115 = vector.broadcast %114 : vector<1x64xf32> to vector<8x64xf32>
    %116 = arith.addf %112, %115 : vector<8x64xf32>
    %cst_96 = arith.constant 0.000000e+00 : f32
    %117 = vector.broadcast %cst_96 : f32 to vector<8x64xf32>
    %118 = arith.maximumf %116, %117 : vector<8x64xf32>
    %c0_97 = arith.constant 0 : index
    %c0_98 = arith.constant 0 : index
    %c0_99 = arith.constant 0 : index
    %119 = vector.load %arg18[%c0_97, %c0_98, %c0_99] : memref<1x64x32xf32, #tpu.memory_space<vmem>>, vector<1x64x32xf32>
    %120 = vector.shape_cast %119 : vector<1x64x32xf32> to vector<64x32xf32>
    %cst_100 = arith.constant dense<0.000000e+00> : vector<8x32xf32>
    %121 = tpu.matmul %118, %120, %cst_100 {dimension_numbers = #tpu.dot_dimension_numbers<[1], [0], [0], [1], [0, 0, 1, 1], [], []>} : vector<8x64xf32>, vector<64x32xf32>, vector<8x32xf32> -> vector<8x32xf32>
    %c0_101 = arith.constant 0 : index
    %c0_102 = arith.constant 0 : index
    %c0_103 = arith.constant 0 : index
    %122 = vector.load %arg19[%c0_101, %c0_102, %c0_103] : memref<1x1x32xf32, #tpu.memory_space<vmem>>, vector<1x1x32xf32>
    %123 = vector.shape_cast %122 : vector<1x1x32xf32> to vector<1x32xf32>
    %124 = vector.broadcast %123 : vector<1x32xf32> to vector<8x32xf32>
    %125 = arith.addf %121, %124 : vector<8x32xf32>
    %126 = arith.addf %109, %125 : vector<8x32xf32>
    %c0_104 = arith.constant 0 : index
    %c0_105 = arith.constant 0 : index
    %c0_106 = arith.constant 0 : index
    %127 = vector.load %arg20[%c0_104, %c0_105, %c0_106] : memref<1x1x32xf32, #tpu.memory_space<vmem>>, vector<1x1x32xf32>
    %128 = vector.shape_cast %127 : vector<1x1x32xf32> to vector<1x32xf32>
    %c0_107 = arith.constant 0 : index
    %c0_108 = arith.constant 0 : index
    %c0_109 = arith.constant 0 : index
    %129 = vector.load %arg21[%c0_107, %c0_108, %c0_109] : memref<1x1x32xf32, #tpu.memory_space<vmem>>, vector<1x1x32xf32>
    %130 = vector.shape_cast %129 : vector<1x1x32xf32> to vector<1x32xf32>
    %cst_110 = arith.constant dense<0.000000e+00> : vector<8xf32>
    %131 = vector.multi_reduction <add>, %126, %cst_110 [1] : vector<8x32xf32> to vector<8xf32>
    %132 = vector.shape_cast %131 : vector<8xf32> to vector<8x1xf32>
    %cst_111 = arith.constant 3.200000e+01 : f32
    %133 = vector.broadcast %cst_111 : f32 to vector<8x1xf32>
    %134 = arith.divf %132, %133 : vector<8x1xf32>
    %135 = vector.broadcast %134 : vector<8x1xf32> to vector<8x32xf32>
    %136 = arith.subf %126, %135 : vector<8x32xf32>
    %137 = arith.mulf %136, %136 : vector<8x32xf32>
    %cst_112 = arith.constant dense<0.000000e+00> : vector<8xf32>
    %138 = vector.multi_reduction <add>, %137, %cst_112 [1] : vector<8x32xf32> to vector<8xf32>
    %139 = vector.shape_cast %138 : vector<8xf32> to vector<8x1xf32>
    %cst_113 = arith.constant 3.200000e+01 : f32
    %140 = vector.broadcast %cst_113 : f32 to vector<8x1xf32>
    %141 = arith.divf %139, %140 : vector<8x1xf32>
    %cst_114 = arith.constant 9.99999974E-6 : f32
    %142 = vector.broadcast %cst_114 : f32 to vector<8x1xf32>
    %143 = arith.addf %141, %142 : vector<8x1xf32>
    %144 = math.rsqrt %143 : vector<8x1xf32>
    %145 = vector.broadcast %144 : vector<8x1xf32> to vector<8x32xf32>
    %146 = arith.mulf %136, %145 : vector<8x32xf32>
    %147 = vector.broadcast %128 : vector<1x32xf32> to vector<8x32xf32>
    %148 = arith.mulf %146, %147 : vector<8x32xf32>
    %149 = vector.broadcast %130 : vector<1x32xf32> to vector<8x32xf32>
    %150 = arith.addf %148, %149 : vector<8x32xf32>
    %c0_115 = arith.constant 0 : index
    %c0_116 = arith.constant 0 : index
    %151 = vector.load %arg23[%c0_115, %c0_116] : memref<8x32xf32, #tpu.memory_space<vmem>>, vector<8x32xf32>
    tpu.vector_store %arg23[%c0_115, %c0_116], %150 {strides = array<i32>} : memref<8x32xf32, #tpu.memory_space<vmem>>, vector<8x32xf32>,
    %c1_i32 = arith.constant 1 : i32
    %152 = arith.cmpi eq, %arg1, %c1_i32 : i32
    %153 = arith.extui %152 : i1 to i32
    %c0_i32_117 = arith.constant 0 : i32
    %154 = arith.cmpi ne, %153, %c0_i32_117 : i32
    scf.if %154 {
      %c0_118 = arith.constant 0 : index
      %c0_119 = arith.constant 0 : index
      %c0_120 = arith.constant 0 : index
      %155 = vector.load %arg22[%c0_118, %c0_119, %c0_120] : memref<1x8x32xf32, #tpu.memory_space<vmem>>, vector<1x8x32xf32>
      %156 = vector.shape_cast %155 : vector<1x8x32xf32> to vector<8x32xf32>
      %157 = vector.shape_cast %150 : vector<8x32xf32> to vector<1x8x32xf32>
      tpu.vector_store %arg22[%c0_118, %c0_119, %c0_120], %157 {strides = array<i32>} : memref<1x8x32xf32, #tpu.memory_space<vmem>>, vector<1x8x32xf32>,
    } else {
    }
    return
  }
  func.func @transform_0(%arg0: i32, %arg1: i32) -> (i32, i32, i32) {
    %c0_i32 = arith.constant 0 : i32
    %c0_i32_0 = arith.constant 0 : i32
    %c0_i32_1 = arith.constant 0 : i32
    return %arg0, %c0_i32, %c0_i32_0 : i32, i32, i32
  }
  func.func @transform_1(%arg0: i32, %arg1: i32) -> (i32, i32) {
    %c0_i32 = arith.constant 0 : i32
    %c0_i32_0 = arith.constant 0 : i32
    %c0_i32_1 = arith.constant 0 : i32
    return %c0_i32, %c0_i32_0 : i32, i32
  }
  func.func @transform_2(%arg0: i32, %arg1: i32) -> (i32, i32) {
    %c0_i32 = arith.constant 0 : i32
    %c0_i32_0 = arith.constant 0 : i32
    %c0_i32_1 = arith.constant 0 : i32
    return %c0_i32, %c0_i32_0 : i32, i32
  }
  func.func @transform_3(%arg0: i32, %arg1: i32) -> (i32, i32, i32) {
    %c0_i32 = arith.constant 0 : i32
    %c0_i32_0 = arith.constant 0 : i32
    %c0_i32_1 = arith.constant 0 : i32
    %c0_i32_2 = arith.constant 0 : i32
    return %c0_i32, %c0_i32_0, %c0_i32_1 : i32, i32, i32
  }
  func.func @transform_4(%arg0: i32, %arg1: i32) -> (i32, i32, i32, i32) {
    %c0_i32 = arith.constant 0 : i32
    %c0_i32_0 = arith.constant 0 : i32
    %c0_i32_1 = arith.constant 0 : i32
    %c0_i32_2 = arith.constant 0 : i32
    return %arg1, %c0_i32, %c0_i32_0, %c0_i32_1 : i32, i32, i32, i32
  }
  func.func @transform_5(%arg0: i32, %arg1: i32) -> (i32, i32, i32, i32) {
    %c0_i32 = arith.constant 0 : i32
    %c0_i32_0 = arith.constant 0 : i32
    %c0_i32_1 = arith.constant 0 : i32
    %c0_i32_2 = arith.constant 0 : i32
    return %arg1, %c0_i32, %c0_i32_0, %c0_i32_1 : i32, i32, i32, i32
  }
  func.func @transform_6(%arg0: i32, %arg1: i32) -> (i32, i32, i32, i32) {
    %c0_i32 = arith.constant 0 : i32
    %c0_i32_0 = arith.constant 0 : i32
    %c0_i32_1 = arith.constant 0 : i32
    %c0_i32_2 = arith.constant 0 : i32
    return %arg1, %c0_i32, %c0_i32_0, %c0_i32_1 : i32, i32, i32, i32
  }
  func.func @transform_7(%arg0: i32, %arg1: i32) -> (i32, i32, i32, i32) {
    %c0_i32 = arith.constant 0 : i32
    %c0_i32_0 = arith.constant 0 : i32
    %c0_i32_1 = arith.constant 0 : i32
    %c0_i32_2 = arith.constant 0 : i32
    return %arg1, %c0_i32, %c0_i32_0, %c0_i32_1 : i32, i32, i32, i32
  }
  func.func @transform_8(%arg0: i32, %arg1: i32) -> (i32, i32, i32, i32) {
    %c0_i32 = arith.constant 0 : i32
    %c0_i32_0 = arith.constant 0 : i32
    %c0_i32_1 = arith.constant 0 : i32
    %c0_i32_2 = arith.constant 0 : i32
    return %arg1, %c0_i32, %c0_i32_0, %c0_i32_1 : i32, i32, i32, i32
  }
  func.func @transform_9(%arg0: i32, %arg1: i32) -> (i32, i32, i32, i32) {
    %c0_i32 = arith.constant 0 : i32
    %c0_i32_0 = arith.constant 0 : i32
    %c0_i32_1 = arith.constant 0 : i32
    %c0_i32_2 = arith.constant 0 : i32
    return %arg1, %c0_i32, %c0_i32_0, %c0_i32_1 : i32, i32, i32, i32
  }
  func.func @transform_10(%arg0: i32, %arg1: i32) -> (i32, i32, i32, i32) {
    %c0_i32 = arith.constant 0 : i32
    %c0_i32_0 = arith.constant 0 : i32
    %c0_i32_1 = arith.constant 0 : i32
    %c0_i32_2 = arith.constant 0 : i32
    return %arg1, %c0_i32, %c0_i32_0, %c0_i32_1 : i32, i32, i32, i32
  }
  func.func @transform_11(%arg0: i32, %arg1: i32) -> (i32, i32, i32) {
    %c0_i32 = arith.constant 0 : i32
    %c0_i32_0 = arith.constant 0 : i32
    %c0_i32_1 = arith.constant 0 : i32
    return %arg1, %c0_i32, %c0_i32_0 : i32, i32, i32
  }
  func.func @transform_12(%arg0: i32, %arg1: i32) -> (i32, i32, i32) {
    %c0_i32 = arith.constant 0 : i32
    %c0_i32_0 = arith.constant 0 : i32
    %c0_i32_1 = arith.constant 0 : i32
    return %arg1, %c0_i32, %c0_i32_0 : i32, i32, i32
  }
  func.func @transform_13(%arg0: i32, %arg1: i32) -> (i32, i32, i32) {
    %c0_i32 = arith.constant 0 : i32
    %c0_i32_0 = arith.constant 0 : i32
    %c0_i32_1 = arith.constant 0 : i32
    return %arg1, %c0_i32, %c0_i32_0 : i32, i32, i32
  }
  func.func @transform_14(%arg0: i32, %arg1: i32) -> (i32, i32, i32) {
    %c0_i32 = arith.constant 0 : i32
    %c0_i32_0 = arith.constant 0 : i32
    %c0_i32_1 = arith.constant 0 : i32
    return %arg1, %c0_i32, %c0_i32_0 : i32, i32, i32
  }
  func.func @transform_15(%arg0: i32, %arg1: i32) -> (i32, i32, i32) {
    %c0_i32 = arith.constant 0 : i32
    %c0_i32_0 = arith.constant 0 : i32
    %c0_i32_1 = arith.constant 0 : i32
    return %arg1, %c0_i32, %c0_i32_0 : i32, i32, i32
  }
  func.func @transform_16(%arg0: i32, %arg1: i32) -> (i32, i32, i32) {
    %c0_i32 = arith.constant 0 : i32
    %c0_i32_0 = arith.constant 0 : i32
    %c0_i32_1 = arith.constant 0 : i32
    return %arg1, %c0_i32, %c0_i32_0 : i32, i32, i32
  }
  func.func @transform_17(%arg0: i32, %arg1: i32) -> (i32, i32, i32) {
    %c0_i32 = arith.constant 0 : i32
    %c0_i32_0 = arith.constant 0 : i32
    %c0_i32_1 = arith.constant 0 : i32
    return %arg1, %c0_i32, %c0_i32_0 : i32, i32, i32
  }
  func.func @transform_18(%arg0: i32, %arg1: i32) -> (i32, i32, i32) {
    %c0_i32 = arith.constant 0 : i32
    %c0_i32_0 = arith.constant 0 : i32
    %c0_i32_1 = arith.constant 0 : i32
    return %arg1, %c0_i32, %c0_i32_0 : i32, i32, i32
  }
  func.func @transform_19(%arg0: i32, %arg1: i32) -> (i32, i32, i32) {
    %c0_i32 = arith.constant 0 : i32
    %c0_i32_0 = arith.constant 0 : i32
    %c0_i32_1 = arith.constant 0 : i32
    return %arg1, %c0_i32, %c0_i32_0 : i32, i32, i32
  }
  func.func @transform_20(%arg0: i32, %arg1: i32) -> (i32, i32, i32) {
    %c0_i32 = arith.constant 0 : i32
    %c0_i32_0 = arith.constant 0 : i32
    %c0_i32_1 = arith.constant 0 : i32
    return %arg0, %c0_i32, %c0_i32_0 : i32, i32, i32
  }
}

module attributes {stable_mosaic.version = 11 : i64} {
  func.func @_decoder_stack_kernel(%arg0: i32, %arg1: i32, %arg2: memref<1x8x32xf32, #tpu.memory_space<vmem>>, %arg3: memref<1x8x32xf32, #tpu.memory_space<vmem>>, %arg4: memref<1x16x8xf32, #tpu.memory_space<vmem>>, %arg5: memref<8x32xf32, #tpu.memory_space<vmem>>, %arg6: memref<1x32xf32, #tpu.memory_space<vmem>>, %arg7: memref<1x16x32xf32, #tpu.memory_space<vmem>>, %arg8: memref<1x2x32x16xf32, #tpu.memory_space<vmem>>, %arg9: memref<1x2x32x16xf32, #tpu.memory_space<vmem>>, %arg10: memref<1x2x32x16xf32, #tpu.memory_space<vmem>>, %arg11: memref<1x2x1x16xf32, #tpu.memory_space<vmem>>, %arg12: memref<1x2x1x16xf32, #tpu.memory_space<vmem>>, %arg13: memref<1x2x1x16xf32, #tpu.memory_space<vmem>>, %arg14: memref<1x2x16x32xf32, #tpu.memory_space<vmem>>, %arg15: memref<1x1x32xf32, #tpu.memory_space<vmem>>, %arg16: memref<1x1x32xf32, #tpu.memory_space<vmem>>, %arg17: memref<1x1x32xf32, #tpu.memory_space<vmem>>, %arg18: memref<1x2x32x16xf32, #tpu.memory_space<vmem>>, %arg19: memref<1x2x32x16xf32, #tpu.memory_space<vmem>>, %arg20: memref<1x2x32x16xf32, #tpu.memory_space<vmem>>, %arg21: memref<1x2x1x16xf32, #tpu.memory_space<vmem>>, %arg22: memref<1x2x1x16xf32, #tpu.memory_space<vmem>>, %arg23: memref<1x2x1x16xf32, #tpu.memory_space<vmem>>, %arg24: memref<1x2x16x32xf32, #tpu.memory_space<vmem>>, %arg25: memref<1x1x32xf32, #tpu.memory_space<vmem>>, %arg26: memref<1x1x32xf32, #tpu.memory_space<vmem>>, %arg27: memref<1x1x32xf32, #tpu.memory_space<vmem>>, %arg28: memref<1x32x64xf32, #tpu.memory_space<vmem>>, %arg29: memref<1x1x64xf32, #tpu.memory_space<vmem>>, %arg30: memref<1x64x32xf32, #tpu.memory_space<vmem>>, %arg31: memref<1x1x32xf32, #tpu.memory_space<vmem>>, %arg32: memref<1x1x32xf32, #tpu.memory_space<vmem>>, %arg33: memref<1x1x32xf32, #tpu.memory_space<vmem>>, %arg34: memref<32x8xf32, #tpu.memory_space<vmem>>, %arg35: memref<1x8xf32, #tpu.memory_space<vmem>>, %arg36: memref<1x8x8xf32, #tpu.memory_space<vmem>>, %arg37: memref<8x32xf32, #tpu.memory_space<vmem>>, %arg38: memref<16x32xf32, #tpu.memory_space<vmem>>) attributes {dimension_semantics = [#tpu.dimension_semantics<parallel>, #tpu.dimension_semantics<arbitrary>], iteration_bounds = array<i64: 2, 2>, scalar_prefetch = 0 : i64, scratch_operands = 2 : i64, tpu.core_type = #tpu.core_type<tc>, window_params = [{transform_indices = @transform_0, window_bounds = array<i64: 1, 8, 32>}, {pipeline_mode = #tpu.pipeline_mode<synchronous>, transform_indices = @transform_1, window_bounds = array<i64: 1, 8, 32>}, {transform_indices = @transform_2, window_bounds = array<i64: 1, 16, 8>}, {pipeline_mode = #tpu.pipeline_mode<synchronous>, transform_indices = @transform_3, window_bounds = array<i64: 8, 32>}, {pipeline_mode = #tpu.pipeline_mode<synchronous>, transform_indices = @transform_4, window_bounds = array<i64: 1, 32>}, {pipeline_mode = #tpu.pipeline_mode<synchronous>, transform_indices = @transform_5, window_bounds = array<i64: 1, 16, 32>}, {transform_indices = @transform_6, window_bounds = array<i64: 1, 2, 32, 16>}, {transform_indices = @transform_7, window_bounds = array<i64: 1, 2, 32, 16>}, {transform_indices = @transform_8, window_bounds = array<i64: 1, 2, 32, 16>}, {transform_indices = @transform_9, window_bounds = array<i64: 1, 2, 1, 16>}, {transform_indices = @transform_10, window_bounds = array<i64: 1, 2, 1, 16>}, {transform_indices = @transform_11, window_bounds = array<i64: 1, 2, 1, 16>}, {transform_indices = @transform_12, window_bounds = array<i64: 1, 2, 16, 32>}, {transform_indices = @transform_13, window_bounds = array<i64: 1, 1, 32>}, {transform_indices = @transform_14, window_bounds = array<i64: 1, 1, 32>}, {transform_indices = @transform_15, window_bounds = array<i64: 1, 1, 32>}, {transform_indices = @transform_16, window_bounds = array<i64: 1, 2, 32, 16>}, {transform_indices = @transform_17, window_bounds = array<i64: 1, 2, 32, 16>}, {transform_indices = @transform_18, window_bounds = array<i64: 1, 2, 32, 16>}, {transform_indices = @transform_19, window_bounds = array<i64: 1, 2, 1, 16>}, {transform_indices = @transform_20, window_bounds = array<i64: 1, 2, 1, 16>}, {transform_indices = @transform_21, window_bounds = array<i64: 1, 2, 1, 16>}, {transform_indices = @transform_22, window_bounds = array<i64: 1, 2, 16, 32>}, {transform_indices = @transform_23, window_bounds = array<i64: 1, 1, 32>}, {transform_indices = @transform_24, window_bounds = array<i64: 1, 1, 32>}, {transform_indices = @transform_25, window_bounds = array<i64: 1, 1, 32>}, {transform_indices = @transform_26, window_bounds = array<i64: 1, 32, 64>}, {transform_indices = @transform_27, window_bounds = array<i64: 1, 1, 64>}, {transform_indices = @transform_28, window_bounds = array<i64: 1, 64, 32>}, {transform_indices = @transform_29, window_bounds = array<i64: 1, 1, 32>}, {transform_indices = @transform_30, window_bounds = array<i64: 1, 1, 32>}, {transform_indices = @transform_31, window_bounds = array<i64: 1, 1, 32>}, {pipeline_mode = #tpu.pipeline_mode<synchronous>, transform_indices = @transform_32, window_bounds = array<i64: 32, 8>}, {pipeline_mode = #tpu.pipeline_mode<synchronous>, transform_indices = @transform_33, window_bounds = array<i64: 1, 8>}, {transform_indices = @transform_34, window_bounds = array<i64: 1, 8, 8>}]} {
    %c0_i32 = arith.constant 0 : i32
    %0 = arith.cmpi eq, %arg1, %c0_i32 : i32
    %1 = arith.extui %0 : i1 to i32
    %c0_i32_0 = arith.constant 0 : i32
    %2 = arith.cmpi ne, %1, %c0_i32_0 : i32
    scf.if %2 {
      %c0_209 = arith.constant 0 : index
      %c0_210 = arith.constant 0 : index
      %c0_211 = arith.constant 0 : index
      %262 = vector.load %arg2[%c0_209, %c0_210, %c0_211] : memref<1x8x32xf32, #tpu.memory_space<vmem>>, vector<1x8x32xf32>
      %263 = vector.shape_cast %262 : vector<1x8x32xf32> to vector<8x32xf32>
      %c0_212 = arith.constant 0 : index
      %c0_213 = arith.constant 0 : index
      %c0_214 = arith.constant 0 : index
      %264 = vector.load %arg3[%c0_212, %c0_213, %c0_214] : memref<1x8x32xf32, #tpu.memory_space<vmem>>, vector<1x8x32xf32>
      %265 = vector.shape_cast %264 : vector<1x8x32xf32> to vector<8x32xf32>
      %266 = arith.addf %263, %265 : vector<8x32xf32>
      %c0_215 = arith.constant 0 : index
      %c0_216 = arith.constant 0 : index
      %267 = vector.load %arg37[%c0_215, %c0_216] : memref<8x32xf32, #tpu.memory_space<vmem>>, vector<8x32xf32>
      tpu.vector_store %arg37[%c0_215, %c0_216], %266 {strides = array<i32>} : memref<8x32xf32, #tpu.memory_space<vmem>>, vector<8x32xf32>,
      %c0_217 = arith.constant 0 : index
      %c0_218 = arith.constant 0 : index
      %c0_219 = arith.constant 0 : index
      %268 = vector.load %arg4[%c0_217, %c0_218, %c0_219] : memref<1x16x8xf32, #tpu.memory_space<vmem>>, vector<1x16x8xf32>
      %269 = vector.shape_cast %268 : vector<1x16x8xf32> to vector<16x8xf32>
      %c0_220 = arith.constant 0 : index
      %c0_221 = arith.constant 0 : index
      %270 = vector.load %arg5[%c0_220, %c0_221] : memref<8x32xf32, #tpu.memory_space<vmem>>, vector<8x32xf32>
      %cst_222 = arith.constant dense<0.000000e+00> : vector<16x32xf32>
      %271 = tpu.matmul %269, %270, %cst_222 {dimension_numbers = #tpu.dot_dimension_numbers<[1], [0], [0], [1], [0, 0, 1, 1], [], []>} : vector<16x8xf32>, vector<8x32xf32>, vector<16x32xf32> -> vector<16x32xf32>
      %c0_223 = arith.constant 0 : index
      %c0_224 = arith.constant 0 : index
      %272 = vector.load %arg6[%c0_223, %c0_224] : memref<1x32xf32, #tpu.memory_space<vmem>>, vector<1x32xf32>
      %273 = vector.broadcast %272 : vector<1x32xf32> to vector<16x32xf32>
      %274 = arith.addf %271, %273 : vector<16x32xf32>
      %c0_225 = arith.constant 0 : index
      %c0_226 = arith.constant 0 : index
      %c0_227 = arith.constant 0 : index
      %275 = vector.load %arg7[%c0_225, %c0_226, %c0_227] : memref<1x16x32xf32, #tpu.memory_space<vmem>>, vector<1x16x32xf32>
      %276 = vector.shape_cast %275 : vector<1x16x32xf32> to vector<16x32xf32>
      %277 = arith.addf %274, %276 : vector<16x32xf32>
      %c0_228 = arith.constant 0 : index
      %c0_229 = arith.constant 0 : index
      %278 = vector.load %arg38[%c0_228, %c0_229] : memref<16x32xf32, #tpu.memory_space<vmem>>, vector<16x32xf32>
      tpu.vector_store %arg38[%c0_228, %c0_229], %277 {strides = array<i32>} : memref<16x32xf32, #tpu.memory_space<vmem>>, vector<16x32xf32>,
    } else {
    }
    %c0 = arith.constant 0 : index
    %c0_1 = arith.constant 0 : index
    %3 = vector.load %arg37[%c0, %c0_1] : memref<8x32xf32, #tpu.memory_space<vmem>>, vector<8x32xf32>
    %c0_2 = arith.constant 0 : index
    %c0_3 = arith.constant 0 : index
    %4 = vector.load %arg38[%c0_2, %c0_3] : memref<16x32xf32, #tpu.memory_space<vmem>>, vector<16x32xf32>
    %cst = arith.constant 0.000000e+00 : f32
    %5 = vector.broadcast %cst : f32 to vector<8x32xf32>
    %c0_4 = arith.constant 0 : index
    %c0_5 = arith.constant 0 : index
    %c0_6 = arith.constant 0 : index
    %c0_7 = arith.constant 0 : index
    %6 = vector.load %arg8[%c0_4, %c0_5, %c0_6, %c0_7] : memref<1x2x32x16xf32, #tpu.memory_space<vmem>>, vector<1x1x32x16xf32>
    %7 = vector.shape_cast %6 : vector<1x1x32x16xf32> to vector<32x16xf32>
    %cst_8 = arith.constant dense<0.000000e+00> : vector<8x16xf32>
    %8 = tpu.matmul %3, %7, %cst_8 {dimension_numbers = #tpu.dot_dimension_numbers<[1], [0], [0], [1], [0, 0, 1, 1], [], []>} : vector<8x32xf32>, vector<32x16xf32>, vector<8x16xf32> -> vector<8x16xf32>
    %c0_9 = arith.constant 0 : index
    %c0_10 = arith.constant 0 : index
    %c0_11 = arith.constant 0 : index
    %c0_12 = arith.constant 0 : index
    %9 = vector.load %arg11[%c0_9, %c0_10, %c0_11, %c0_12] : memref<1x2x1x16xf32, #tpu.memory_space<vmem>>, vector<1x1x1x16xf32>
    %10 = vector.shape_cast %9 : vector<1x1x1x16xf32> to vector<1x16xf32>
    %11 = vector.broadcast %10 : vector<1x16xf32> to vector<8x16xf32>
    %12 = arith.addf %8, %11 : vector<8x16xf32>
    %c0_13 = arith.constant 0 : index
    %c0_14 = arith.constant 0 : index
    %c0_15 = arith.constant 0 : index
    %c0_16 = arith.constant 0 : index
    %13 = vector.load %arg9[%c0_13, %c0_14, %c0_15, %c0_16] : memref<1x2x32x16xf32, #tpu.memory_space<vmem>>, vector<1x1x32x16xf32>
    %14 = vector.shape_cast %13 : vector<1x1x32x16xf32> to vector<32x16xf32>
    %cst_17 = arith.constant dense<0.000000e+00> : vector<8x16xf32>
    %15 = tpu.matmul %3, %14, %cst_17 {dimension_numbers = #tpu.dot_dimension_numbers<[1], [0], [0], [1], [0, 0, 1, 1], [], []>} : vector<8x32xf32>, vector<32x16xf32>, vector<8x16xf32> -> vector<8x16xf32>
    %c0_18 = arith.constant 0 : index
    %c0_19 = arith.constant 0 : index
    %c0_20 = arith.constant 0 : index
    %c0_21 = arith.constant 0 : index
    %16 = vector.load %arg12[%c0_18, %c0_19, %c0_20, %c0_21] : memref<1x2x1x16xf32, #tpu.memory_space<vmem>>, vector<1x1x1x16xf32>
    %17 = vector.shape_cast %16 : vector<1x1x1x16xf32> to vector<1x16xf32>
    %18 = vector.broadcast %17 : vector<1x16xf32> to vector<8x16xf32>
    %19 = arith.addf %15, %18 : vector<8x16xf32>
    %c0_22 = arith.constant 0 : index
    %c0_23 = arith.constant 0 : index
    %c0_24 = arith.constant 0 : index
    %c0_25 = arith.constant 0 : index
    %20 = vector.load %arg10[%c0_22, %c0_23, %c0_24, %c0_25] : memref<1x2x32x16xf32, #tpu.memory_space<vmem>>, vector<1x1x32x16xf32>
    %21 = vector.shape_cast %20 : vector<1x1x32x16xf32> to vector<32x16xf32>
    %cst_26 = arith.constant dense<0.000000e+00> : vector<8x16xf32>
    %22 = tpu.matmul %3, %21, %cst_26 {dimension_numbers = #tpu.dot_dimension_numbers<[1], [0], [0], [1], [0, 0, 1, 1], [], []>} : vector<8x32xf32>, vector<32x16xf32>, vector<8x16xf32> -> vector<8x16xf32>
    %c0_27 = arith.constant 0 : index
    %c0_28 = arith.constant 0 : index
    %c0_29 = arith.constant 0 : index
    %c0_30 = arith.constant 0 : index
    %23 = vector.load %arg13[%c0_27, %c0_28, %c0_29, %c0_30] : memref<1x2x1x16xf32, #tpu.memory_space<vmem>>, vector<1x1x1x16xf32>
    %24 = vector.shape_cast %23 : vector<1x1x1x16xf32> to vector<1x16xf32>
    %25 = vector.broadcast %24 : vector<1x16xf32> to vector<8x16xf32>
    %26 = arith.addf %22, %25 : vector<8x16xf32>
    %cst_31 = arith.constant dense<0.000000e+00> : vector<8x8xf32>
    %27 = tpu.matmul %12, %19, %cst_31 {dimension_numbers = #tpu.dot_dimension_numbers<[1], [1], [0], [0], [0, 0, 1, 0], [], []>} : vector<8x16xf32>, vector<8x16xf32>, vector<8x8xf32> -> vector<8x8xf32>
    %cst_32 = arith.constant 2.500000e-01 : f32
    %28 = vector.broadcast %cst_32 : f32 to vector<8x8xf32>
    %29 = arith.mulf %27, %28 : vector<8x8xf32>
    %cst_33 = arith.constant dense<0xFF800000> : vector<8xf32>
    %30 = vector.multi_reduction <maximumf>, %29, %cst_33 [1] : vector<8x8xf32> to vector<8xf32>
    %31 = vector.shape_cast %30 : vector<8xf32> to vector<8x1xf32>
    %32 = vector.broadcast %31 : vector<8x1xf32> to vector<8x8xf32>
    %33 = arith.subf %29, %32 : vector<8x8xf32>
    %34 = math.exp %33 : vector<8x8xf32>
    %cst_34 = arith.constant dense<0.000000e+00> : vector<8xf32>
    %35 = vector.multi_reduction <add>, %34, %cst_34 [1] : vector<8x8xf32> to vector<8xf32>
    %36 = vector.shape_cast %35 : vector<8xf32> to vector<8x1xf32>
    %37 = vector.broadcast %36 : vector<8x1xf32> to vector<8x8xf32>
    %38 = arith.divf %34, %37 : vector<8x8xf32>
    %cst_35 = arith.constant dense<0.000000e+00> : vector<8x16xf32>
    %39 = tpu.matmul %38, %26, %cst_35 {dimension_numbers = #tpu.dot_dimension_numbers<[1], [0], [0], [1], [0, 0, 1, 1], [], []>} : vector<8x8xf32>, vector<8x16xf32>, vector<8x16xf32> -> vector<8x16xf32>
    %c0_36 = arith.constant 0 : index
    %c0_37 = arith.constant 0 : index
    %c0_38 = arith.constant 0 : index
    %c0_39 = arith.constant 0 : index
    %40 = vector.load %arg14[%c0_36, %c0_37, %c0_38, %c0_39] : memref<1x2x16x32xf32, #tpu.memory_space<vmem>>, vector<1x1x16x32xf32>
    %41 = vector.shape_cast %40 : vector<1x1x16x32xf32> to vector<16x32xf32>
    %cst_40 = arith.constant dense<0.000000e+00> : vector<8x32xf32>
    %42 = tpu.matmul %39, %41, %cst_40 {dimension_numbers = #tpu.dot_dimension_numbers<[1], [0], [0], [1], [0, 0, 1, 1], [], []>} : vector<8x16xf32>, vector<16x32xf32>, vector<8x32xf32> -> vector<8x32xf32>
    %43 = arith.addf %5, %42 : vector<8x32xf32>
    %c0_41 = arith.constant 0 : index
    %c1 = arith.constant 1 : index
    %c0_42 = arith.constant 0 : index
    %c0_43 = arith.constant 0 : index
    %44 = vector.load %arg8[%c0_41, %c1, %c0_42, %c0_43] : memref<1x2x32x16xf32, #tpu.memory_space<vmem>>, vector<1x1x32x16xf32>
    %45 = vector.shape_cast %44 : vector<1x1x32x16xf32> to vector<32x16xf32>
    %cst_44 = arith.constant dense<0.000000e+00> : vector<8x16xf32>
    %46 = tpu.matmul %3, %45, %cst_44 {dimension_numbers = #tpu.dot_dimension_numbers<[1], [0], [0], [1], [0, 0, 1, 1], [], []>} : vector<8x32xf32>, vector<32x16xf32>, vector<8x16xf32> -> vector<8x16xf32>
    %c0_45 = arith.constant 0 : index
    %c1_46 = arith.constant 1 : index
    %c0_47 = arith.constant 0 : index
    %c0_48 = arith.constant 0 : index
    %47 = vector.load %arg11[%c0_45, %c1_46, %c0_47, %c0_48] : memref<1x2x1x16xf32, #tpu.memory_space<vmem>>, vector<1x1x1x16xf32>
    %48 = vector.shape_cast %47 : vector<1x1x1x16xf32> to vector<1x16xf32>
    %49 = vector.broadcast %48 : vector<1x16xf32> to vector<8x16xf32>
    %50 = arith.addf %46, %49 : vector<8x16xf32>
    %c0_49 = arith.constant 0 : index
    %c1_50 = arith.constant 1 : index
    %c0_51 = arith.constant 0 : index
    %c0_52 = arith.constant 0 : index
    %51 = vector.load %arg9[%c0_49, %c1_50, %c0_51, %c0_52] : memref<1x2x32x16xf32, #tpu.memory_space<vmem>>, vector<1x1x32x16xf32>
    %52 = vector.shape_cast %51 : vector<1x1x32x16xf32> to vector<32x16xf32>
    %cst_53 = arith.constant dense<0.000000e+00> : vector<8x16xf32>
    %53 = tpu.matmul %3, %52, %cst_53 {dimension_numbers = #tpu.dot_dimension_numbers<[1], [0], [0], [1], [0, 0, 1, 1], [], []>} : vector<8x32xf32>, vector<32x16xf32>, vector<8x16xf32> -> vector<8x16xf32>
    %c0_54 = arith.constant 0 : index
    %c1_55 = arith.constant 1 : index
    %c0_56 = arith.constant 0 : index
    %c0_57 = arith.constant 0 : index
    %54 = vector.load %arg12[%c0_54, %c1_55, %c0_56, %c0_57] : memref<1x2x1x16xf32, #tpu.memory_space<vmem>>, vector<1x1x1x16xf32>
    %55 = vector.shape_cast %54 : vector<1x1x1x16xf32> to vector<1x16xf32>
    %56 = vector.broadcast %55 : vector<1x16xf32> to vector<8x16xf32>
    %57 = arith.addf %53, %56 : vector<8x16xf32>
    %c0_58 = arith.constant 0 : index
    %c1_59 = arith.constant 1 : index
    %c0_60 = arith.constant 0 : index
    %c0_61 = arith.constant 0 : index
    %58 = vector.load %arg10[%c0_58, %c1_59, %c0_60, %c0_61] : memref<1x2x32x16xf32, #tpu.memory_space<vmem>>, vector<1x1x32x16xf32>
    %59 = vector.shape_cast %58 : vector<1x1x32x16xf32> to vector<32x16xf32>
    %cst_62 = arith.constant dense<0.000000e+00> : vector<8x16xf32>
    %60 = tpu.matmul %3, %59, %cst_62 {dimension_numbers = #tpu.dot_dimension_numbers<[1], [0], [0], [1], [0, 0, 1, 1], [], []>} : vector<8x32xf32>, vector<32x16xf32>, vector<8x16xf32> -> vector<8x16xf32>
    %c0_63 = arith.constant 0 : index
    %c1_64 = arith.constant 1 : index
    %c0_65 = arith.constant 0 : index
    %c0_66 = arith.constant 0 : index
    %61 = vector.load %arg13[%c0_63, %c1_64, %c0_65, %c0_66] : memref<1x2x1x16xf32, #tpu.memory_space<vmem>>, vector<1x1x1x16xf32>
    %62 = vector.shape_cast %61 : vector<1x1x1x16xf32> to vector<1x16xf32>
    %63 = vector.broadcast %62 : vector<1x16xf32> to vector<8x16xf32>
    %64 = arith.addf %60, %63 : vector<8x16xf32>
    %cst_67 = arith.constant dense<0.000000e+00> : vector<8x8xf32>
    %65 = tpu.matmul %50, %57, %cst_67 {dimension_numbers = #tpu.dot_dimension_numbers<[1], [1], [0], [0], [0, 0, 1, 0], [], []>} : vector<8x16xf32>, vector<8x16xf32>, vector<8x8xf32> -> vector<8x8xf32>
    %cst_68 = arith.constant 2.500000e-01 : f32
    %66 = vector.broadcast %cst_68 : f32 to vector<8x8xf32>
    %67 = arith.mulf %65, %66 : vector<8x8xf32>
    %cst_69 = arith.constant dense<0xFF800000> : vector<8xf32>
    %68 = vector.multi_reduction <maximumf>, %67, %cst_69 [1] : vector<8x8xf32> to vector<8xf32>
    %69 = vector.shape_cast %68 : vector<8xf32> to vector<8x1xf32>
    %70 = vector.broadcast %69 : vector<8x1xf32> to vector<8x8xf32>
    %71 = arith.subf %67, %70 : vector<8x8xf32>
    %72 = math.exp %71 : vector<8x8xf32>
    %cst_70 = arith.constant dense<0.000000e+00> : vector<8xf32>
    %73 = vector.multi_reduction <add>, %72, %cst_70 [1] : vector<8x8xf32> to vector<8xf32>
    %74 = vector.shape_cast %73 : vector<8xf32> to vector<8x1xf32>
    %75 = vector.broadcast %74 : vector<8x1xf32> to vector<8x8xf32>
    %76 = arith.divf %72, %75 : vector<8x8xf32>
    %cst_71 = arith.constant dense<0.000000e+00> : vector<8x16xf32>
    %77 = tpu.matmul %76, %64, %cst_71 {dimension_numbers = #tpu.dot_dimension_numbers<[1], [0], [0], [1], [0, 0, 1, 1], [], []>} : vector<8x8xf32>, vector<8x16xf32>, vector<8x16xf32> -> vector<8x16xf32>
    %c0_72 = arith.constant 0 : index
    %c1_73 = arith.constant 1 : index
    %c0_74 = arith.constant 0 : index
    %c0_75 = arith.constant 0 : index
    %78 = vector.load %arg14[%c0_72, %c1_73, %c0_74, %c0_75] : memref<1x2x16x32xf32, #tpu.memory_space<vmem>>, vector<1x1x16x32xf32>
    %79 = vector.shape_cast %78 : vector<1x1x16x32xf32> to vector<16x32xf32>
    %cst_76 = arith.constant dense<0.000000e+00> : vector<8x32xf32>
    %80 = tpu.matmul %77, %79, %cst_76 {dimension_numbers = #tpu.dot_dimension_numbers<[1], [0], [0], [1], [0, 0, 1, 1], [], []>} : vector<8x16xf32>, vector<16x32xf32>, vector<8x32xf32> -> vector<8x32xf32>
    %81 = arith.addf %43, %80 : vector<8x32xf32>
    %c0_77 = arith.constant 0 : index
    %c0_78 = arith.constant 0 : index
    %c0_79 = arith.constant 0 : index
    %82 = vector.load %arg15[%c0_77, %c0_78, %c0_79] : memref<1x1x32xf32, #tpu.memory_space<vmem>>, vector<1x1x32xf32>
    %83 = vector.shape_cast %82 : vector<1x1x32xf32> to vector<1x32xf32>
    %84 = vector.broadcast %83 : vector<1x32xf32> to vector<8x32xf32>
    %85 = arith.addf %81, %84 : vector<8x32xf32>
    %86 = arith.addf %3, %85 : vector<8x32xf32>
    %c0_80 = arith.constant 0 : index
    %c0_81 = arith.constant 0 : index
    %c0_82 = arith.constant 0 : index
    %87 = vector.load %arg16[%c0_80, %c0_81, %c0_82] : memref<1x1x32xf32, #tpu.memory_space<vmem>>, vector<1x1x32xf32>
    %88 = vector.shape_cast %87 : vector<1x1x32xf32> to vector<1x32xf32>
    %c0_83 = arith.constant 0 : index
    %c0_84 = arith.constant 0 : index
    %c0_85 = arith.constant 0 : index
    %89 = vector.load %arg17[%c0_83, %c0_84, %c0_85] : memref<1x1x32xf32, #tpu.memory_space<vmem>>, vector<1x1x32xf32>
    %90 = vector.shape_cast %89 : vector<1x1x32xf32> to vector<1x32xf32>
    %cst_86 = arith.constant dense<0.000000e+00> : vector<8xf32>
    %91 = vector.multi_reduction <add>, %86, %cst_86 [1] : vector<8x32xf32> to vector<8xf32>
    %92 = vector.shape_cast %91 : vector<8xf32> to vector<8x1xf32>
    %cst_87 = arith.constant 3.200000e+01 : f32
    %93 = vector.broadcast %cst_87 : f32 to vector<8x1xf32>
    %94 = arith.divf %92, %93 : vector<8x1xf32>
    %95 = vector.broadcast %94 : vector<8x1xf32> to vector<8x32xf32>
    %96 = arith.subf %86, %95 : vector<8x32xf32>
    %97 = arith.mulf %96, %96 : vector<8x32xf32>
    %cst_88 = arith.constant dense<0.000000e+00> : vector<8xf32>
    %98 = vector.multi_reduction <add>, %97, %cst_88 [1] : vector<8x32xf32> to vector<8xf32>
    %99 = vector.shape_cast %98 : vector<8xf32> to vector<8x1xf32>
    %cst_89 = arith.constant 3.200000e+01 : f32
    %100 = vector.broadcast %cst_89 : f32 to vector<8x1xf32>
    %101 = arith.divf %99, %100 : vector<8x1xf32>
    %cst_90 = arith.constant 9.99999974E-6 : f32
    %102 = vector.broadcast %cst_90 : f32 to vector<8x1xf32>
    %103 = arith.addf %101, %102 : vector<8x1xf32>
    %104 = math.rsqrt %103 : vector<8x1xf32>
    %105 = vector.broadcast %104 : vector<8x1xf32> to vector<8x32xf32>
    %106 = arith.mulf %96, %105 : vector<8x32xf32>
    %107 = vector.broadcast %88 : vector<1x32xf32> to vector<8x32xf32>
    %108 = arith.mulf %106, %107 : vector<8x32xf32>
    %109 = vector.broadcast %90 : vector<1x32xf32> to vector<8x32xf32>
    %110 = arith.addf %108, %109 : vector<8x32xf32>
    %cst_91 = arith.constant 0.000000e+00 : f32
    %111 = vector.broadcast %cst_91 : f32 to vector<8x32xf32>
    %c0_92 = arith.constant 0 : index
    %c0_93 = arith.constant 0 : index
    %c0_94 = arith.constant 0 : index
    %c0_95 = arith.constant 0 : index
    %112 = vector.load %arg18[%c0_92, %c0_93, %c0_94, %c0_95] : memref<1x2x32x16xf32, #tpu.memory_space<vmem>>, vector<1x1x32x16xf32>
    %113 = vector.shape_cast %112 : vector<1x1x32x16xf32> to vector<32x16xf32>
    %cst_96 = arith.constant dense<0.000000e+00> : vector<8x16xf32>
    %114 = tpu.matmul %110, %113, %cst_96 {dimension_numbers = #tpu.dot_dimension_numbers<[1], [0], [0], [1], [0, 0, 1, 1], [], []>} : vector<8x32xf32>, vector<32x16xf32>, vector<8x16xf32> -> vector<8x16xf32>
    %c0_97 = arith.constant 0 : index
    %c0_98 = arith.constant 0 : index
    %c0_99 = arith.constant 0 : index
    %c0_100 = arith.constant 0 : index
    %115 = vector.load %arg21[%c0_97, %c0_98, %c0_99, %c0_100] : memref<1x2x1x16xf32, #tpu.memory_space<vmem>>, vector<1x1x1x16xf32>
    %116 = vector.shape_cast %115 : vector<1x1x1x16xf32> to vector<1x16xf32>
    %117 = vector.broadcast %116 : vector<1x16xf32> to vector<8x16xf32>
    %118 = arith.addf %114, %117 : vector<8x16xf32>
    %c0_101 = arith.constant 0 : index
    %c0_102 = arith.constant 0 : index
    %c0_103 = arith.constant 0 : index
    %c0_104 = arith.constant 0 : index
    %119 = vector.load %arg19[%c0_101, %c0_102, %c0_103, %c0_104] : memref<1x2x32x16xf32, #tpu.memory_space<vmem>>, vector<1x1x32x16xf32>
    %120 = vector.shape_cast %119 : vector<1x1x32x16xf32> to vector<32x16xf32>
    %cst_105 = arith.constant dense<0.000000e+00> : vector<16x16xf32>
    %121 = tpu.matmul %4, %120, %cst_105 {dimension_numbers = #tpu.dot_dimension_numbers<[1], [0], [0], [1], [0, 0, 1, 1], [], []>} : vector<16x32xf32>, vector<32x16xf32>, vector<16x16xf32> -> vector<16x16xf32>
    %c0_106 = arith.constant 0 : index
    %c0_107 = arith.constant 0 : index
    %c0_108 = arith.constant 0 : index
    %c0_109 = arith.constant 0 : index
    %122 = vector.load %arg22[%c0_106, %c0_107, %c0_108, %c0_109] : memref<1x2x1x16xf32, #tpu.memory_space<vmem>>, vector<1x1x1x16xf32>
    %123 = vector.shape_cast %122 : vector<1x1x1x16xf32> to vector<1x16xf32>
    %124 = vector.broadcast %123 : vector<1x16xf32> to vector<16x16xf32>
    %125 = arith.addf %121, %124 : vector<16x16xf32>
    %c0_110 = arith.constant 0 : index
    %c0_111 = arith.constant 0 : index
    %c0_112 = arith.constant 0 : index
    %c0_113 = arith.constant 0 : index
    %126 = vector.load %arg20[%c0_110, %c0_111, %c0_112, %c0_113] : memref<1x2x32x16xf32, #tpu.memory_space<vmem>>, vector<1x1x32x16xf32>
    %127 = vector.shape_cast %126 : vector<1x1x32x16xf32> to vector<32x16xf32>
    %cst_114 = arith.constant dense<0.000000e+00> : vector<16x16xf32>
    %128 = tpu.matmul %4, %127, %cst_114 {dimension_numbers = #tpu.dot_dimension_numbers<[1], [0], [0], [1], [0, 0, 1, 1], [], []>} : vector<16x32xf32>, vector<32x16xf32>, vector<16x16xf32> -> vector<16x16xf32>
    %c0_115 = arith.constant 0 : index
    %c0_116 = arith.constant 0 : index
    %c0_117 = arith.constant 0 : index
    %c0_118 = arith.constant 0 : index
    %129 = vector.load %arg23[%c0_115, %c0_116, %c0_117, %c0_118] : memref<1x2x1x16xf32, #tpu.memory_space<vmem>>, vector<1x1x1x16xf32>
    %130 = vector.shape_cast %129 : vector<1x1x1x16xf32> to vector<1x16xf32>
    %131 = vector.broadcast %130 : vector<1x16xf32> to vector<16x16xf32>
    %132 = arith.addf %128, %131 : vector<16x16xf32>
    %cst_119 = arith.constant dense<0.000000e+00> : vector<8x16xf32>
    %133 = tpu.matmul %118, %125, %cst_119 {dimension_numbers = #tpu.dot_dimension_numbers<[1], [1], [0], [0], [0, 0, 1, 0], [], []>} : vector<8x16xf32>, vector<16x16xf32>, vector<8x16xf32> -> vector<8x16xf32>
    %cst_120 = arith.constant 2.500000e-01 : f32
    %134 = vector.broadcast %cst_120 : f32 to vector<8x16xf32>
    %135 = arith.mulf %133, %134 : vector<8x16xf32>
    %cst_121 = arith.constant dense<0xFF800000> : vector<8xf32>
    %136 = vector.multi_reduction <maximumf>, %135, %cst_121 [1] : vector<8x16xf32> to vector<8xf32>
    %137 = vector.shape_cast %136 : vector<8xf32> to vector<8x1xf32>
    %138 = vector.broadcast %137 : vector<8x1xf32> to vector<8x16xf32>
    %139 = arith.subf %135, %138 : vector<8x16xf32>
    %140 = math.exp %139 : vector<8x16xf32>
    %cst_122 = arith.constant dense<0.000000e+00> : vector<8xf32>
    %141 = vector.multi_reduction <add>, %140, %cst_122 [1] : vector<8x16xf32> to vector<8xf32>
    %142 = vector.shape_cast %141 : vector<8xf32> to vector<8x1xf32>
    %143 = vector.broadcast %142 : vector<8x1xf32> to vector<8x16xf32>
    %144 = arith.divf %140, %143 : vector<8x16xf32>
    %cst_123 = arith.constant dense<0.000000e+00> : vector<8x16xf32>
    %145 = tpu.matmul %144, %132, %cst_123 {dimension_numbers = #tpu.dot_dimension_numbers<[1], [0], [0], [1], [0, 0, 1, 1], [], []>} : vector<8x16xf32>, vector<16x16xf32>, vector<8x16xf32> -> vector<8x16xf32>
    %c0_124 = arith.constant 0 : index
    %c0_125 = arith.constant 0 : index
    %c0_126 = arith.constant 0 : index
    %c0_127 = arith.constant 0 : index
    %146 = vector.load %arg24[%c0_124, %c0_125, %c0_126, %c0_127] : memref<1x2x16x32xf32, #tpu.memory_space<vmem>>, vector<1x1x16x32xf32>
    %147 = vector.shape_cast %146 : vector<1x1x16x32xf32> to vector<16x32xf32>
    %cst_128 = arith.constant dense<0.000000e+00> : vector<8x32xf32>
    %148 = tpu.matmul %145, %147, %cst_128 {dimension_numbers = #tpu.dot_dimension_numbers<[1], [0], [0], [1], [0, 0, 1, 1], [], []>} : vector<8x16xf32>, vector<16x32xf32>, vector<8x32xf32> -> vector<8x32xf32>
    %149 = arith.addf %111, %148 : vector<8x32xf32>
    %c0_129 = arith.constant 0 : index
    %c1_130 = arith.constant 1 : index
    %c0_131 = arith.constant 0 : index
    %c0_132 = arith.constant 0 : index
    %150 = vector.load %arg18[%c0_129, %c1_130, %c0_131, %c0_132] : memref<1x2x32x16xf32, #tpu.memory_space<vmem>>, vector<1x1x32x16xf32>
    %151 = vector.shape_cast %150 : vector<1x1x32x16xf32> to vector<32x16xf32>
    %cst_133 = arith.constant dense<0.000000e+00> : vector<8x16xf32>
    %152 = tpu.matmul %110, %151, %cst_133 {dimension_numbers = #tpu.dot_dimension_numbers<[1], [0], [0], [1], [0, 0, 1, 1], [], []>} : vector<8x32xf32>, vector<32x16xf32>, vector<8x16xf32> -> vector<8x16xf32>
    %c0_134 = arith.constant 0 : index
    %c1_135 = arith.constant 1 : index
    %c0_136 = arith.constant 0 : index
    %c0_137 = arith.constant 0 : index
    %153 = vector.load %arg21[%c0_134, %c1_135, %c0_136, %c0_137] : memref<1x2x1x16xf32, #tpu.memory_space<vmem>>, vector<1x1x1x16xf32>
    %154 = vector.shape_cast %153 : vector<1x1x1x16xf32> to vector<1x16xf32>
    %155 = vector.broadcast %154 : vector<1x16xf32> to vector<8x16xf32>
    %156 = arith.addf %152, %155 : vector<8x16xf32>
    %c0_138 = arith.constant 0 : index
    %c1_139 = arith.constant 1 : index
    %c0_140 = arith.constant 0 : index
    %c0_141 = arith.constant 0 : index
    %157 = vector.load %arg19[%c0_138, %c1_139, %c0_140, %c0_141] : memref<1x2x32x16xf32, #tpu.memory_space<vmem>>, vector<1x1x32x16xf32>
    %158 = vector.shape_cast %157 : vector<1x1x32x16xf32> to vector<32x16xf32>
    %cst_142 = arith.constant dense<0.000000e+00> : vector<16x16xf32>
    %159 = tpu.matmul %4, %158, %cst_142 {dimension_numbers = #tpu.dot_dimension_numbers<[1], [0], [0], [1], [0, 0, 1, 1], [], []>} : vector<16x32xf32>, vector<32x16xf32>, vector<16x16xf32> -> vector<16x16xf32>
    %c0_143 = arith.constant 0 : index
    %c1_144 = arith.constant 1 : index
    %c0_145 = arith.constant 0 : index
    %c0_146 = arith.constant 0 : index
    %160 = vector.load %arg22[%c0_143, %c1_144, %c0_145, %c0_146] : memref<1x2x1x16xf32, #tpu.memory_space<vmem>>, vector<1x1x1x16xf32>
    %161 = vector.shape_cast %160 : vector<1x1x1x16xf32> to vector<1x16xf32>
    %162 = vector.broadcast %161 : vector<1x16xf32> to vector<16x16xf32>
    %163 = arith.addf %159, %162 : vector<16x16xf32>
    %c0_147 = arith.constant 0 : index
    %c1_148 = arith.constant 1 : index
    %c0_149 = arith.constant 0 : index
    %c0_150 = arith.constant 0 : index
    %164 = vector.load %arg20[%c0_147, %c1_148, %c0_149, %c0_150] : memref<1x2x32x16xf32, #tpu.memory_space<vmem>>, vector<1x1x32x16xf32>
    %165 = vector.shape_cast %164 : vector<1x1x32x16xf32> to vector<32x16xf32>
    %cst_151 = arith.constant dense<0.000000e+00> : vector<16x16xf32>
    %166 = tpu.matmul %4, %165, %cst_151 {dimension_numbers = #tpu.dot_dimension_numbers<[1], [0], [0], [1], [0, 0, 1, 1], [], []>} : vector<16x32xf32>, vector<32x16xf32>, vector<16x16xf32> -> vector<16x16xf32>
    %c0_152 = arith.constant 0 : index
    %c1_153 = arith.constant 1 : index
    %c0_154 = arith.constant 0 : index
    %c0_155 = arith.constant 0 : index
    %167 = vector.load %arg23[%c0_152, %c1_153, %c0_154, %c0_155] : memref<1x2x1x16xf32, #tpu.memory_space<vmem>>, vector<1x1x1x16xf32>
    %168 = vector.shape_cast %167 : vector<1x1x1x16xf32> to vector<1x16xf32>
    %169 = vector.broadcast %168 : vector<1x16xf32> to vector<16x16xf32>
    %170 = arith.addf %166, %169 : vector<16x16xf32>
    %cst_156 = arith.constant dense<0.000000e+00> : vector<8x16xf32>
    %171 = tpu.matmul %156, %163, %cst_156 {dimension_numbers = #tpu.dot_dimension_numbers<[1], [1], [0], [0], [0, 0, 1, 0], [], []>} : vector<8x16xf32>, vector<16x16xf32>, vector<8x16xf32> -> vector<8x16xf32>
    %cst_157 = arith.constant 2.500000e-01 : f32
    %172 = vector.broadcast %cst_157 : f32 to vector<8x16xf32>
    %173 = arith.mulf %171, %172 : vector<8x16xf32>
    %cst_158 = arith.constant dense<0xFF800000> : vector<8xf32>
    %174 = vector.multi_reduction <maximumf>, %173, %cst_158 [1] : vector<8x16xf32> to vector<8xf32>
    %175 = vector.shape_cast %174 : vector<8xf32> to vector<8x1xf32>
    %176 = vector.broadcast %175 : vector<8x1xf32> to vector<8x16xf32>
    %177 = arith.subf %173, %176 : vector<8x16xf32>
    %178 = math.exp %177 : vector<8x16xf32>
    %cst_159 = arith.constant dense<0.000000e+00> : vector<8xf32>
    %179 = vector.multi_reduction <add>, %178, %cst_159 [1] : vector<8x16xf32> to vector<8xf32>
    %180 = vector.shape_cast %179 : vector<8xf32> to vector<8x1xf32>
    %181 = vector.broadcast %180 : vector<8x1xf32> to vector<8x16xf32>
    %182 = arith.divf %178, %181 : vector<8x16xf32>
    %cst_160 = arith.constant dense<0.000000e+00> : vector<8x16xf32>
    %183 = tpu.matmul %182, %170, %cst_160 {dimension_numbers = #tpu.dot_dimension_numbers<[1], [0], [0], [1], [0, 0, 1, 1], [], []>} : vector<8x16xf32>, vector<16x16xf32>, vector<8x16xf32> -> vector<8x16xf32>
    %c0_161 = arith.constant 0 : index
    %c1_162 = arith.constant 1 : index
    %c0_163 = arith.constant 0 : index
    %c0_164 = arith.constant 0 : index
    %184 = vector.load %arg24[%c0_161, %c1_162, %c0_163, %c0_164] : memref<1x2x16x32xf32, #tpu.memory_space<vmem>>, vector<1x1x16x32xf32>
    %185 = vector.shape_cast %184 : vector<1x1x16x32xf32> to vector<16x32xf32>
    %cst_165 = arith.constant dense<0.000000e+00> : vector<8x32xf32>
    %186 = tpu.matmul %183, %185, %cst_165 {dimension_numbers = #tpu.dot_dimension_numbers<[1], [0], [0], [1], [0, 0, 1, 1], [], []>} : vector<8x16xf32>, vector<16x32xf32>, vector<8x32xf32> -> vector<8x32xf32>
    %187 = arith.addf %149, %186 : vector<8x32xf32>
    %c0_166 = arith.constant 0 : index
    %c0_167 = arith.constant 0 : index
    %c0_168 = arith.constant 0 : index
    %188 = vector.load %arg25[%c0_166, %c0_167, %c0_168] : memref<1x1x32xf32, #tpu.memory_space<vmem>>, vector<1x1x32xf32>
    %189 = vector.shape_cast %188 : vector<1x1x32xf32> to vector<1x32xf32>
    %190 = vector.broadcast %189 : vector<1x32xf32> to vector<8x32xf32>
    %191 = arith.addf %187, %190 : vector<8x32xf32>
    %192 = arith.addf %110, %191 : vector<8x32xf32>
    %c0_169 = arith.constant 0 : index
    %c0_170 = arith.constant 0 : index
    %c0_171 = arith.constant 0 : index
    %193 = vector.load %arg26[%c0_169, %c0_170, %c0_171] : memref<1x1x32xf32, #tpu.memory_space<vmem>>, vector<1x1x32xf32>
    %194 = vector.shape_cast %193 : vector<1x1x32xf32> to vector<1x32xf32>
    %c0_172 = arith.constant 0 : index
    %c0_173 = arith.constant 0 : index
    %c0_174 = arith.constant 0 : index
    %195 = vector.load %arg27[%c0_172, %c0_173, %c0_174] : memref<1x1x32xf32, #tpu.memory_space<vmem>>, vector<1x1x32xf32>
    %196 = vector.shape_cast %195 : vector<1x1x32xf32> to vector<1x32xf32>
    %cst_175 = arith.constant dense<0.000000e+00> : vector<8xf32>
    %197 = vector.multi_reduction <add>, %192, %cst_175 [1] : vector<8x32xf32> to vector<8xf32>
    %198 = vector.shape_cast %197 : vector<8xf32> to vector<8x1xf32>
    %cst_176 = arith.constant 3.200000e+01 : f32
    %199 = vector.broadcast %cst_176 : f32 to vector<8x1xf32>
    %200 = arith.divf %198, %199 : vector<8x1xf32>
    %201 = vector.broadcast %200 : vector<8x1xf32> to vector<8x32xf32>
    %202 = arith.subf %192, %201 : vector<8x32xf32>
    %203 = arith.mulf %202, %202 : vector<8x32xf32>
    %cst_177 = arith.constant dense<0.000000e+00> : vector<8xf32>
    %204 = vector.multi_reduction <add>, %203, %cst_177 [1] : vector<8x32xf32> to vector<8xf32>
    %205 = vector.shape_cast %204 : vector<8xf32> to vector<8x1xf32>
    %cst_178 = arith.constant 3.200000e+01 : f32
    %206 = vector.broadcast %cst_178 : f32 to vector<8x1xf32>
    %207 = arith.divf %205, %206 : vector<8x1xf32>
    %cst_179 = arith.constant 9.99999974E-6 : f32
    %208 = vector.broadcast %cst_179 : f32 to vector<8x1xf32>
    %209 = arith.addf %207, %208 : vector<8x1xf32>
    %210 = math.rsqrt %209 : vector<8x1xf32>
    %211 = vector.broadcast %210 : vector<8x1xf32> to vector<8x32xf32>
    %212 = arith.mulf %202, %211 : vector<8x32xf32>
    %213 = vector.broadcast %194 : vector<1x32xf32> to vector<8x32xf32>
    %214 = arith.mulf %212, %213 : vector<8x32xf32>
    %215 = vector.broadcast %196 : vector<1x32xf32> to vector<8x32xf32>
    %216 = arith.addf %214, %215 : vector<8x32xf32>
    %c0_180 = arith.constant 0 : index
    %c0_181 = arith.constant 0 : index
    %c0_182 = arith.constant 0 : index
    %217 = vector.load %arg28[%c0_180, %c0_181, %c0_182] : memref<1x32x64xf32, #tpu.memory_space<vmem>>, vector<1x32x64xf32>
    %218 = vector.shape_cast %217 : vector<1x32x64xf32> to vector<32x64xf32>
    %cst_183 = arith.constant dense<0.000000e+00> : vector<8x64xf32>
    %219 = tpu.matmul %216, %218, %cst_183 {dimension_numbers = #tpu.dot_dimension_numbers<[1], [0], [0], [1], [0, 0, 1, 1], [], []>} : vector<8x32xf32>, vector<32x64xf32>, vector<8x64xf32> -> vector<8x64xf32>
    %c0_184 = arith.constant 0 : index
    %c0_185 = arith.constant 0 : index
    %c0_186 = arith.constant 0 : index
    %220 = vector.load %arg29[%c0_184, %c0_185, %c0_186] : memref<1x1x64xf32, #tpu.memory_space<vmem>>, vector<1x1x64xf32>
    %221 = vector.shape_cast %220 : vector<1x1x64xf32> to vector<1x64xf32>
    %222 = vector.broadcast %221 : vector<1x64xf32> to vector<8x64xf32>
    %223 = arith.addf %219, %222 : vector<8x64xf32>
    %cst_187 = arith.constant 0.000000e+00 : f32
    %224 = vector.broadcast %cst_187 : f32 to vector<8x64xf32>
    %225 = arith.maximumf %223, %224 : vector<8x64xf32>
    %c0_188 = arith.constant 0 : index
    %c0_189 = arith.constant 0 : index
    %c0_190 = arith.constant 0 : index
    %226 = vector.load %arg30[%c0_188, %c0_189, %c0_190] : memref<1x64x32xf32, #tpu.memory_space<vmem>>, vector<1x64x32xf32>
    %227 = vector.shape_cast %226 : vector<1x64x32xf32> to vector<64x32xf32>
    %cst_191 = arith.constant dense<0.000000e+00> : vector<8x32xf32>
    %228 = tpu.matmul %225, %227, %cst_191 {dimension_numbers = #tpu.dot_dimension_numbers<[1], [0], [0], [1], [0, 0, 1, 1], [], []>} : vector<8x64xf32>, vector<64x32xf32>, vector<8x32xf32> -> vector<8x32xf32>
    %c0_192 = arith.constant 0 : index
    %c0_193 = arith.constant 0 : index
    %c0_194 = arith.constant 0 : index
    %229 = vector.load %arg31[%c0_192, %c0_193, %c0_194] : memref<1x1x32xf32, #tpu.memory_space<vmem>>, vector<1x1x32xf32>
    %230 = vector.shape_cast %229 : vector<1x1x32xf32> to vector<1x32xf32>
    %231 = vector.broadcast %230 : vector<1x32xf32> to vector<8x32xf32>
    %232 = arith.addf %228, %231 : vector<8x32xf32>
    %233 = arith.addf %216, %232 : vector<8x32xf32>
    %c0_195 = arith.constant 0 : index
    %c0_196 = arith.constant 0 : index
    %c0_197 = arith.constant 0 : index
    %234 = vector.load %arg32[%c0_195, %c0_196, %c0_197] : memref<1x1x32xf32, #tpu.memory_space<vmem>>, vector<1x1x32xf32>
    %235 = vector.shape_cast %234 : vector<1x1x32xf32> to vector<1x32xf32>
    %c0_198 = arith.constant 0 : index
    %c0_199 = arith.constant 0 : index
    %c0_200 = arith.constant 0 : index
    %236 = vector.load %arg33[%c0_198, %c0_199, %c0_200] : memref<1x1x32xf32, #tpu.memory_space<vmem>>, vector<1x1x32xf32>
    %237 = vector.shape_cast %236 : vector<1x1x32xf32> to vector<1x32xf32>
    %cst_201 = arith.constant dense<0.000000e+00> : vector<8xf32>
    %238 = vector.multi_reduction <add>, %233, %cst_201 [1] : vector<8x32xf32> to vector<8xf32>
    %239 = vector.shape_cast %238 : vector<8xf32> to vector<8x1xf32>
    %cst_202 = arith.constant 3.200000e+01 : f32
    %240 = vector.broadcast %cst_202 : f32 to vector<8x1xf32>
    %241 = arith.divf %239, %240 : vector<8x1xf32>
    %242 = vector.broadcast %241 : vector<8x1xf32> to vector<8x32xf32>
    %243 = arith.subf %233, %242 : vector<8x32xf32>
    %244 = arith.mulf %243, %243 : vector<8x32xf32>
    %cst_203 = arith.constant dense<0.000000e+00> : vector<8xf32>
    %245 = vector.multi_reduction <add>, %244, %cst_203 [1] : vector<8x32xf32> to vector<8xf32>
    %246 = vector.shape_cast %245 : vector<8xf32> to vector<8x1xf32>
    %cst_204 = arith.constant 3.200000e+01 : f32
    %247 = vector.broadcast %cst_204 : f32 to vector<8x1xf32>
    %248 = arith.divf %246, %247 : vector<8x1xf32>
    %cst_205 = arith.constant 9.99999974E-6 : f32
    %249 = vector.broadcast %cst_205 : f32 to vector<8x1xf32>
    %250 = arith.addf %248, %249 : vector<8x1xf32>
    %251 = math.rsqrt %250 : vector<8x1xf32>
    %252 = vector.broadcast %251 : vector<8x1xf32> to vector<8x32xf32>
    %253 = arith.mulf %243, %252 : vector<8x32xf32>
    %254 = vector.broadcast %235 : vector<1x32xf32> to vector<8x32xf32>
    %255 = arith.mulf %253, %254 : vector<8x32xf32>
    %256 = vector.broadcast %237 : vector<1x32xf32> to vector<8x32xf32>
    %257 = arith.addf %255, %256 : vector<8x32xf32>
    %c0_206 = arith.constant 0 : index
    %c0_207 = arith.constant 0 : index
    %258 = vector.load %arg37[%c0_206, %c0_207] : memref<8x32xf32, #tpu.memory_space<vmem>>, vector<8x32xf32>
    tpu.vector_store %arg37[%c0_206, %c0_207], %257 {strides = array<i32>} : memref<8x32xf32, #tpu.memory_space<vmem>>, vector<8x32xf32>,
    %c1_i32 = arith.constant 1 : i32
    %259 = arith.cmpi eq, %arg1, %c1_i32 : i32
    %260 = arith.extui %259 : i1 to i32
    %c0_i32_208 = arith.constant 0 : i32
    %261 = arith.cmpi ne, %260, %c0_i32_208 : i32
    scf.if %261 {
      %c0_209 = arith.constant 0 : index
      %c0_210 = arith.constant 0 : index
      %262 = vector.load %arg34[%c0_209, %c0_210] : memref<32x8xf32, #tpu.memory_space<vmem>>, vector<32x8xf32>
      %cst_211 = arith.constant dense<0.000000e+00> : vector<8x8xf32>
      %263 = tpu.matmul %257, %262, %cst_211 {dimension_numbers = #tpu.dot_dimension_numbers<[1], [0], [0], [1], [0, 0, 1, 1], [], []>} : vector<8x32xf32>, vector<32x8xf32>, vector<8x8xf32> -> vector<8x8xf32>
      %c0_212 = arith.constant 0 : index
      %c0_213 = arith.constant 0 : index
      %264 = vector.load %arg35[%c0_212, %c0_213] : memref<1x8xf32, #tpu.memory_space<vmem>>, vector<1x8xf32>
      %265 = vector.broadcast %264 : vector<1x8xf32> to vector<8x8xf32>
      %266 = arith.addf %263, %265 : vector<8x8xf32>
      %c0_214 = arith.constant 0 : index
      %c0_215 = arith.constant 0 : index
      %c0_216 = arith.constant 0 : index
      %267 = vector.load %arg36[%c0_214, %c0_215, %c0_216] : memref<1x8x8xf32, #tpu.memory_space<vmem>>, vector<1x8x8xf32>
      %268 = vector.shape_cast %267 : vector<1x8x8xf32> to vector<8x8xf32>
      %269 = vector.shape_cast %266 : vector<8x8xf32> to vector<1x8x8xf32>
      tpu.vector_store %arg36[%c0_214, %c0_215, %c0_216], %269 {strides = array<i32>} : memref<1x8x8xf32, #tpu.memory_space<vmem>>, vector<1x8x8xf32>,
    } else {
    }
    return
  }
  func.func @transform_0(%arg0: i32, %arg1: i32) -> (i32, i32, i32) {
    %c0_i32 = arith.constant 0 : i32
    %c0_i32_0 = arith.constant 0 : i32
    %c0_i32_1 = arith.constant 0 : i32
    return %arg0, %c0_i32, %c0_i32_0 : i32, i32, i32
  }
  func.func @transform_1(%arg0: i32, %arg1: i32) -> (i32, i32, i32) {
    %c0_i32 = arith.constant 0 : i32
    %c0_i32_0 = arith.constant 0 : i32
    %c0_i32_1 = arith.constant 0 : i32
    %c0_i32_2 = arith.constant 0 : i32
    return %c0_i32, %c0_i32_0, %c0_i32_1 : i32, i32, i32
  }
  func.func @transform_2(%arg0: i32, %arg1: i32) -> (i32, i32, i32) {
    %c0_i32 = arith.constant 0 : i32
    %c0_i32_0 = arith.constant 0 : i32
    %c0_i32_1 = arith.constant 0 : i32
    return %arg0, %c0_i32, %c0_i32_0 : i32, i32, i32
  }
  func.func @transform_3(%arg0: i32, %arg1: i32) -> (i32, i32) {
    %c0_i32 = arith.constant 0 : i32
    %c0_i32_0 = arith.constant 0 : i32
    %c0_i32_1 = arith.constant 0 : i32
    return %c0_i32, %c0_i32_0 : i32, i32
  }
  func.func @transform_4(%arg0: i32, %arg1: i32) -> (i32, i32) {
    %c0_i32 = arith.constant 0 : i32
    %c0_i32_0 = arith.constant 0 : i32
    %c0_i32_1 = arith.constant 0 : i32
    return %c0_i32, %c0_i32_0 : i32, i32
  }
  func.func @transform_5(%arg0: i32, %arg1: i32) -> (i32, i32, i32) {
    %c0_i32 = arith.constant 0 : i32
    %c0_i32_0 = arith.constant 0 : i32
    %c0_i32_1 = arith.constant 0 : i32
    %c0_i32_2 = arith.constant 0 : i32
    return %c0_i32, %c0_i32_0, %c0_i32_1 : i32, i32, i32
  }
  func.func @transform_6(%arg0: i32, %arg1: i32) -> (i32, i32, i32, i32) {
    %c0_i32 = arith.constant 0 : i32
    %c0_i32_0 = arith.constant 0 : i32
    %c0_i32_1 = arith.constant 0 : i32
    %c0_i32_2 = arith.constant 0 : i32
    return %arg1, %c0_i32, %c0_i32_0, %c0_i32_1 : i32, i32, i32, i32
  }
  func.func @transform_7(%arg0: i32, %arg1: i32) -> (i32, i32, i32, i32) {
    %c0_i32 = arith.constant 0 : i32
    %c0_i32_0 = arith.constant 0 : i32
    %c0_i32_1 = arith.constant 0 : i32
    %c0_i32_2 = arith.constant 0 : i32
    return %arg1, %c0_i32, %c0_i32_0, %c0_i32_1 : i32, i32, i32, i32
  }
  func.func @transform_8(%arg0: i32, %arg1: i32) -> (i32, i32, i32, i32) {
    %c0_i32 = arith.constant 0 : i32
    %c0_i32_0 = arith.constant 0 : i32
    %c0_i32_1 = arith.constant 0 : i32
    %c0_i32_2 = arith.constant 0 : i32
    return %arg1, %c0_i32, %c0_i32_0, %c0_i32_1 : i32, i32, i32, i32
  }
  func.func @transform_9(%arg0: i32, %arg1: i32) -> (i32, i32, i32, i32) {
    %c0_i32 = arith.constant 0 : i32
    %c0_i32_0 = arith.constant 0 : i32
    %c0_i32_1 = arith.constant 0 : i32
    %c0_i32_2 = arith.constant 0 : i32
    return %arg1, %c0_i32, %c0_i32_0, %c0_i32_1 : i32, i32, i32, i32
  }
  func.func @transform_10(%arg0: i32, %arg1: i32) -> (i32, i32, i32, i32) {
    %c0_i32 = arith.constant 0 : i32
    %c0_i32_0 = arith.constant 0 : i32
    %c0_i32_1 = arith.constant 0 : i32
    %c0_i32_2 = arith.constant 0 : i32
    return %arg1, %c0_i32, %c0_i32_0, %c0_i32_1 : i32, i32, i32, i32
  }
  func.func @transform_11(%arg0: i32, %arg1: i32) -> (i32, i32, i32, i32) {
    %c0_i32 = arith.constant 0 : i32
    %c0_i32_0 = arith.constant 0 : i32
    %c0_i32_1 = arith.constant 0 : i32
    %c0_i32_2 = arith.constant 0 : i32
    return %arg1, %c0_i32, %c0_i32_0, %c0_i32_1 : i32, i32, i32, i32
  }
  func.func @transform_12(%arg0: i32, %arg1: i32) -> (i32, i32, i32, i32) {
    %c0_i32 = arith.constant 0 : i32
    %c0_i32_0 = arith.constant 0 : i32
    %c0_i32_1 = arith.constant 0 : i32
    %c0_i32_2 = arith.constant 0 : i32
    return %arg1, %c0_i32, %c0_i32_0, %c0_i32_1 : i32, i32, i32, i32
  }
  func.func @transform_13(%arg0: i32, %arg1: i32) -> (i32, i32, i32) {
    %c0_i32 = arith.constant 0 : i32
    %c0_i32_0 = arith.constant 0 : i32
    %c0_i32_1 = arith.constant 0 : i32
    return %arg1, %c0_i32, %c0_i32_0 : i32, i32, i32
  }
  func.func @transform_14(%arg0: i32, %arg1: i32) -> (i32, i32, i32) {
    %c0_i32 = arith.constant 0 : i32
    %c0_i32_0 = arith.constant 0 : i32
    %c0_i32_1 = arith.constant 0 : i32
    return %arg1, %c0_i32, %c0_i32_0 : i32, i32, i32
  }
  func.func @transform_15(%arg0: i32, %arg1: i32) -> (i32, i32, i32) {
    %c0_i32 = arith.constant 0 : i32
    %c0_i32_0 = arith.constant 0 : i32
    %c0_i32_1 = arith.constant 0 : i32
    return %arg1, %c0_i32, %c0_i32_0 : i32, i32, i32
  }
  func.func @transform_16(%arg0: i32, %arg1: i32) -> (i32, i32, i32, i32) {
    %c0_i32 = arith.constant 0 : i32
    %c0_i32_0 = arith.constant 0 : i32
    %c0_i32_1 = arith.constant 0 : i32
    %c0_i32_2 = arith.constant 0 : i32
    return %arg1, %c0_i32, %c0_i32_0, %c0_i32_1 : i32, i32, i32, i32
  }
  func.func @transform_17(%arg0: i32, %arg1: i32) -> (i32, i32, i32, i32) {
    %c0_i32 = arith.constant 0 : i32
    %c0_i32_0 = arith.constant 0 : i32
    %c0_i32_1 = arith.constant 0 : i32
    %c0_i32_2 = arith.constant 0 : i32
    return %arg1, %c0_i32, %c0_i32_0, %c0_i32_1 : i32, i32, i32, i32
  }
  func.func @transform_18(%arg0: i32, %arg1: i32) -> (i32, i32, i32, i32) {
    %c0_i32 = arith.constant 0 : i32
    %c0_i32_0 = arith.constant 0 : i32
    %c0_i32_1 = arith.constant 0 : i32
    %c0_i32_2 = arith.constant 0 : i32
    return %arg1, %c0_i32, %c0_i32_0, %c0_i32_1 : i32, i32, i32, i32
  }
  func.func @transform_19(%arg0: i32, %arg1: i32) -> (i32, i32, i32, i32) {
    %c0_i32 = arith.constant 0 : i32
    %c0_i32_0 = arith.constant 0 : i32
    %c0_i32_1 = arith.constant 0 : i32
    %c0_i32_2 = arith.constant 0 : i32
    return %arg1, %c0_i32, %c0_i32_0, %c0_i32_1 : i32, i32, i32, i32
  }
  func.func @transform_20(%arg0: i32, %arg1: i32) -> (i32, i32, i32, i32) {
    %c0_i32 = arith.constant 0 : i32
    %c0_i32_0 = arith.constant 0 : i32
    %c0_i32_1 = arith.constant 0 : i32
    %c0_i32_2 = arith.constant 0 : i32
    return %arg1, %c0_i32, %c0_i32_0, %c0_i32_1 : i32, i32, i32, i32
  }
  func.func @transform_21(%arg0: i32, %arg1: i32) -> (i32, i32, i32, i32) {
    %c0_i32 = arith.constant 0 : i32
    %c0_i32_0 = arith.constant 0 : i32
    %c0_i32_1 = arith.constant 0 : i32
    %c0_i32_2 = arith.constant 0 : i32
    return %arg1, %c0_i32, %c0_i32_0, %c0_i32_1 : i32, i32, i32, i32
  }
  func.func @transform_22(%arg0: i32, %arg1: i32) -> (i32, i32, i32, i32) {
    %c0_i32 = arith.constant 0 : i32
    %c0_i32_0 = arith.constant 0 : i32
    %c0_i32_1 = arith.constant 0 : i32
    %c0_i32_2 = arith.constant 0 : i32
    return %arg1, %c0_i32, %c0_i32_0, %c0_i32_1 : i32, i32, i32, i32
  }
  func.func @transform_23(%arg0: i32, %arg1: i32) -> (i32, i32, i32) {
    %c0_i32 = arith.constant 0 : i32
    %c0_i32_0 = arith.constant 0 : i32
    %c0_i32_1 = arith.constant 0 : i32
    return %arg1, %c0_i32, %c0_i32_0 : i32, i32, i32
  }
  func.func @transform_24(%arg0: i32, %arg1: i32) -> (i32, i32, i32) {
    %c0_i32 = arith.constant 0 : i32
    %c0_i32_0 = arith.constant 0 : i32
    %c0_i32_1 = arith.constant 0 : i32
    return %arg1, %c0_i32, %c0_i32_0 : i32, i32, i32
  }
  func.func @transform_25(%arg0: i32, %arg1: i32) -> (i32, i32, i32) {
    %c0_i32 = arith.constant 0 : i32
    %c0_i32_0 = arith.constant 0 : i32
    %c0_i32_1 = arith.constant 0 : i32
    return %arg1, %c0_i32, %c0_i32_0 : i32, i32, i32
  }
  func.func @transform_26(%arg0: i32, %arg1: i32) -> (i32, i32, i32) {
    %c0_i32 = arith.constant 0 : i32
    %c0_i32_0 = arith.constant 0 : i32
    %c0_i32_1 = arith.constant 0 : i32
    return %arg1, %c0_i32, %c0_i32_0 : i32, i32, i32
  }
  func.func @transform_27(%arg0: i32, %arg1: i32) -> (i32, i32, i32) {
    %c0_i32 = arith.constant 0 : i32
    %c0_i32_0 = arith.constant 0 : i32
    %c0_i32_1 = arith.constant 0 : i32
    return %arg1, %c0_i32, %c0_i32_0 : i32, i32, i32
  }
  func.func @transform_28(%arg0: i32, %arg1: i32) -> (i32, i32, i32) {
    %c0_i32 = arith.constant 0 : i32
    %c0_i32_0 = arith.constant 0 : i32
    %c0_i32_1 = arith.constant 0 : i32
    return %arg1, %c0_i32, %c0_i32_0 : i32, i32, i32
  }
  func.func @transform_29(%arg0: i32, %arg1: i32) -> (i32, i32, i32) {
    %c0_i32 = arith.constant 0 : i32
    %c0_i32_0 = arith.constant 0 : i32
    %c0_i32_1 = arith.constant 0 : i32
    return %arg1, %c0_i32, %c0_i32_0 : i32, i32, i32
  }
  func.func @transform_30(%arg0: i32, %arg1: i32) -> (i32, i32, i32) {
    %c0_i32 = arith.constant 0 : i32
    %c0_i32_0 = arith.constant 0 : i32
    %c0_i32_1 = arith.constant 0 : i32
    return %arg1, %c0_i32, %c0_i32_0 : i32, i32, i32
  }
  func.func @transform_31(%arg0: i32, %arg1: i32) -> (i32, i32, i32) {
    %c0_i32 = arith.constant 0 : i32
    %c0_i32_0 = arith.constant 0 : i32
    %c0_i32_1 = arith.constant 0 : i32
    return %arg1, %c0_i32, %c0_i32_0 : i32, i32, i32
  }
  func.func @transform_32(%arg0: i32, %arg1: i32) -> (i32, i32) {
    %c0_i32 = arith.constant 0 : i32
    %c0_i32_0 = arith.constant 0 : i32
    %c0_i32_1 = arith.constant 0 : i32
    return %c0_i32, %c0_i32_0 : i32, i32
  }
  func.func @transform_33(%arg0: i32, %arg1: i32) -> (i32, i32) {
    %c0_i32 = arith.constant 0 : i32
    %c0_i32_0 = arith.constant 0 : i32
    %c0_i32_1 = arith.constant 0 : i32
    return %c0_i32, %c0_i32_0 : i32, i32
  }
  func.func @transform_34(%arg0: i32, %arg1: i32) -> (i32, i32, i32) {
    %c0_i32 = arith.constant 0 : i32
    %c0_i32_0 = arith.constant 0 : i32
    %c0_i32_1 = arith.constant 0 : i32
    return %arg0, %c0_i32, %c0_i32_0 : i32, i32, i32
  }
}

</mosaic_0001>

<llo_original>
// kernel: csiformer_student_forward.2
$region0: #{csiformer_student_forward.2}
  #allocation0 [shape = 'u32[]', space=smem, size = 0x4, offset = 0x4, fixed_abs, tag = 'smem constant byte address 0x4 - core index']
  #allocation1 [shape = 'u32[72,128]{1,0:T(1,128)}', space=vmem, size = 0x9000, scoped, tag = 'internal scratch']
  #allocation2 [shape = 'f32[8,32]{1,0:T(8,128)}', space=vmem, size = 0x1000, scoped, tag = 'scratch operand']
  %s0 = inlined_call_operand.vmem [shape: f32[2,8,8], index: 0, kind: input, shape index: {}]
  %s1 = inlined_call_operand.vmem [shape: f32[8,32], index: 1, kind: input, shape index: {}]
  %s2 = inlined_call_operand.vmem [shape: f32[1,32], index: 2, kind: input, shape index: {}]
  %s3 = inlined_call_operand.vmem [shape: f32[1,8,32], index: 3, kind: input, shape index: {}]
  %s4 = inlined_call_operand.vmem [shape: f32[2,2,32,16], index: 4, kind: input, shape index: {}]
  %s5 = inlined_call_operand.vmem [shape: f32[2,2,32,16], index: 5, kind: input, shape index: {}]
  %s6 = inlined_call_operand.vmem [shape: f32[2,2,32,16], index: 6, kind: input, shape index: {}]
  %s7 = inlined_call_operand.vmem [shape: f32[2,2,1,16], index: 7, kind: input, shape index: {}]
  %s8 = inlined_call_operand.vmem [shape: f32[2,2,1,16], index: 8, kind: input, shape index: {}]
  %s9 = inlined_call_operand.vmem [shape: f32[2,2,1,16], index: 9, kind: input, shape index: {}]
  %s10 = inlined_call_operand.vmem [shape: f32[2,2,16,32], index: 10, kind: input, shape index: {}]
  %s11 = inlined_call_operand.vmem [shape: f32[2,1,32], index: 11, kind: input, shape index: {}]
  %s12 = inlined_call_operand.vmem [shape: f32[2,1,32], index: 12, kind: input, shape index: {}]
  %s13 = inlined_call_operand.vmem [shape: f32[2,1,32], index: 13, kind: input, shape index: {}]
  %s14 = inlined_call_operand.vmem [shape: f32[2,32,64], index: 14, kind: input, shape index: {}]
  %s15 = inlined_call_operand.vmem [shape: f32[2,1,64], index: 15, kind: input, shape index: {}]
  %s16 = inlined_call_operand.vmem [shape: f32[2,64,32], index: 16, kind: input, shape index: {}]
  %s17 = inlined_call_operand.vmem [shape: f32[2,1,32], index: 17, kind: input, shape index: {}]
  %s18 = inlined_call_operand.vmem [shape: f32[2,1,32], index: 18, kind: input, shape index: {}]
  %s19 = inlined_call_operand.vmem [shape: f32[2,1,32], index: 19, kind: input, shape index: {}]
  %s20 = inlined_call_operand.vmem [shape: f32[2,8,32], index: 20, kind: output, shape index: {}]
  %s21 = sld [smem:[#allocation0]]
  $region121: #{csiformer_student_forward.2} parent=0
    _
  %s23 = ssub.s32 1, %s21
  %s24 = scalar_select 0, %s23, %s21
  loop: start=0, step=1, limit=6
  $region2: #{csiformer_student_forward.2} parent=0 // loop_pre_header
    _
  $region3: #{csiformer_student_forward.2} parent=0 // loop_header
    %s26 = sphi 0, %s30
    %p27 = scmp.ge.s32.totalorder %s26, 6
    %s33 = sphi 0, %s45
    %s34 = sphi 0, %s41
    %s35 = sphi 0, %s33
    %s36 = sphi 0, %s34
    %s37 = sphi 0, %s35
    %s38 = sphi 0, %s36
    %s48 = sphi 0, %s50
    %s51 = sphi 0, %s48
    %s52 = sphi 0, %s51
    %s68 = sphi 0, %s52
    %s72 = sphi 0, %s72
    %s74 = sphi 0, %s72
    %s75 = sphi 0, %s74
    %s89 = sphi 0, %s75
    %s93 = sphi 0, %s93
    %s95 = sphi 0, %s93
    %s96 = sphi 0, %s95
    %s110 = sphi 0, %s96
    %s114 = sphi 0, %s114
    %s116 = sphi 0, %s114
    %s117 = sphi 0, %s116
    %s131 = sphi 0, %s117
    %s137 = sphi 0, %s139
    %s140 = sphi 0, %s137
    %s141 = sphi 0, %s140
    %s157 = sphi 0, %s141
    %s163 = sphi 0, %s165
    %s166 = sphi 0, %s163
    %s167 = sphi 0, %s166
    %s183 = sphi 0, %s167
    %s189 = sphi 0, %s191
    %s192 = sphi 0, %s189
    %s193 = sphi 0, %s192
    %s209 = sphi 0, %s193
    %s215 = sphi 0, %s217
    %s218 = sphi 0, %s215
    %s219 = sphi 0, %s218
    %s235 = sphi 0, %s219
    %s241 = sphi 0, %s243
    %s244 = sphi 0, %s241
    %s245 = sphi 0, %s244
    %s261 = sphi 0, %s245
    %s267 = sphi 0, %s269
    %s270 = sphi 0, %s267
    %s271 = sphi 0, %s270
    %s287 = sphi 0, %s271
    %s293 = sphi 0, %s295
    %s296 = sphi 0, %s293
    %s297 = sphi 0, %s296
    %s313 = sphi 0, %s297
    %s319 = sphi 0, %s321
    %s322 = sphi 0, %s319
    %s323 = sphi 0, %s322
    %s339 = sphi 0, %s323
    %s345 = sphi 0, %s347
    %s348 = sphi 0, %s345
    %s349 = sphi 0, %s348
    %s365 = sphi 0, %s349
    %s371 = sphi 0, %s373
    %s374 = sphi 0, %s371
    %s375 = sphi 0, %s374
    %s391 = sphi 0, %s375
    %s397 = sphi 0, %s399
    %s400 = sphi 0, %s397
    %s401 = sphi 0, %s400
    %s417 = sphi 0, %s401
    %s423 = sphi 0, %s425
    %s426 = sphi 0, %s423
    %s427 = sphi 0, %s426
    %s443 = sphi 0, %s427
    %s449 = sphi 0, %s451
    %s452 = sphi 0, %s449
    %s453 = sphi 0, %s452
    %s469 = sphi 0, %s453
    %s475 = sphi 0, %s477
    %s478 = sphi 0, %s475
    %s479 = sphi 0, %s478
    %s495 = sphi 0, %s479
    %s501 = sphi 0, %s503
    %s504 = sphi 0, %s501
    %s505 = sphi 0, %s504
    %s521 = sphi 0, %s505
    %s527 = sphi 0, %s529
    %s530 = sphi 0, %s527
    %s531 = sphi 0, %s530
    %s547 = sphi 0, %s531
    %s553 = sphi 0, %s555
    %s556 = sphi 0, %s553
    %s557 = sphi 0, %s556
    %s573 = sphi 0, %s557
  $region4: #{csiformer_student_forward.2} parent=0 // loop_header_branch
    %29 = sbr.rel (%p27) target = $region8
  $region5: #{csiformer_student_forward.2} parent=0 // loop_body
    %s31 = ssub.s32 %s26, 1
    %s32 = ssub.s32 %s26, 2
    %s39 = sadd.s32 1, %s34
    %p40 = scmp.ge.s32.totalorder %s39, 2
    %s41 = scalar_select %p40, 0, %s39
    %s42 = sadd.s32 1, %s33
    %s43 = scalar_select %p40, %s42, %s33
    %p44 = scmp.ge.s32.totalorder %s43, 2
    %s45 = scalar_select %p44, 0, %s43
    %s46 = ssub.s32 %s33, %s45
    %p47 = scmp.eq.s32.totalorder %s46, 0
    %s49 = sadd.s32 %s48, 1
    %s50 = scalar_select %p47, %s48, %s49
    %p53 = pneg %p47
    %p54 = scmp.eq.s32.totalorder %s26, 3
    %p55 = por %p53, %p54
    %p56 = scmp.ne.s32.totalorder %s48, %s51
    %p57 = scmp.eq.s32.totalorder %s26, 0
    %p58 = por %p56, %p57
    %p59 = scmp.ne.s32.totalorder %s48, %s51
    %p60 = scmp.eq.s32.totalorder %s31, 3
    %p61 = por %p59, %p60
    %p62 = scmp.ne.s32.totalorder %s51, %s52
    %p63 = scmp.eq.s32.totalorder %s31, 0
    %p64 = por %p62, %p63
    %p65 = scmp.ne.s32.totalorder %s51, %s52
    %p66 = scmp.eq.s32.totalorder %s32, 3
    %p67 = por %p65, %p66
    %p69 = scmp.ne.s32.totalorder %s52, %s68
    %p70 = scmp.eq.s32.totalorder %s32, 0
    %p71 = por %p69, %p70
    %s73 = sadd.s32 %s72, 1
    %p76 = scmp.eq.s32.totalorder %s26, 3
    %p77 = scmp.ne.s32.totalorder %s72, %s74
    %p78 = scmp.eq.s32.totalorder %s26, 0
    %p79 = por %p77, %p78
    %p80 = scmp.ne.s32.totalorder %s72, %s74
    %p81 = scmp.eq.s32.totalorder %s31, 3
    %p82 = por %p80, %p81
    %p83 = scmp.ne.s32.totalorder %s74, %s75
    %p84 = scmp.eq.s32.totalorder %s31, 0
    %p85 = por %p83, %p84
    %p86 = scmp.ne.s32.totalorder %s74, %s75
    %p87 = scmp.eq.s32.totalorder %s32, 3
    %p88 = por %p86, %p87
    %p90 = scmp.ne.s32.totalorder %s75, %s89
    %p91 = scmp.eq.s32.totalorder %s32, 0
    %p92 = por %p90, %p91
    %s94 = sadd.s32 %s93, 1
    %p97 = scmp.eq.s32.totalorder %s26, 3
    %p98 = scmp.ne.s32.totalorder %s93, %s95
    %p99 = scmp.eq.s32.totalorder %s26, 0
    %p100 = por %p98, %p99
    %p101 = scmp.ne.s32.totalorder %s93, %s95
    %p102 = scmp.eq.s32.totalorder %s31, 3
    %p103 = por %p101, %p102
    %p104 = scmp.ne.s32.totalorder %s95, %s96
    %p105 = scmp.eq.s32.totalorder %s31, 0
    %p106 = por %p104, %p105
    %p107 = scmp.ne.s32.totalorder %s95, %s96
    %p108 = scmp.eq.s32.totalorder %s32, 3
    %p109 = por %p107, %p108
    %p111 = scmp.ne.s32.totalorder %s96, %s110
    %p112 = scmp.eq.s32.totalorder %s32, 0
    %p113 = por %p111, %p112
    %s115 = sadd.s32 %s114, 1
    %p118 = scmp.eq.s32.totalorder %s26, 3
    %p119 = scmp.ne.s32.totalorder %s114, %s116
    %p120 = scmp.eq.s32.totalorder %s26, 0
    %p121 = por %p119, %p120
    %p122 = scmp.ne.s32.totalorder %s114, %s116
    %p123 = scmp.eq.s32.totalorder %s31, 3
    %p124 = por %p122, %p123
    %p125 = scmp.ne.s32.totalorder %s116, %s117
    %p126 = scmp.eq.s32.totalorder %s31, 0
    %p127 = por %p125, %p126
    %p128 = scmp.ne.s32.totalorder %s116, %s117
    %p129 = scmp.eq.s32.totalorder %s32, 3
    %p130 = por %p128, %p129
    %p132 = scmp.ne.s32.totalorder %s117, %s131
    %p133 = scmp.eq.s32.totalorder %s32, 0
    %p134 = por %p132, %p133
    %s135 = ssub.s32 %s34, %s41
    %p136 = scmp.eq.s32.totalorder %s135, 0
    %s138 = sadd.s32 %s137, 1
    %s139 = scalar_select %p136, %s137, %s138
    %p142 = pneg %p136
    %p143 = scmp.eq.s32.totalorder %s26, 3
    %p144 = por %p142, %p143
    %p145 = scmp.ne.s32.totalorder %s137, %s140
    %p146 = scmp.eq.s32.totalorder %s26, 0
    %p147 = por %p145, %p146
    %p148 = scmp.ne.s32.totalorder %s137, %s140
    %p149 = scmp.eq.s32.totalorder %s31, 3
    %p150 = por %p148, %p149
    %p151 = scmp.ne.s32.totalorder %s140, %s141
    %p152 = scmp.eq.s32.totalorder %s31, 0
    %p153 = por %p151, %p152
    %p154 = scmp.ne.s32.totalorder %s140, %s141
    %p155 = scmp.eq.s32.totalorder %s32, 3
    %p156 = por %p154, %p155
    %p158 = scmp.ne.s32.totalorder %s141, %s157
    %p159 = scmp.eq.s32.totalorder %s32, 0
    %p160 = por %p158, %p159
    %s161 = ssub.s32 %s34, %s41
    %p162 = scmp.eq.s32.totalorder %s161, 0
    %s164 = sadd.s32 %s163, 1
    %s165 = scalar_select %p162, %s163, %s164
    %p168 = pneg %p162
    %p169 = scmp.eq.s32.totalorder %s26, 3
    %p170 = por %p168, %p169
    %p171 = scmp.ne.s32.totalorder %s163, %s166
    %p172 = scmp.eq.s32.totalorder %s26, 0
    %p173 = por %p171, %p172
    %p174 = scmp.ne.s32.totalorder %s163, %s166
    %p175 = scmp.eq.s32.totalorder %s31, 3
    %p176 = por %p174, %p175
    %p177 = scmp.ne.s32.totalorder %s166, %s167
    %p178 = scmp.eq.s32.totalorder %s31, 0
    %p179 = por %p177, %p178
    %p180 = scmp.ne.s32.totalorder %s166, %s167
    %p181 = scmp.eq.s32.totalorder %s32, 3
    %p182 = por %p180, %p181
    %p184 = scmp.ne.s32.totalorder %s167, %s183
    %p185 = scmp.eq.s32.totalorder %s32, 0
    %p186 = por %p184, %p185
    %s187 = ssub.s32 %s34, %s41
    %p188 = scmp.eq.s32.totalorder %s187, 0
    %s190 = sadd.s32 %s189, 1
    %s191 = scalar_select %p188, %s189, %s190
    %p194 = pneg %p188
    %p195 = scmp.eq.s32.totalorder %s26, 3
    %p196 = por %p194, %p195
    %p197 = scmp.ne.s32.totalorder %s189, %s192
    %p198 = scmp.eq.s32.totalorder %s26, 0
    %p199 = por %p197, %p198
    %p200 = scmp.ne.s32.totalorder %s189, %s192
    %p201 = scmp.eq.s32.totalorder %s31, 3
    %p202 = por %p200, %p201
    %p203 = scmp.ne.s32.totalorder %s192, %s193
    %p204 = scmp.eq.s32.totalorder %s31, 0
    %p205 = por %p203, %p204
    %p206 = scmp.ne.s32.totalorder %s192, %s193
    %p207 = scmp.eq.s32.totalorder %s32, 3
    %p208 = por %p206, %p207
    %p210 = scmp.ne.s32.totalorder %s193, %s209
    %p211 = scmp.eq.s32.totalorder %s32, 0
    %p212 = por %p210, %p211
    %s213 = ssub.s32 %s34, %s41
    %p214 = scmp.eq.s32.totalorder %s213, 0
    %s216 = sadd.s32 %s215, 1
    %s217 = scalar_select %p214, %s215, %s216
    %p220 = pneg %p214
    %p221 = scmp.eq.s32.totalorder %s26, 3
    %p222 = por %p220, %p221
    %p223 = scmp.ne.s32.totalorder %s215, %s218
    %p224 = scmp.eq.s32.totalorder %s26, 0
    %p225 = por %p223, %p224
    %p226 = scmp.ne.s32.totalorder %s215, %s218
    %p227 = scmp.eq.s32.totalorder %s31, 3
    %p228 = por %p226, %p227
    %p229 = scmp.ne.s32.totalorder %s218, %s219
    %p230 = scmp.eq.s32.totalorder %s31, 0
    %p231 = por %p229, %p230
    %p232 = scmp.ne.s32.totalorder %s218, %s219
    %p233 = scmp.eq.s32.totalorder %s32, 3
    %p234 = por %p232, %p233
    %p236 = scmp.ne.s32.totalorder %s219, %s235
    %p237 = scmp.eq.s32.totalorder %s32, 0
    %p238 = por %p236, %p237
    %s239 = ssub.s32 %s34, %s41
    %p240 = scmp.eq.s32.totalorder %s239, 0
    %s242 = sadd.s32 %s241, 1
    %s243 = scalar_select %p240, %s241, %s242
    %p246 = pneg %p240
    %p247 = scmp.eq.s32.totalorder %s26, 3
    %p248 = por %p246, %p247
    %p249 = scmp.ne.s32.totalorder %s241, %s244
    %p250 = scmp.eq.s32.totalorder %s26, 0
    %p251 = por %p249, %p250
    %p252 = scmp.ne.s32.totalorder %s241, %s244
    %p253 = scmp.eq.s32.totalorder %s31, 3
    %p254 = por %p252, %p253
    %p255 = scmp.ne.s32.totalorder %s244, %s245
    %p256 = scmp.eq.s32.totalorder %s31, 0
    %p257 = por %p255, %p256
    %p258 = scmp.ne.s32.totalorder %s244, %s245
    %p259 = scmp.eq.s32.totalorder %s32, 3
    %p260 = por %p258, %p259
    %p262 = scmp.ne.s32.totalorder %s245, %s261
    %p263 = scmp.eq.s32.totalorder %s32, 0
    %p264 = por %p262, %p263
    %s265 = ssub.s32 %s34, %s41
    %p266 = scmp.eq.s32.totalorder %s265, 0
    %s268 = sadd.s32 %s267, 1
    %s269 = scalar_select %p266, %s267, %s268
    %p272 = pneg %p266
    %p273 = scmp.eq.s32.totalorder %s26, 3
    %p274 = por %p272, %p273
    %p275 = scmp.ne.s32.totalorder %s267, %s270
    %p276 = scmp.eq.s32.totalorder %s26, 0
    %p277 = por %p275, %p276
    %p278 = scmp.ne.s32.totalorder %s267, %s270
    %p279 = scmp.eq.s32.totalorder %s31, 3
    %p280 = por %p278, %p279
    %p281 = scmp.ne.s32.totalorder %s270, %s271
    %p282 = scmp.eq.s32.totalorder %s31, 0
    %p283 = por %p281, %p282
    %p284 = scmp.ne.s32.totalorder %s270, %s271
    %p285 = scmp.eq.s32.totalorder %s32, 3
    %p286 = por %p284, %p285
    %p288 = scmp.ne.s32.totalorder %s271, %s287
    %p289 = scmp.eq.s32.totalorder %s32, 0
    %p290 = por %p288, %p289
    %s291 = ssub.s32 %s34, %s41
    %p292 = scmp.eq.s32.totalorder %s291, 0
    %s294 = sadd.s32 %s293, 1
    %s295 = scalar_select %p292, %s293, %s294
    %p298 = pneg %p292
    %p299 = scmp.eq.s32.totalorder %s26, 3
    %p300 = por %p298, %p299
    %p301 = scmp.ne.s32.totalorder %s293, %s296
    %p302 = scmp.eq.s32.totalorder %s26, 0
    %p303 = por %p301, %p302
    %p304 = scmp.ne.s32.totalorder %s293, %s296
    %p305 = scmp.eq.s32.totalorder %s31, 3
    %p306 = por %p304, %p305
    %p307 = scmp.ne.s32.totalorder %s296, %s297
    %p308 = scmp.eq.s32.totalorder %s31, 0
    %p309 = por %p307, %p308
    %p310 = scmp.ne.s32.totalorder %s296, %s297
    %p311 = scmp.eq.s32.totalorder %s32, 3
    %p312 = por %p310, %p311
    %p314 = scmp.ne.s32.totalorder %s297, %s313
    %p315 = scmp.eq.s32.totalorder %s32, 0
    %p316 = por %p314, %p315
    %s317 = ssub.s32 %s34, %s41
    %p318 = scmp.eq.s32.totalorder %s317, 0
    %s320 = sadd.s32 %s319, 1
    %s321 = scalar_select %p318, %s319, %s320
    %p324 = pneg %p318
    %p325 = scmp.eq.s32.totalorder %s26, 3
    %p326 = por %p324, %p325
    %p327 = scmp.ne.s32.totalorder %s319, %s322
    %p328 = scmp.eq.s32.totalorder %s26, 0
    %p329 = por %p327, %p328
    %p330 = scmp.ne.s32.totalorder %s319, %s322
    %p331 = scmp.eq.s32.totalorder %s31, 3
    %p332 = por %p330, %p331
    %p333 = scmp.ne.s32.totalorder %s322, %s323
    %p334 = scmp.eq.s32.totalorder %s31, 0
    %p335 = por %p333, %p334
    %p336 = scmp.ne.s32.totalorder %s322, %s323
    %p337 = scmp.eq.s32.totalorder %s32, 3
    %p338 = por %p336, %p337
    %p340 = scmp.ne.s32.totalorder %s323, %s339
    %p341 = scmp.eq.s32.totalorder %s32, 0
    %p342 = por %p340, %p341
    %s343 = ssub.s32 %s34, %s41
    %p344 = scmp.eq.s32.totalorder %s343, 0
    %s346 = sadd.s32 %s345, 1
    %s347 = scalar_select %p344, %s345, %s346
    %p350 = pneg %p344
    %p351 = scmp.eq.s32.totalorder %s26, 3
    %p352 = por %p350, %p351
    %p353 = scmp.ne.s32.totalorder %s345, %s348
    %p354 = scmp.eq.s32.totalorder %s26, 0
    %p355 = por %p353, %p354
    %p356 = scmp.ne.s32.totalorder %s345, %s348
    %p357 = scmp.eq.s32.totalorder %s31, 3
    %p358 = por %p356, %p357
    %p359 = scmp.ne.s32.totalorder %s348, %s349
    %p360 = scmp.eq.s32.totalorder %s31, 0
    %p361 = por %p359, %p360
    %p362 = scmp.ne.s32.totalorder %s348, %s349
    %p363 = scmp.eq.s32.totalorder %s32, 3
    %p364 = por %p362, %p363
    %p366 = scmp.ne.s32.totalorder %s349, %s365
    %p367 = scmp.eq.s32.totalorder %s32, 0
    %p368 = por %p366, %p367
    %s369 = ssub.s32 %s34, %s41
    %p370 = scmp.eq.s32.totalorder %s369, 0
    %s372 = sadd.s32 %s371, 1
    %s373 = scalar_select %p370, %s371, %s372
    %p376 = pneg %p370
    %p377 = scmp.eq.s32.totalorder %s26, 3
    %p378 = por %p376, %p377
    %p379 = scmp.ne.s32.totalorder %s371, %s374
    %p380 = scmp.eq.s32.totalorder %s26, 0
    %p381 = por %p379, %p380
    %p382 = scmp.ne.s32.totalorder %s371, %s374
    %p383 = scmp.eq.s32.totalorder %s31, 3
    %p384 = por %p382, %p383
    %p385 = scmp.ne.s32.totalorder %s374, %s375
    %p386 = scmp.eq.s32.totalorder %s31, 0
    %p387 = por %p385, %p386
    %p388 = scmp.ne.s32.totalorder %s374, %s375
    %p389 = scmp.eq.s32.totalorder %s32, 3
    %p390 = por %p388, %p389
    %p392 = scmp.ne.s32.totalorder %s375, %s391
    %p393 = scmp.eq.s32.totalorder %s32, 0
    %p394 = por %p392, %p393
    %s395 = ssub.s32 %s34, %s41
    %p396 = scmp.eq.s32.totalorder %s395, 0
    %s398 = sadd.s32 %s397, 1
    %s399 = scalar_select %p396, %s397, %s398
    %p402 = pneg %p396
    %p403 = scmp.eq.s32.totalorder %s26, 3
    %p404 = por %p402, %p403
    %p405 = scmp.ne.s32.totalorder %s397, %s400
    %p406 = scmp.eq.s32.totalorder %s26, 0
    %p407 = por %p405, %p406
    %p408 = scmp.ne.s32.totalorder %s397, %s400
    %p409 = scmp.eq.s32.totalorder %s31, 3
    %p410 = por %p408, %p409
    %p411 = scmp.ne.s32.totalorder %s400, %s401
    %p412 = scmp.eq.s32.totalorder %s31, 0
    %p413 = por %p411, %p412
    %p414 = scmp.ne.s32.totalorder %s400, %s401
    %p415 = scmp.eq.s32.totalorder %s32, 3
    %p416 = por %p414, %p415
    %p418 = scmp.ne.s32.totalorder %s401, %s417
    %p419 = scmp.eq.s32.totalorder %s32, 0
    %p420 = por %p418, %p419
    %s421 = ssub.s32 %s34, %s41
    %p422 = scmp.eq.s32.totalorder %s421, 0
    %s424 = sadd.s32 %s423, 1
    %s425 = scalar_select %p422, %s423, %s424
    %p428 = pneg %p422
    %p429 = scmp.eq.s32.totalorder %s26, 3
    %p430 = por %p428, %p429
    %p431 = scmp.ne.s32.totalorder %s423, %s426
    %p432 = scmp.eq.s32.totalorder %s26, 0
    %p433 = por %p431, %p432
    %p434 = scmp.ne.s32.totalorder %s423, %s426
    %p435 = scmp.eq.s32.totalorder %s31, 3
    %p436 = por %p434, %p435
    %p437 = scmp.ne.s32.totalorder %s426, %s427
    %p438 = scmp.eq.s32.totalorder %s31, 0
    %p439 = por %p437, %p438
    %p440 = scmp.ne.s32.totalorder %s426, %s427
    %p441 = scmp.eq.s32.totalorder %s32, 3
    %p442 = por %p440, %p441
    %p444 = scmp.ne.s32.totalorder %s427, %s443
    %p445 = scmp.eq.s32.totalorder %s32, 0
    %p446 = por %p444, %p445
    %s447 = ssub.s32 %s34, %s41
    %p448 = scmp.eq.s32.totalorder %s447, 0
    %s450 = sadd.s32 %s449, 1
    %s451 = scalar_select %p448, %s449, %s450
    %p454 = pneg %p448
    %p455 = scmp.eq.s32.totalorder %s26, 3
    %p456 = por %p454, %p455
    %p457 = scmp.ne.s32.totalorder %s449, %s452
    %p458 = scmp.eq.s32.totalorder %s26, 0
    %p459 = por %p457, %p458
    %p460 = scmp.ne.s32.totalorder %s449, %s452
    %p461 = scmp.eq.s32.totalorder %s31, 3
    %p462 = por %p460, %p461
    %p463 = scmp.ne.s32.totalorder %s452, %s453
    %p464 = scmp.eq.s32.totalorder %s31, 0
    %p465 = por %p463, %p464
    %p466 = scmp.ne.s32.totalorder %s452, %s453
    %p467 = scmp.eq.s32.totalorder %s32, 3
    %p468 = por %p466, %p467
    %p470 = scmp.ne.s32.totalorder %s453, %s469
    %p471 = scmp.eq.s32.totalorder %s32, 0
    %p472 = por %p470, %p471
    %s473 = ssub.s32 %s34, %s41
    %p474 = scmp.eq.s32.totalorder %s473, 0
    %s476 = sadd.s32 %s475, 1
    %s477 = scalar_select %p474, %s475, %s476
    %p480 = pneg %p474
    %p481 = scmp.eq.s32.totalorder %s26, 3
    %p482 = por %p480, %p481
    %p483 = scmp.ne.s32.totalorder %s475, %s478
    %p484 = scmp.eq.s32.totalorder %s26, 0
    %p485 = por %p483, %p484
    %p486 = scmp.ne.s32.totalorder %s475, %s478
    %p487 = scmp.eq.s32.totalorder %s31, 3
    %p488 = por %p486, %p487
    %p489 = scmp.ne.s32.totalorder %s478, %s479
    %p490 = scmp.eq.s32.totalorder %s31, 0
    %p491 = por %p489, %p490
    %p492 = scmp.ne.s32.totalorder %s478, %s479
    %p493 = scmp.eq.s32.totalorder %s32, 3
    %p494 = por %p492, %p493
    %p496 = scmp.ne.s32.totalorder %s479, %s495
    %p497 = scmp.eq.s32.totalorder %s32, 0
    %p498 = por %p496, %p497
    %s499 = ssub.s32 %s34, %s41
    %p500 = scmp.eq.s32.totalorder %s499, 0
    %s502 = sadd.s32 %s501, 1
    %s503 = scalar_select %p500, %s501, %s502
    %p506 = pneg %p500
    %p507 = scmp.eq.s32.totalorder %s26, 3
    %p508 = por %p506, %p507
    %p509 = scmp.ne.s32.totalorder %s501, %s504
    %p510 = scmp.eq.s32.totalorder %s26, 0
    %p511 = por %p509, %p510
    %p512 = scmp.ne.s32.totalorder %s501, %s504
    %p513 = scmp.eq.s32.totalorder %s31, 3
    %p514 = por %p512, %p513
    %p515 = scmp.ne.s32.totalorder %s504, %s505
    %p516 = scmp.eq.s32.totalorder %s31, 0
    %p517 = por %p515, %p516
    %p518 = scmp.ne.s32.totalorder %s504, %s505
    %p519 = scmp.eq.s32.totalorder %s32, 3
    %p520 = por %p518, %p519
    %p522 = scmp.ne.s32.totalorder %s505, %s521
    %p523 = scmp.eq.s32.totalorder %s32, 0
    %p524 = por %p522, %p523
    %s525 = ssub.s32 %s34, %s41
    %p526 = scmp.eq.s32.totalorder %s525, 0
    %s528 = sadd.s32 %s527, 1
    %s529 = scalar_select %p526, %s527, %s528
    %p532 = pneg %p526
    %p533 = scmp.eq.s32.totalorder %s26, 3
    %p534 = por %p532, %p533
    %p535 = scmp.ne.s32.totalorder %s527, %s530
    %p536 = scmp.eq.s32.totalorder %s26, 0
    %p537 = por %p535, %p536
    %p538 = scmp.ne.s32.totalorder %s527, %s530
    %p539 = scmp.eq.s32.totalorder %s31, 3
    %p540 = por %p538, %p539
    %p541 = scmp.ne.s32.totalorder %s530, %s531
    %p542 = scmp.eq.s32.totalorder %s31, 0
    %p543 = por %p541, %p542
    %p544 = scmp.ne.s32.totalorder %s530, %s531
    %p545 = scmp.eq.s32.totalorder %s32, 3
    %p546 = por %p544, %p545
    %p548 = scmp.ne.s32.totalorder %s531, %s547
    %p549 = scmp.eq.s32.totalorder %s32, 0
    %p550 = por %p548, %p549
    %s551 = ssub.s32 %s33, %s45
    %p552 = scmp.eq.s32.totalorder %s551, 0
    %s554 = sadd.s32 %s553, 1
    %s555 = scalar_select %p552, %s553, %s554
    %p558 = pneg %p552
    %p559 = scmp.eq.s32.totalorder %s26, 3
    %p560 = por %p558, %p559
    %p561 = scmp.ne.s32.totalorder %s553, %s556
    %p562 = scmp.eq.s32.totalorder %s26, 0
    %p563 = por %p561, %p562
    %p564 = scmp.ne.s32.totalorder %s553, %s556
    %p565 = scmp.eq.s32.totalorder %s31, 3
    %p566 = por %p564, %p565
    %p567 = scmp.ne.s32.totalorder %s556, %s557
    %p568 = scmp.eq.s32.totalorder %s31, 0
    %p569 = por %p567, %p568
    %p570 = scmp.ne.s32.totalorder %s556, %s557
    %p571 = scmp.eq.s32.totalorder %s32, 3
    %p572 = por %p570, %p571
    %p574 = scmp.ne.s32.totalorder %s557, %s573
    %p575 = scmp.eq.s32.totalorder %s32, 0
    %p576 = por %p574, %p575
    %p577 = scmp.le.s32.totalorder 1, %s26
    %p578 = scmp.lt.s32.totalorder %s26, 5
    %p579 = pnand %p577, %p578
    %p580 = pneg %p579
    // Predicated region
    $region9: #{csiformer_student_forward.2} parent=5 // pred_check
      _
    $region10: #{csiformer_student_forward.2} parent=5 // pred_check_branch
      %582 = sbr.rel (%p579) target = $region12
    $region11: #{csiformer_student_forward.2} parent=5 // pred_region
      %s583 = ssub.s32 %s26, 1
      // Predicated region
      $region13: #{csiformer_student_forward.2} parent=11 // pred_check
        %p584 = pneg %p85
      $region14: #{csiformer_student_forward.2} parent=11 // pred_check_branch
        %586 = sbr.rel (%p584) target = $region16
      $region15: #{csiformer_student_forward.2} parent=11 // pred_region
        _
      $region16: #{csiformer_student_forward.2} parent=11 // pred_fallthru
        _
      // Predicated region
      $region17: #{csiformer_student_forward.2} parent=11 // pred_check
        %p587 = pneg %p106
      $region18: #{csiformer_student_forward.2} parent=11 // pred_check_branch
        %589 = sbr.rel (%p587) target = $region20
      $region19: #{csiformer_student_forward.2} parent=11 // pred_region
        _
      $region20: #{csiformer_student_forward.2} parent=11 // pred_fallthru
        _
      // Predicated region
      $region21: #{csiformer_student_forward.2} parent=11 // pred_check
        %p590 = pneg %p127
      $region22: #{csiformer_student_forward.2} parent=11 // pred_check_branch
        %592 = sbr.rel (%p590) target = $region24
      $region23: #{csiformer_student_forward.2} parent=11 // pred_region
        _
      $region24: #{csiformer_student_forward.2} parent=11 // pred_fallthru
        _
    $region12: #{csiformer_student_forward.2} parent=5 // pred_fallthru
      _
    %p593 = scmp.lt.s32.totalorder %s26, 4
    // Predicated region
    $region25: #{csiformer_student_forward.2} parent=5 // pred_check
      %p594 = pneg %p593
    $region26: #{csiformer_student_forward.2} parent=5 // pred_check_branch
      %596 = sbr.rel (%p594) target = $region28
    $region27: #{csiformer_student_forward.2} parent=5 // pred_region
      // Predicated region
      $region29: #{csiformer_student_forward.2} parent=27 // pred_check
        %p597 = pneg %p58
      $region30: #{csiformer_student_forward.2} parent=27 // pred_check_branch
        %599 = sbr.rel (%p597) target = $region32
      $region31: #{csiformer_student_forward.2} parent=27 // pred_region
        %p600 = scmp.lt.s32.totalorder %s33, 1
        %s601 = scalar_select %p600, %s33, 1
        %s602 = smul.addr %s601, 8
        %s603 = scalar_lea.vmem %s0, %s602
      $region32: #{csiformer_student_forward.2} parent=27 // pred_fallthru
        _
      // Predicated region
      $region33: #{csiformer_student_forward.2} parent=27 // pred_check
        %p604 = pneg %p147
      $region34: #{csiformer_student_forward.2} parent=27 // pred_check_branch
        %606 = sbr.rel (%p604) target = $region36
      $region35: #{csiformer_student_forward.2} parent=27 // pred_region
        %p607 = scmp.lt.s32.totalorder %s34, 1
        %s608 = scalar_select %p607, %s34, 1
        %s609 = smul.addr %s608, 8
        %s610 = smul.addr %s609, 8
        %s611 = scalar_lea.vmem %s4, %s610
      $region36: #{csiformer_student_forward.2} parent=27 // pred_fallthru
        _
      // Predicated region
      $region37: #{csiformer_student_forward.2} parent=27 // pred_check
        %p612 = pneg %p173
      $region38: #{csiformer_student_forward.2} parent=27 // pred_check_branch
        %614 = sbr.rel (%p612) target = $region40
      $region39: #{csiformer_student_forward.2} parent=27 // pred_region
        %p615 = scmp.lt.s32.totalorder %s34, 1
        %s616 = scalar_select %p615, %s34, 1
        %s617 = smul.addr %s616, 8
        %s618 = smul.addr %s617, 8
        %s619 = scalar_lea.vmem %s5, %s618
      $region40: #{csiformer_student_forward.2} parent=27 // pred_fallthru
        _
      // Predicated region
      $region41: #{csiformer_student_forward.2} parent=27 // pred_check
        %p620 = pneg %p199
      $region42: #{csiformer_student_forward.2} parent=27 // pred_check_branch
        %622 = sbr.rel (%p620) target = $region44
      $region43: #{csiformer_student_forward.2} parent=27 // pred_region
        %p623 = scmp.lt.s32.totalorder %s34, 1
        %s624 = scalar_select %p623, %s34, 1
        %s625 = smul.addr %s624, 8
        %s626 = smul.addr %s625, 8
        %s627 = scalar_lea.vmem %s6, %s626
      $region44: #{csiformer_student_forward.2} parent=27 // pred_fallthru
        _
      // Predicated region
      $region45: #{csiformer_student_forward.2} parent=27 // pred_check
        %p628 = pneg %p225
      $region46: #{csiformer_student_forward.2} parent=27 // pred_check_branch
        %630 = sbr.rel (%p628) target = $region48
      $region47: #{csiformer_student_forward.2} parent=27 // pred_region
        %p631 = scmp.lt.s32.totalorder %s34, 1
        %s632 = scalar_select %p631, %s34, 1
        %s633 = smul.addr %s632, 2
        %s634 = scalar_lea.vmem %s7, %s633
      $region48: #{csiformer_student_forward.2} parent=27 // pred_fallthru
        _
      // Predicated region
      $region49: #{csiformer_student_forward.2} parent=27 // pred_check
        %p635 = pneg %p251
      $region50: #{csiformer_student_forward.2} parent=27 // pred_check_branch
        %637 = sbr.rel (%p635) target = $region52
      $region51: #{csiformer_student_forward.2} parent=27 // pred_region
        %p638 = scmp.lt.s32.totalorder %s34, 1
        %s639 = scalar_select %p638, %s34, 1
        %s640 = smul.addr %s639, 2
        %s641 = scalar_lea.vmem %s8, %s640
      $region52: #{csiformer_student_forward.2} parent=27 // pred_fallthru
        _
      // Predicated region
      $region53: #{csiformer_student_forward.2} parent=27 // pred_check
        %p642 = pneg %p277
      $region54: #{csiformer_student_forward.2} parent=27 // pred_check_branch
        %644 = sbr.rel (%p642) target = $region56
      $region55: #{csiformer_student_forward.2} parent=27 // pred_region
        %p645 = scmp.lt.s32.totalorder %s34, 1
        %s646 = scalar_select %p645, %s34, 1
        %s647 = smul.addr %s646, 2
        %s648 = scalar_lea.vmem %s9, %s647
      $region56: #{csiformer_student_forward.2} parent=27 // pred_fallthru
        _
      // Predicated region
      $region57: #{csiformer_student_forward.2} parent=27 // pred_check
        %p649 = pneg %p303
      $region58: #{csiformer_student_forward.2} parent=27 // pred_check_branch
        %651 = sbr.rel (%p649) target = $region60
      $region59: #{csiformer_student_forward.2} parent=27 // pred_region
        %p652 = scmp.lt.s32.totalorder %s34, 1
        %s653 = scalar_select %p652, %s34, 1
        %s654 = smul.addr %s653, 4
        %s655 = smul.addr %s654, 8
        %s656 = scalar_lea.vmem %s10, %s655
      $region60: #{csiformer_student_forward.2} parent=27 // pred_fallthru
        _
      // Predicated region
      $region61: #{csiformer_student_forward.2} parent=27 // pred_check
        %p657 = pneg %p329
      $region62: #{csiformer_student_forward.2} parent=27 // pred_check_branch
        %659 = sbr.rel (%p657) target = $region64
      $region63: #{csiformer_student_forward.2} parent=27 // pred_region
        %p660 = scmp.lt.s32.totalorder %s34, 1
        %s661 = scalar_select %p660, %s34, 1
        %s662 = scalar_lea.vmem %s11, %s661
      $region64: #{csiformer_student_forward.2} parent=27 // pred_fallthru
        _
      // Predicated region
      $region65: #{csiformer_student_forward.2} parent=27 // pred_check
        %p663 = pneg %p355
      $region66: #{csiformer_student_forward.2} parent=27 // pred_check_branch
        %665 = sbr.rel (%p663) target = $region68
      $region67: #{csiformer_student_forward.2} parent=27 // pred_region
        %p666 = scmp.lt.s32.totalorder %s34, 1
        %s667 = scalar_select %p666, %s34, 1
        %s668 = scalar_lea.vmem %s12, %s667
      $region68: #{csiformer_student_forward.2} parent=27 // pred_fallthru
        _
      // Predicated region
      $region69: #{csiformer_student_forward.2} parent=27 // pred_check
        %p669 = pneg %p381
      $region70: #{csiformer_student_forward.2} parent=27 // pred_check_branch
        %671 = sbr.rel (%p669) target = $region72
      $region71: #{csiformer_student_forward.2} parent=27 // pred_region
        %p672 = scmp.lt.s32.totalorder %s34, 1
        %s673 = scalar_select %p672, %s34, 1
        %s674 = scalar_lea.vmem %s13, %s673
      $region72: #{csiformer_student_forward.2} parent=27 // pred_fallthru
        _
      // Predicated region
      $region73: #{csiformer_student_forward.2} parent=27 // pred_check
        %p675 = pneg %p407
      $region74: #{csiformer_student_forward.2} parent=27 // pred_check_branch
        %677 = sbr.rel (%p675) target = $region76
      $region75: #{csiformer_student_forward.2} parent=27 // pred_region
        %p678 = scmp.lt.s32.totalorder %s34, 1
        %s679 = scalar_select %p678, %s34, 1
        %s680 = smul.addr %s679, 4
        %s681 = smul.addr %s680, 8
        %s682 = scalar_lea.vmem %s14, %s681
      $region76: #{csiformer_student_forward.2} parent=27 // pred_fallthru
        _
      // Predicated region
      $region77: #{csiformer_student_forward.2} parent=27 // pred_check
        %p683 = pneg %p433
      $region78: #{csiformer_student_forward.2} parent=27 // pred_check_branch
        %685 = sbr.rel (%p683) target = $region80
      $region79: #{csiformer_student_forward.2} parent=27 // pred_region
        %p686 = scmp.lt.s32.totalorder %s34, 1
        %s687 = scalar_select %p686, %s34, 1
        %s688 = scalar_lea.vmem %s15, %s687
      $region80: #{csiformer_student_forward.2} parent=27 // pred_fallthru
        _
      // Predicated region
      $region81: #{csiformer_student_forward.2} parent=27 // pred_check
        %p689 = pneg %p459
      $region82: #{csiformer_student_forward.2} parent=27 // pred_check_branch
        %691 = sbr.rel (%p689) target = $region84
      $region83: #{csiformer_student_forward.2} parent=27 // pred_region
        %p692 = scmp.lt.s32.totalorder %s34, 1
        %s693 = scalar_select %p692, %s34, 1
        %s694 = smul.addr %s693, 8
        %s695 = smul.addr %s694, 8
        %s696 = scalar_lea.vmem %s16, %s695
      $region84: #{csiformer_student_forward.2} parent=27 // pred_fallthru
        _
      // Predicated region
      $region85: #{csiformer_student_forward.2} parent=27 // pred_check
        %p697 = pneg %p485
      $region86: #{csiformer_student_forward.2} parent=27 // pred_check_branch
        %699 = sbr.rel (%p697) target = $region88
      $region87: #{csiformer_student_forward.2} parent=27 // pred_region
        %p700 = scmp.lt.s32.totalorder %s34, 1
        %s701 = scalar_select %p700, %s34, 1
        %s702 = scalar_lea.vmem %s17, %s701
      $region88: #{csiformer_student_forward.2} parent=27 // pred_fallthru
        _
      // Predicated region
      $region89: #{csiformer_student_forward.2} parent=27 // pred_check
        %p703 = pneg %p511
      $region90: #{csiformer_student_forward.2} parent=27 // pred_check_branch
        %705 = sbr.rel (%p703) target = $region92
      $region91: #{csiformer_student_forward.2} parent=27 // pred_region
        %p706 = scmp.lt.s32.totalorder %s34, 1
        %s707 = scalar_select %p706, %s34, 1
        %s708 = scalar_lea.vmem %s18, %s707
      $region92: #{csiformer_student_forward.2} parent=27 // pred_fallthru
        _
      // Predicated region
      $region93: #{csiformer_student_forward.2} parent=27 // pred_check
        %p709 = pneg %p537
      $region94: #{csiformer_student_forward.2} parent=27 // pred_check_branch
        %711 = sbr.rel (%p709) target = $region96
      $region95: #{csiformer_student_forward.2} parent=27 // pred_region
        %p712 = scmp.lt.s32.totalorder %s34, 1
        %s713 = scalar_select %p712, %s34, 1
        %s714 = scalar_lea.vmem %s19, %s713
      $region96: #{csiformer_student_forward.2} parent=27 // pred_fallthru
        _
    $region28: #{csiformer_student_forward.2} parent=5 // pred_fallthru
      _
    %p715 = scmp.le.s32.totalorder 1, %s26
    %p716 = scmp.lt.s32.totalorder %s26, 5
    %p717 = pnand %p715, %p716
    %p718 = pneg %p717
    // Predicated region
    $region97: #{csiformer_student_forward.2} parent=5 // pred_check
      _
    $region98: #{csiformer_student_forward.2} parent=5 // pred_check_branch
      %720 = sbr.rel (%p717) target = $region100
    $region99: #{csiformer_student_forward.2} parent=5 // pred_region
      %s721 = ssub.s32 %s26, 1
      %p722 = scmp.lt.s32.totalorder %s35, 1
      %s723 = scalar_select %p722, %s35, 1
      %s724 = smul.addr %s723, 8
      %s725 = scalar_lea.vmem %s0, %s724
      %p726 = pneg %p64
      %p727 = pneg %p61
      %p728 = pneg %p85
      %p729 = pneg %p82
      %p730 = pneg %p106
      %p731 = pneg %p103
      %p732 = pneg %p127
      %p733 = pneg %p124
      %p734 = scmp.lt.s32.totalorder %s36, 1
      %s735 = scalar_select %p734, %s36, 1
      %s736 = smul.addr %s735, 8
      %s737 = smul.addr %s736, 8
      %s738 = scalar_lea.vmem %s4, %s737
      %p739 = pneg %p153
      %p740 = pneg %p150
      %p741 = scmp.lt.s32.totalorder %s36, 1
      %s742 = scalar_select %p741, %s36, 1
      %s743 = smul.addr %s742, 8
      %s744 = smul.addr %s743, 8
      %s745 = scalar_lea.vmem %s5, %s744
      %p746 = pneg %p179
      %p747 = pneg %p176
      %p748 = scmp.lt.s32.totalorder %s36, 1
      %s749 = scalar_select %p748, %s36, 1
      %s750 = smul.addr %s749, 8
      %s751 = smul.addr %s750, 8
      %s752 = scalar_lea.vmem %s6, %s751
      %p753 = pneg %p205
      %p754 = pneg %p202
      %p755 = scmp.lt.s32.totalorder %s36, 1
      %s756 = scalar_select %p755, %s36, 1
      %s757 = smul.addr %s756, 2
      %s758 = scalar_lea.vmem %s7, %s757
      %p759 = pneg %p231
      %p760 = pneg %p228
      %p761 = scmp.lt.s32.totalorder %s36, 1
      %s762 = scalar_select %p761, %s36, 1
      %s763 = smul.addr %s762, 2
      %s764 = scalar_lea.vmem %s8, %s763
      %p765 = pneg %p257
      %p766 = pneg %p254
      %p767 = scmp.lt.s32.totalorder %s36, 1
      %s768 = scalar_select %p767, %s36, 1
      %s769 = smul.addr %s768, 2
      %s770 = scalar_lea.vmem %s9, %s769
      %p771 = pneg %p283
      %p772 = pneg %p280
      %p773 = scmp.lt.s32.totalorder %s36, 1
      %s774 = scalar_select %p773, %s36, 1
      %s775 = smul.addr %s774, 4
      %s776 = smul.addr %s775, 8
      %s777 = scalar_lea.vmem %s10, %s776
      %p778 = pneg %p309
      %p779 = pneg %p306
      %p780 = scmp.lt.s32.totalorder %s36, 1
      %s781 = scalar_select %p780, %s36, 1
      %s782 = scalar_lea.vmem %s11, %s781
      %p783 = pneg %p335
      %p784 = pneg %p332
      %p785 = scmp.lt.s32.totalorder %s36, 1
      %s786 = scalar_select %p785, %s36, 1
      %s787 = scalar_lea.vmem %s12, %s786
      %p788 = pneg %p361
      %p789 = pneg %p358
      %p790 = scmp.lt.s32.totalorder %s36, 1
      %s791 = scalar_select %p790, %s36, 1
      %s792 = scalar_lea.vmem %s13, %s791
      %p793 = pneg %p387
      %p794 = pneg %p384
      %p795 = scmp.lt.s32.totalorder %s36, 1
      %s796 = scalar_select %p795, %s36, 1
      %s797 = smul.addr %s796, 4
      %s798 = smul.addr %s797, 8
      %s799 = scalar_lea.vmem %s14, %s798
      %p800 = pneg %p413
      %p801 = pneg %p410
      %p802 = scmp.lt.s32.totalorder %s36, 1
      %s803 = scalar_select %p802, %s36, 1
      %s804 = scalar_lea.vmem %s15, %s803
      %p805 = pneg %p439
      %p806 = pneg %p436
      %p807 = scmp.lt.s32.totalorder %s36, 1
      %s808 = scalar_select %p807, %s36, 1
      %s809 = smul.addr %s808, 8
      %s810 = smul.addr %s809, 8
      %s811 = scalar_lea.vmem %s16, %s810
      %p812 = pneg %p465
      %p813 = pneg %p462
      %p814 = scmp.lt.s32.totalorder %s36, 1
      %s815 = scalar_select %p814, %s36, 1
      %s816 = scalar_lea.vmem %s17, %s815
      %p817 = pneg %p491
      %p818 = pneg %p488
      %p819 = scmp.lt.s32.totalorder %s36, 1
      %s820 = scalar_select %p819, %s36, 1
      %s821 = scalar_lea.vmem %s18, %s820
      %p822 = pneg %p517
      %p823 = pneg %p514
      %p824 = scmp.lt.s32.totalorder %s36, 1
      %s825 = scalar_select %p824, %s36, 1
      %s826 = scalar_lea.vmem %s19, %s825
      %p827 = pneg %p543
      %p828 = pneg %p540
      %p829 = pneg %p569
      %p830 = pneg %p566
      %p831 = scmp.lt.s32.totalorder %s35, 1
      %s832 = scalar_select %p831, %s35, 1
      %s833 = smul.addr %s832, 8
      %s834 = scalar_lea.vmem %s20, %s833
      %p835 = scmp.lt.s32.totalorder %s35, 1
      %s836 = scalar_select %p835, %s35, 1
      %s837 = smul.addr %s836, 8
      %s838 = scalar_lea.vmem %s0, %s837
      %p839 = scmp.lt.s32.totalorder %s36, 1
      %s840 = scalar_select %p839, %s36, 1
      %s841 = smul.addr %s840, 8
      %s842 = smul.addr %s841, 8
      %s843 = scalar_lea.vmem %s4, %s842
      %p844 = scmp.lt.s32.totalorder %s36, 1
      %s845 = scalar_select %p844, %s36, 1
      %s846 = smul.addr %s845, 8
      %s847 = smul.addr %s846, 8
      %s848 = scalar_lea.vmem %s5, %s847
      %p849 = scmp.lt.s32.totalorder %s36, 1
      %s850 = scalar_select %p849, %s36, 1
      %s851 = smul.addr %s850, 8
      %s852 = smul.addr %s851, 8
      %s853 = scalar_lea.vmem %s6, %s852
      %p854 = scmp.lt.s32.totalorder %s36, 1
      %s855 = scalar_select %p854, %s36, 1
      %s856 = smul.addr %s855, 2
      %s857 = scalar_lea.vmem %s7, %s856
      %p858 = scmp.lt.s32.totalorder %s36, 1
      %s859 = scalar_select %p858, %s36, 1
      %s860 = smul.addr %s859, 2
      %s861 = scalar_lea.vmem %s8, %s860
      %p862 = scmp.lt.s32.totalorder %s36, 1
      %s863 = scalar_select %p862, %s36, 1
      %s864 = smul.addr %s863, 2
      %s865 = scalar_lea.vmem %s9, %s864
      %p866 = scmp.lt.s32.totalorder %s36, 1
      %s867 = scalar_select %p866, %s36, 1
      %s868 = smul.addr %s867, 4
      %s869 = smul.addr %s868, 8
      %s870 = scalar_lea.vmem %s10, %s869
      %p871 = scmp.lt.s32.totalorder %s36, 1
      %s872 = scalar_select %p871, %s36, 1
      %s873 = scalar_lea.vmem %s11, %s872
      %p874 = scmp.lt.s32.totalorder %s36, 1
      %s875 = scalar_select %p874, %s36, 1
      %s876 = scalar_lea.vmem %s12, %s875
      %p877 = scmp.lt.s32.totalorder %s36, 1
      %s878 = scalar_select %p877, %s36, 1
      %s879 = scalar_lea.vmem %s13, %s878
      %p880 = scmp.lt.s32.totalorder %s36, 1
      %s881 = scalar_select %p880, %s36, 1
      %s882 = smul.addr %s881, 4
      %s883 = smul.addr %s882, 8
      %s884 = scalar_lea.vmem %s14, %s883
      %p885 = scmp.lt.s32.totalorder %s36, 1
      %s886 = scalar_select %p885, %s36, 1
      %s887 = scalar_lea.vmem %s15, %s886
      %p888 = scmp.lt.s32.totalorder %s36, 1
      %s889 = scalar_select %p888, %s36, 1
      %s890 = smul.addr %s889, 8
      %s891 = smul.addr %s890, 8
      %s892 = scalar_lea.vmem %s16, %s891
      %p893 = scmp.lt.s32.totalorder %s36, 1
      %s894 = scalar_select %p893, %s36, 1
      %s895 = scalar_lea.vmem %s17, %s894
      %p896 = scmp.lt.s32.totalorder %s36, 1
      %s897 = scalar_select %p896, %s36, 1
      %s898 = scalar_lea.vmem %s18, %s897
      %p899 = scmp.lt.s32.totalorder %s36, 1
      %s900 = scalar_select %p899, %s36, 1
      %s901 = scalar_lea.vmem %s19, %s900
      %p902 = scmp.lt.s32.totalorder %s35, 1
      %s903 = scalar_select %p902, %s35, 1
      %s904 = smul.addr %s903, 8
      %s905 = scalar_lea.vmem %s20, %s904
      %p906 = scmp.eq.s32.totalorder %s36, 0
      // Predicated region
      $region101: #{csiformer_student_forward.2} parent=99 // pred_check
        %p907 = pneg %p906
      $region102: #{csiformer_student_forward.2} parent=99 // pred_check_branch
        %909 = sbr.rel (%p907) target = $region104
      $region103: #{csiformer_student_forward.2} parent=99 // pred_region
        %v910 = vld [vmem:[%s838] sm:$0xff]
        %v911 = vld [vmem:[%s1] sm:$0xff]
        %v912 = vld [vmem:[%s2] sm:$0x1]
        %v914 = vperm.slane %v912, 0
        %vm916 = vcmask 64512
        %v918 = vsel %vm916, %v910, 0
        %920 = vmatpush.msra.mxu0 0.0
        %921 = vmatpush.msra.mxu0 0.0
        %922 = vmatpush.msra.mxu0 0.0
        %923 = vmatpush.msra.mxu0 0.0
        %924 = vmatpush.msra.mxu0 0.0
        %925 = vmatpush.msra.mxu0 0.0
        %926 = vmatpush.msra.mxu0 0.0
        %927 = vmatpush.msra.mxu0 0.0
        %928 = vmatpush.msra.mxu0 0.0
        %929 = vmatpush.msra.mxu0 0.0
        %930 = vmatpush.msra.mxu0 0.0
        %931 = vmatpush.msra.mxu0 0.0
        %932 = vmatpush.msra.mxu0 0.0
        %933 = vmatpush.msra.mxu0 0.0
        %934 = vmatpush.msra.mxu0 0.0
        %935 = vmatpush.msra.mxu0 %v911
        %936 = vmatmul.f32.gmra.mxu0 %v918
        %v937 = vpop.f32.mrf.mxu0
        %v938 = vadd.f32 %v914, %v937
        %939 = vdwg.mxu0
        %v940 = vld [vmem:[%s3] sm:$0xff]
        %v941 = vadd.f32 %v938, %v940
        %vm942 = vcmask 261120
        %943 = vst.msk [vmem:[#allocation2] sm:$0xff] %vm942, %v941
      $region104: #{csiformer_student_forward.2} parent=99 // pred_fallthru
        _
      %v944 = vld [vmem:[#allocation2] sm:$0xff]
      %v945 = vld [vmem:[%s843] sm:$0xff]
      %v946 = vld [vmem:[%s843 + $0x8] sm:$0xff]
      %v947 = vld [vmem:[%s843 + $0x10] sm:$0xff]
      %v948 = vld [vmem:[%s843 + $0x18] sm:$0xff]
      %v949 = vld [vmem:[%s857] sm:$0x1]
      %v951 = vperm.slane %v949, 0
      %vm953 = vcmask 261120
      %v955 = vsel %vm953, %v944, 0
      %957 = vmatpush.msra.mxu0 0.0
      %958 = vmatpush.msra.mxu0 0.0
      %959 = vmatpush.msra.mxu0 0.0
      %960 = vmatpush.msra.mxu0 0.0
      %961 = vmatpush.msra.mxu0 0.0
      %962 = vmatpush.msra.mxu0 0.0
      %963 = vmatpush.msra.mxu0 0.0
      %964 = vmatpush.msra.mxu0 0.0
      %965 = vmatpush.msra.mxu0 0.0
      %966 = vmatpush.msra.mxu0 0.0
      %967 = vmatpush.msra.mxu0 0.0
      %968 = vmatpush.msra.mxu0 0.0
      %969 = vmatpush.msra.mxu0 %v948
      %970 = vmatpush.msra.mxu0 %v947
      %971 = vmatpush.msra.mxu0 %v946
      %972 = vmatpush.msra.mxu0 %v945
      %973 = vmatmul.f32.gmra.mxu0 %v955
      %v974 = vpop.f32.mrf.mxu0
      %v975 = vadd.f32 %v951, %v974
      %976 = vdwg.mxu0
      %v977 = vld [vmem:[%s848] sm:$0xff]
      %v978 = vld [vmem:[%s848 + $0x8] sm:$0xff]
      %v979 = vld [vmem:[%s848 + $0x10] sm:$0xff]
      %v980 = vld [vmem:[%s848 + $0x18] sm:$0xff]
      %v981 = vld [vmem:[%s861] sm:$0x1]
      %v983 = vperm.slane %v981, 0
      %985 = vmatpush.msra.mxu0 0.0
      %986 = vmatpush.msra.mxu0 0.0
      %987 = vmatpush.msra.mxu0 0.0
      %988 = vmatpush.msra.mxu0 0.0
      %989 = vmatpush.msra.mxu0 0.0
      %990 = vmatpush.msra.mxu0 0.0
      %991 = vmatpush.msra.mxu0 0.0
      %992 = vmatpush.msra.mxu0 0.0
      %993 = vmatpush.msra.mxu0 0.0
      %994 = vmatpush.msra.mxu0 0.0
      %995 = vmatpush.msra.mxu0 0.0
      %996 = vmatpush.msra.mxu0 0.0
      %997 = vmatpush.msra.mxu0 %v980
      %998 = vmatpush.msra.mxu0 %v979
      %999 = vmatpush.msra.mxu0 %v978
      %1000 = vmatpush.msra.mxu0 %v977
      %1001 = vmatmul.f32.gmra.mxu0 %v955
      %v1002 = vpop.f32.mrf.mxu0
      %v1003 = vadd.f32 %v983, %v1002
      %1004 = vdwg.mxu0
      %v1005 = vld [vmem:[%s853] sm:$0xff]
      %v1006 = vld [vmem:[%s853 + $0x8] sm:$0xff]
      %v1007 = vld [vmem:[%s853 + $0x10] sm:$0xff]
      %v1008 = vld [vmem:[%s853 + $0x18] sm:$0xff]
      %v1009 = vld [vmem:[%s865] sm:$0x1]
      %v1011 = vperm.slane %v1009, 0
      %1013 = vmatpush.msra.mxu0 0.0
      %1014 = vmatpush.msra.mxu0 0.0
      %1015 = vmatpush.msra.mxu0 0.0
      %1016 = vmatpush.msra.mxu0 0.0
      %1017 = vmatpush.msra.mxu0 0.0
      %1018 = vmatpush.msra.mxu0 0.0
      %1019 = vmatpush.msra.mxu0 0.0
      %1020 = vmatpush.msra.mxu0 0.0
      %1021 = vmatpush.msra.mxu0 0.0
      %1022 = vmatpush.msra.mxu0 0.0
      %1023 = vmatpush.msra.mxu0 0.0
      %1024 = vmatpush.msra.mxu0 0.0
      %1025 = vmatpush.msra.mxu0 %v1008
      %1026 = vmatpush.msra.mxu0 %v1007
      %1027 = vmatpush.msra.mxu0 %v1006
      %1028 = vmatpush.msra.mxu0 %v1005
      %1029 = vmatmul.f32.gmra.mxu0 %v955
      %v1030 = vpop.f32.mrf.mxu0
      %v1031 = vadd.f32 %v1011, %v1030
      %1032 = vdwg.mxu0
      %vm1033 = vcmask 130048
      %v1035 = vsel %vm1033, %v975, 0
      %v1038 = vsel %vm1033, %v1003, 0
      %1040 = vmatpush.xpose.msra.mxu0 0.0
      %1041 = vmatpush.xpose.msra.mxu0 0.0
      %1042 = vmatpush.xpose.msra.mxu0 0.0
      %1043 = vmatpush.xpose.msra.mxu0 0.0
      %1044 = vmatpush.xpose.msra.mxu0 0.0
      %1045 = vmatpush.xpose.msra.mxu0 0.0
      %1046 = vmatpush.xpose.msra.mxu0 0.0
      %1047 = vmatpush.xpose.msra.mxu0 0.0
      %1048 = vmatpush.xpose.msra.mxu0 0.0
      %1049 = vmatpush.xpose.msra.mxu0 0.0
      %1050 = vmatpush.xpose.msra.mxu0 0.0
      %1051 = vmatpush.xpose.msra.mxu0 0.0
      %1052 = vmatpush.xpose.msra.mxu0 0.0
      %1053 = vmatpush.xpose.msra.mxu0 0.0
      %1054 = vmatpush.xpose.msra.mxu0 0.0
      %1055 = vmatpush.xpose.msra.mxu0 %v1038
      %1056 = vmatmul.f32.gmra.mxu0 %v1035
      %v1057 = vpop.f32.mrf.mxu0
      %v1058 = vadd.f32 0.0, %v1057
      %1059 = vdwg.mxu0
      %v1060 = vmul.f32 %v1058, 0.25
      %vm1061 = vcmask 64512
      %v1062 = vsel %vm1061, %v1060, -inf
      %1063 = vmax.xlane.f32.xlu0 %v1062
      %v1064 = vpop.xlane.xlu0 %1063
      %v1065 = vsub.f32 %v1060, %v1064
      %v1066 = vmul.f32 %v1065, 1.442695
      %v1067 = vpow.pop %v1066
      %v1068 = vsel %vm1061, %v1067, 0.0
      %1069 = vadd.xlane.f32.xlu0 %v1068
      %v1070 = vpop.xlane.xlu0 %1069
      %v1071 = vrcp.pop %v1070
      %v1072 = vmul.f32 %v1070, %v1071
      %v1073 = vsub.f32 1.0, %v1072
      %v1074 = vmul.f32 %v1071, %v1073
      %v1075 = vadd.f32 %v1071, %v1074
      %vm1076 = vweird.f32 %v1070
      %vm1077 = vweird.f32 %v1071
      %vm1078 = vmor %vm1076, %vm1077
      %v1079 = vsel %vm1078, %v1071, %v1075
      %v1080 = vand.u32 2147483647, %v1070
      %vm1081 = vcmp.eq.f32.partialorder %v1080, 8.507059e+37
      %v1082 = vand.u32 %v1070, 2147483648
      %v1083 = vor.u32 1.1754944e-38, %v1082
      %v1084 = vsel %vm1081, %v1083, %v1079
      %v1085 = vmul.f32 %v1067, %v1084
      %v1087 = vsel %vm1061, %v1085, 0
      %1089 = vmatpush.msra.mxu0 0.0
      %1090 = vmatpush.msra.mxu0 0.0
      %1091 = vmatpush.msra.mxu0 0.0
      %1092 = vmatpush.msra.mxu0 0.0
      %1093 = vmatpush.msra.mxu0 0.0
      %1094 = vmatpush.msra.mxu0 0.0
      %1095 = vmatpush.msra.mxu0 0.0
      %1096 = vmatpush.msra.mxu0 0.0
      %1097 = vmatpush.msra.mxu0 0.0
      %1098 = vmatpush.msra.mxu0 0.0
      %1099 = vmatpush.msra.mxu0 0.0
      %1100 = vmatpush.msra.mxu0 0.0
      %1101 = vmatpush.msra.mxu0 0.0
      %1102 = vmatpush.msra.mxu0 0.0
      %1103 = vmatpush.msra.mxu0 0.0
      %1104 = vmatpush.msra.mxu0 %v1031
      %1105 = vmatmul.f32.gmra.mxu0 %v1087
      %v1106 = vpop.f32.mrf.mxu0
      %v1107 = vadd.f32 0.0, %v1106
      %1108 = vdwg.mxu0
      %v1109 = vld [vmem:[%s870] sm:$0xff]
      %v1110 = vld [vmem:[%s870 + $0x8] sm:$0xff]
      %s1111 = scalar_lea.vmem %s843, 32
      %v1112 = vld [vmem:[%s1111] sm:$0xff]
      %v1113 = vld [vmem:[%s1111 + $0x8] sm:$0xff]
      %v1114 = vld [vmem:[%s1111 + $0x10] sm:$0xff]
      %v1115 = vld [vmem:[%s1111 + $0x18] sm:$0xff]
      %s1116 = scalar_lea.vmem %s857, 1
      %v1117 = vld [vmem:[%s1116] sm:$0x1]
      %v1119 = vperm.slane %v1117, 0
      %1121 = vmatpush.msra.mxu0 0.0
      %1122 = vmatpush.msra.mxu0 0.0
      %1123 = vmatpush.msra.mxu0 0.0
      %1124 = vmatpush.msra.mxu0 0.0
      %1125 = vmatpush.msra.mxu0 0.0
      %1126 = vmatpush.msra.mxu0 0.0
      %1127 = vmatpush.msra.mxu0 0.0
      %1128 = vmatpush.msra.mxu0 0.0
      %1129 = vmatpush.msra.mxu0 0.0
      %1130 = vmatpush.msra.mxu0 0.0
      %1131 = vmatpush.msra.mxu0 0.0
      %1132 = vmatpush.msra.mxu0 0.0
      %1133 = vmatpush.msra.mxu0 %v1115
      %1134 = vmatpush.msra.mxu0 %v1114
      %1135 = vmatpush.msra.mxu0 %v1113
      %1136 = vmatpush.msra.mxu0 %v1112
      %1137 = vmatmul.f32.gmra.mxu0 %v955
      %v1138 = vpop.f32.mrf.mxu0
      %v1139 = vadd.f32 %v1119, %v1138
      %1140 = vdwg.mxu0
      %s1141 = scalar_lea.vmem %s848, 32
      %v1142 = vld [vmem:[%s1141] sm:$0xff]
      %v1143 = vld [vmem:[%s1141 + $0x8] sm:$0xff]
      %v1144 = vld [vmem:[%s1141 + $0x10] sm:$0xff]
      %v1145 = vld [vmem:[%s1141 + $0x18] sm:$0xff]
      %s1146 = scalar_lea.vmem %s861, 1
      %v1147 = vld [vmem:[%s1146] sm:$0x1]
      %v1149 = vperm.slane %v1147, 0
      %1151 = vmatpush.msra.mxu0 0.0
      %1152 = vmatpush.msra.mxu0 0.0
      %1153 = vmatpush.msra.mxu0 0.0
      %1154 = vmatpush.msra.mxu0 0.0
      %1155 = vmatpush.msra.mxu0 0.0
      %1156 = vmatpush.msra.mxu0 0.0
      %1157 = vmatpush.msra.mxu0 0.0
      %1158 = vmatpush.msra.mxu0 0.0
      %1159 = vmatpush.msra.mxu0 0.0
      %1160 = vmatpush.msra.mxu0 0.0
      %1161 = vmatpush.msra.mxu0 0.0
      %1162 = vmatpush.msra.mxu0 0.0
      %1163 = vmatpush.msra.mxu0 %v1145
      %1164 = vmatpush.msra.mxu0 %v1144
      %1165 = vmatpush.msra.mxu0 %v1143
      %1166 = vmatpush.msra.mxu0 %v1142
      %1167 = vmatmul.f32.gmra.mxu0 %v955
      %v1168 = vpop.f32.mrf.mxu0
      %v1169 = vadd.f32 %v1149, %v1168
      %1170 = vdwg.mxu0
      %s1171 = scalar_lea.vmem %s853, 32
      %v1172 = vld [vmem:[%s1171] sm:$0xff]
      %v1173 = vld [vmem:[%s1171 + $0x8] sm:$0xff]
      %v1174 = vld [vmem:[%s1171 + $0x10] sm:$0xff]
      %v1175 = vld [vmem:[%s1171 + $0x18] sm:$0xff]
      %s1176 = scalar_lea.vmem %s865, 1
      %v1177 = vld [vmem:[%s1176] sm:$0x1]
      %v1179 = vperm.slane %v1177, 0
      %1181 = vmatpush.msra.mxu0 0.0
      %1182 = vmatpush.msra.mxu0 0.0
      %1183 = vmatpush.msra.mxu0 0.0
      %1184 = vmatpush.msra.mxu0 0.0
      %1185 = vmatpush.msra.mxu0 0.0
      %1186 = vmatpush.msra.mxu0 0.0
      %1187 = vmatpush.msra.mxu0 0.0
      %1188 = vmatpush.msra.mxu0 0.0
      %1189 = vmatpush.msra.mxu0 0.0
      %1190 = vmatpush.msra.mxu0 0.0
      %1191 = vmatpush.msra.mxu0 0.0
      %1192 = vmatpush.msra.mxu0 0.0
      %1193 = vmatpush.msra.mxu0 %v1175
      %1194 = vmatpush.msra.mxu0 %v1174
      %1195 = vmatpush.msra.mxu0 %v1173
      %1196 = vmatpush.msra.mxu0 %v1172
      %1197 = vmatmul.f32.gmra.mxu0 %v955
      %v1198 = vpop.f32.mrf.mxu0
      %v1199 = vadd.f32 %v1179, %v1198
      %1200 = vdwg.mxu0
      %v1202 = vsel %vm1033, %v1139, 0
      %v1205 = vsel %vm1033, %v1169, 0
      %1207 = vmatpush.xpose.msra.mxu0 0.0
      %1208 = vmatpush.xpose.msra.mxu0 0.0
      %1209 = vmatpush.xpose.msra.mxu0 0.0
      %1210 = vmatpush.xpose.msra.mxu0 0.0
      %1211 = vmatpush.xpose.msra.mxu0 0.0
      %1212 = vmatpush.xpose.msra.mxu0 0.0
      %1213 = vmatpush.xpose.msra.mxu0 0.0
      %1214 = vmatpush.xpose.msra.mxu0 0.0
      %1215 = vmatpush.xpose.msra.mxu0 0.0
      %1216 = vmatpush.xpose.msra.mxu0 0.0
      %1217 = vmatpush.xpose.msra.mxu0 0.0
      %1218 = vmatpush.xpose.msra.mxu0 0.0
      %1219 = vmatpush.xpose.msra.mxu0 0.0
      %1220 = vmatpush.xpose.msra.mxu0 0.0
      %1221 = vmatpush.xpose.msra.mxu0 0.0
      %1222 = vmatpush.xpose.msra.mxu0 %v1205
      %1223 = vmatmul.f32.gmra.mxu0 %v1202
      %v1224 = vpop.f32.mrf.mxu0
      %v1225 = vadd.f32 0.0, %v1224
      %1226 = vdwg.mxu0
      %v1227 = vmul.f32 %v1225, 0.25
      %v1228 = vsel %vm1061, %v1227, -inf
      %1229 = vmax.xlane.f32.xlu0 %v1228
      %v1230 = vpop.xlane.xlu0 %1229
      %v1231 = vsub.f32 %v1227, %v1230
      %v1232 = vmul.f32 %v1231, 1.442695
      %v1233 = vpow.pop %v1232
      %v1234 = vsel %vm1061, %v1233, 0.0
      %1235 = vadd.xlane.f32.xlu0 %v1234
      %v1236 = vpop.xlane.xlu0 %1235
      %v1237 = vrcp.pop %v1236
      %v1238 = vmul.f32 %v1236, %v1237
      %v1239 = vsub.f32 1.0, %v1238
      %v1240 = vmul.f32 %v1237, %v1239
      %v1241 = vadd.f32 %v1237, %v1240
      %vm1242 = vweird.f32 %v1236
      %vm1243 = vweird.f32 %v1237
      %vm1244 = vmor %vm1242, %vm1243
      %v1245 = vsel %vm1244, %v1237, %v1241
      %v1246 = vand.u32 2147483647, %v1236
      %vm1247 = vcmp.eq.f32.partialorder %v1246, 8.507059e+37
      %v1248 = vand.u32 %v1236, 2147483648
      %v1249 = vor.u32 1.1754944e-38, %v1248
      %v1250 = vsel %vm1247, %v1249, %v1245
      %v1251 = vmul.f32 %v1233, %v1250
      %v1253 = vsel %vm1061, %v1251, 0
      %1255 = vmatpush.msra.mxu0 0.0
      %1256 = vmatpush.msra.mxu0 0.0
      %1257 = vmatpush.msra.mxu0 0.0
      %1258 = vmatpush.msra.mxu0 0.0
      %1259 = vmatpush.msra.mxu0 0.0
      %1260 = vmatpush.msra.mxu0 0.0
      %1261 = vmatpush.msra.mxu0 0.0
      %1262 = vmatpush.msra.mxu0 0.0
      %1263 = vmatpush.msra.mxu0 0.0
      %1264 = vmatpush.msra.mxu0 0.0
      %1265 = vmatpush.msra.mxu0 0.0
      %1266 = vmatpush.msra.mxu0 0.0
      %1267 = vmatpush.msra.mxu0 0.0
      %1268 = vmatpush.msra.mxu0 0.0
      %1269 = vmatpush.msra.mxu0 0.0
      %1270 = vmatpush.msra.mxu0 %v1199
      %1271 = vmatmul.f32.gmra.mxu0 %v1253
      %v1272 = vpop.f32.mrf.mxu0
      %v1273 = vadd.f32 0.0, %v1272
      %1274 = vdwg.mxu0
      %s1275 = scalar_lea.vmem %s870, 16
      %v1276 = vld [vmem:[%s1275] sm:$0xff]
      %v1277 = vld [vmem:[%s1275 + $0x8] sm:$0xff]
      %v1279 = vsel %vm1033, %v1273, 0
      %1281 = vmatpush.msra.mxu0 0.0
      %1282 = vmatpush.msra.mxu0 0.0
      %1283 = vmatpush.msra.mxu0 0.0
      %1284 = vmatpush.msra.mxu0 0.0
      %1285 = vmatpush.msra.mxu0 0.0
      %1286 = vmatpush.msra.mxu0 0.0
      %1287 = vmatpush.msra.mxu0 0.0
      %1288 = vmatpush.msra.mxu0 0.0
      %1289 = vmatpush.msra.mxu0 0.0
      %1290 = vmatpush.msra.mxu0 0.0
      %1291 = vmatpush.msra.mxu0 0.0
      %1292 = vmatpush.msra.mxu0 0.0
      %1293 = vmatpush.msra.mxu0 0.0
      %1294 = vmatpush.msra.mxu0 0.0
      %1295 = vmatpush.msra.mxu0 %v1277
      %1296 = vmatpush.msra.mxu0 %v1276
      %1297 = vmatmul.f32.gmra.mxu0 %v1279
      %v1298 = vpop.f32.mrf.mxu0
      %v1299 = vadd.f32 0.0, %v1298
      %1300 = vdwg.mxu0
      %v1302 = vsel %vm1033, %v1107, 0
      %1304 = vmatpush.msra.mxu0 0.0
      %1305 = vmatpush.msra.mxu0 0.0
      %1306 = vmatpush.msra.mxu0 0.0
      %1307 = vmatpush.msra.mxu0 0.0
      %1308 = vmatpush.msra.mxu0 0.0
      %1309 = vmatpush.msra.mxu0 0.0
      %1310 = vmatpush.msra.mxu0 0.0
      %1311 = vmatpush.msra.mxu0 0.0
      %1312 = vmatpush.msra.mxu0 0.0
      %1313 = vmatpush.msra.mxu0 0.0
      %1314 = vmatpush.msra.mxu0 0.0
      %1315 = vmatpush.msra.mxu0 0.0
      %1316 = vmatpush.msra.mxu0 0.0
      %1317 = vmatpush.msra.mxu0 0.0
      %1318 = vmatpush.msra.mxu0 %v1110
      %1319 = vmatpush.msra.mxu0 %v1109
      %1320 = vmatmul.f32.gmra.mxu0 %v1302
      %v1321 = vpop.f32.mrf.mxu0
      %v1322 = vadd.f32 %v1299, %v1321
      %1323 = vdwg.mxu0
      %v1324 = vld [vmem:[%s873] sm:$0x1]
      %v1326 = vperm.slane %v1324, 0
      %v1328 = vadd.f32 %v1322, %v1326
      %v1329 = vadd.f32 %v944, %v1328
      %v1330 = vld [vmem:[%s876] sm:$0x1]
      %v1331 = vld [vmem:[%s879] sm:$0x1]
      %v1332 = vsel %vm953, %v1329, 0.0
      %1333 = vadd.xlane.f32.xlu0 %v1332
      %v1334 = vpop.xlane.xlu0 %1333
      %v1335 = vrcp.pop 32.0
      %v1336 = vmul.f32 32.0, %v1335
      %v1337 = vsub.f32 1.0, %v1336
      %v1338 = vmul.f32 %v1335, %v1337
      %v1339 = vadd.f32 %v1335, %v1338
      %vm1340 = vweird.f32 %v1335
      %v1341 = vsel %vm1340, %v1335, %v1339
      %v1342 = vmul.f32 %v1334, %v1341
      %v1343 = vsub.f32 %v1329, %v1342
      %v1344 = vmul.f32 %v1343, %v1343
      %v1345 = vsel %vm953, %v1344, 0.0
      %1346 = vadd.xlane.f32.xlu0 %v1345
      %v1347 = vpop.xlane.xlu0 %1346
      %v1348 = vmul.f32 %v1347, %v1341
      %v1349 = vadd.f32 %v1348, 1e-05
      %v1350 = vrsqrt.pop %v1349
      %v1351 = vmul.f32 %v1350, %v1349
      %v1352 = vmul.f32 %v1351, %v1350
      %v1353 = vmul.f32 0.5, %v1352
      %v1354 = vsub.f32 1.5, %v1353
      %v1355 = vmul.f32 %v1350, %v1354
      %vm1356 = vweird.f32 %v1349
      %vm1357 = vweird.f32 %v1350
      %vm1358 = vmor %vm1356, %vm1357
      %v1359 = vsel %vm1358, %v1350, %v1355
      %v1360 = vmul.f32 %v1343, %v1359
      %v1362 = vperm.slane %v1330, 0
      %v1364 = vmul.f32 %v1360, %v1362
      %v1366 = vperm.slane %v1331, 0
      %v1368 = vadd.f32 %v1364, %v1366
      %v1369 = vld [vmem:[%s884] sm:$0xff]
      %v1370 = vld [vmem:[%s884 + $0x8] sm:$0xff]
      %v1371 = vld [vmem:[%s884 + $0x10] sm:$0xff]
      %v1372 = vld [vmem:[%s884 + $0x18] sm:$0xff]
      %v1373 = vld [vmem:[%s887] sm:$0x1]
      %v1375 = vperm.slane %v1373, 0
      %v1378 = vsel %vm953, %v1368, 0
      %1380 = vmatpush.msra.mxu0 0.0
      %1381 = vmatpush.msra.mxu0 0.0
      %1382 = vmatpush.msra.mxu0 0.0
      %1383 = vmatpush.msra.mxu0 0.0
      %1384 = vmatpush.msra.mxu0 0.0
      %1385 = vmatpush.msra.mxu0 0.0
      %1386 = vmatpush.msra.mxu0 0.0
      %1387 = vmatpush.msra.mxu0 0.0
      %1388 = vmatpush.msra.mxu0 0.0
      %1389 = vmatpush.msra.mxu0 0.0
      %1390 = vmatpush.msra.mxu0 0.0
      %1391 = vmatpush.msra.mxu0 0.0
      %1392 = vmatpush.msra.mxu0 %v1372
      %1393 = vmatpush.msra.mxu0 %v1371
      %1394 = vmatpush.msra.mxu0 %v1370
      %1395 = vmatpush.msra.mxu0 %v1369
      %1396 = vmatmul.f32.gmra.mxu0 %v1378
      %v1397 = vpop.f32.mrf.mxu0
      %v1398 = vadd.f32 %v1375, %v1397
      %1399 = vdwg.mxu0
      %v1400 = vmax.f32 %v1398, 0.0
      %v1401 = vld [vmem:[%s892] sm:$0xff]
      %v1402 = vld [vmem:[%s892 + $0x8] sm:$0xff]
      %v1403 = vld [vmem:[%s892 + $0x10] sm:$0xff]
      %v1404 = vld [vmem:[%s892 + $0x18] sm:$0xff]
      %v1405 = vld [vmem:[%s892 + $0x20] sm:$0xff]
      %v1406 = vld [vmem:[%s892 + $0x28] sm:$0xff]
      %v1407 = vld [vmem:[%s892 + $0x30] sm:$0xff]
      %v1408 = vld [vmem:[%s892 + $0x38] sm:$0xff]
      %v1409 = vld [vmem:[%s895] sm:$0x1]
      %v1411 = vperm.slane %v1409, 0
      %vm1413 = vcmask 523264
      %v1415 = vsel %vm1413, %v1400, 0
      %1417 = vmatpush.msra.mxu0 0.0
      %1418 = vmatpush.msra.mxu0 0.0
      %1419 = vmatpush.msra.mxu0 0.0
      %1420 = vmatpush.msra.mxu0 0.0
      %1421 = vmatpush.msra.mxu0 0.0
      %1422 = vmatpush.msra.mxu0 0.0
      %1423 = vmatpush.msra.mxu0 0.0
      %1424 = vmatpush.msra.mxu0 0.0
      %1425 = vmatpush.msra.mxu0 %v1408
      %1426 = vmatpush.msra.mxu0 %v1407
      %1427 = vmatpush.msra.mxu0 %v1406
      %1428 = vmatpush.msra.mxu0 %v1405
      %1429 = vmatpush.msra.mxu0 %v1404
      %1430 = vmatpush.msra.mxu0 %v1403
      %1431 = vmatpush.msra.mxu0 %v1402
      %1432 = vmatpush.msra.mxu0 %v1401
      %1433 = vmatmul.f32.gmra.mxu0 %v1415
      %v1434 = vpop.f32.mrf.mxu0
      %v1435 = vadd.f32 %v1411, %v1434
      %1436 = vdwg.mxu0
      %v1437 = vadd.f32 %v1368, %v1435
      %v1438 = vld [vmem:[%s898] sm:$0x1]
      %v1439 = vld [vmem:[%s901] sm:$0x1]
      %v1440 = vsel %vm953, %v1437, 0.0
      %1441 = vadd.xlane.f32.xlu0 %v1440
      %v1442 = vpop.xlane.xlu0 %1441
      %v1443 = vmul.f32 %v1442, %v1341
      %v1444 = vsub.f32 %v1437, %v1443
      %v1445 = vmul.f32 %v1444, %v1444
      %v1446 = vsel %vm953, %v1445, 0.0
      %1447 = vadd.xlane.f32.xlu0 %v1446
      %v1448 = vpop.xlane.xlu0 %1447
      %v1449 = vmul.f32 %v1448, %v1341
      %v1450 = vadd.f32 %v1449, 1e-05
      %v1451 = vrsqrt.pop %v1450
      %v1452 = vmul.f32 %v1451, %v1450
      %v1453 = vmul.f32 %v1452, %v1451
      %v1454 = vmul.f32 0.5, %v1453
      %v1455 = vsub.f32 1.5, %v1454
      %v1456 = vmul.f32 %v1451, %v1455
      %vm1457 = vweird.f32 %v1450
      %vm1458 = vweird.f32 %v1451
      %vm1459 = vmor %vm1457, %vm1458
      %v1460 = vsel %vm1459, %v1451, %v1456
      %v1461 = vmul.f32 %v1444, %v1460
      %v1463 = vperm.slane %v1438, 0
      %v1465 = vmul.f32 %v1461, %v1463
      %v1467 = vperm.slane %v1439, 0
      %v1469 = vadd.f32 %v1465, %v1467
      %1470 = vst.msk [vmem:[#allocation2] sm:$0xff] %vm953, %v1469
      %p1471 = scmp.eq.s32.totalorder %s36, 1
      // Predicated region
      $region105: #{csiformer_student_forward.2} parent=99 // pred_check
        %p1472 = pneg %p1471
      $region106: #{csiformer_student_forward.2} parent=99 // pred_check_branch
        %1474 = sbr.rel (%p1472) target = $region108
      $region107: #{csiformer_student_forward.2} parent=99 // pred_region
        %1475 = vst.msk [vmem:[%s905] sm:$0xff] %vm953, %v1469
      $region108: #{csiformer_student_forward.2} parent=99 // pred_fallthru
        _
      %p1476 = scmp.lt.s32.totalorder %s35, 1
      %s1477 = scalar_select %p1476, %s35, 1
      %s1478 = smul.addr %s1477, 8
      %s1479 = scalar_lea.vmem %s20, %s1478
      // Predicated region
      $region109: #{csiformer_student_forward.2} parent=99 // pred_check
        %p1480 = pneg %p566
      $region110: #{csiformer_student_forward.2} parent=99 // pred_check_branch
        %1482 = sbr.rel (%p1480) target = $region112
      $region111: #{csiformer_student_forward.2} parent=99 // pred_region
        _
      $region112: #{csiformer_student_forward.2} parent=99 // pred_fallthru
        _
    $region100: #{csiformer_student_forward.2} parent=5 // pred_fallthru
      _
    %p1483 = scmp.le.s32.totalorder 2, %s26
    // Predicated region
    $region113: #{csiformer_student_forward.2} parent=5 // pred_check
      %p1484 = pneg %p1483
    $region114: #{csiformer_student_forward.2} parent=5 // pred_check_branch
      %1486 = sbr.rel (%p1484) target = $region116
    $region115: #{csiformer_student_forward.2} parent=5 // pred_region
      %s1487 = ssub.s32 %s26, 2
      // Predicated region
      $region117: #{csiformer_student_forward.2} parent=115 // pred_check
        %p1488 = pneg %p572
      $region118: #{csiformer_student_forward.2} parent=115 // pred_check_branch
        %1490 = sbr.rel (%p1488) target = $region120
      $region119: #{csiformer_student_forward.2} parent=115 // pred_region
        %p1491 = scmp.lt.s32.totalorder %s37, 1
        %s1492 = scalar_select %p1491, %s37, 1
        %s1493 = smul.addr %s1492, 8
        %s1494 = scalar_lea.vmem %s20, %s1493
      $region120: #{csiformer_student_forward.2} parent=115 // pred_fallthru
        _
    $region116: #{csiformer_student_forward.2} parent=5 // pred_fallthru
      _
  $region6: #{csiformer_student_forward.2} parent=0 // loop_footer
    %s30 = sadd.s32 1, %s26
  $region7: #{csiformer_student_forward.2} parent=0 // loop_footer_branch
    %25 = sbr.rel target = $region3
  $region8: #{csiformer_student_forward.2} parent=0 // loop_exit
    _

// kernel: csiformer_student_forward.3
$region0: #{csiformer_student_forward.3}
  #allocation0 [shape = 'u32[]', space=smem, size = 0x4, offset = 0x4, fixed_abs, tag = 'smem constant byte address 0x4 - core index']
  #allocation1 [shape = 'u32[72,128]{1,0:T(1,128)}', space=vmem, size = 0x9000, scoped, tag = 'internal scratch']
  #allocation2 [shape = 'f32[8,32]{1,0:T(8,128)}', space=vmem, size = 0x1000, scoped, tag = 'scratch operand']
  #allocation3 [shape = 'f32[16,32]{1,0:T(8,128)}', space=vmem, size = 0x2000, scoped, tag = 'scratch operand']
  %s0 = inlined_call_operand.smem [shape: u32[35], index: -1, kind: input, shape index: {}]
  %s1 = sld [smem:[%s0]]
  %s2 = scalar_lea.smem %s0, 1
  %s3 = sld [smem:[%s2]]
  %s4 = scalar_lea.smem %s0, 2
  %s5 = sld [smem:[%s4]]
  %s6 = scalar_lea.smem %s0, 3
  %s7 = sld [smem:[%s6]]
  %s8 = scalar_lea.smem %s0, 4
  %s9 = sld [smem:[%s8]]
  %s10 = scalar_lea.smem %s0, 5
  %s11 = sld [smem:[%s10]]
  %s12 = scalar_lea.smem %s0, 6
  %s13 = sld [smem:[%s12]]
  %s14 = scalar_lea.smem %s0, 7
  %s15 = sld [smem:[%s14]]
  %s16 = scalar_lea.smem %s0, 8
  %s17 = sld [smem:[%s16]]
  %s18 = scalar_lea.smem %s0, 9
  %s19 = sld [smem:[%s18]]
  %s20 = scalar_lea.smem %s0, 10
  %s21 = sld [smem:[%s20]]
  %s22 = scalar_lea.smem %s0, 11
  %s23 = sld [smem:[%s22]]
  %s24 = scalar_lea.smem %s0, 12
  %s25 = sld [smem:[%s24]]
  %s26 = scalar_lea.smem %s0, 13
  %s27 = sld [smem:[%s26]]
  %s28 = scalar_lea.smem %s0, 14
  %s29 = sld [smem:[%s28]]
  %s30 = scalar_lea.smem %s0, 15
  %s31 = sld [smem:[%s30]]
  %s32 = scalar_lea.smem %s0, 16
  %s33 = sld [smem:[%s32]]
  %s34 = scalar_lea.smem %s0, 17
  %s35 = sld [smem:[%s34]]
  %s36 = scalar_lea.smem %s0, 18
  %s37 = sld [smem:[%s36]]
  %s38 = scalar_lea.smem %s0, 19
  %s39 = sld [smem:[%s38]]
  %s40 = scalar_lea.smem %s0, 20
  %s41 = sld [smem:[%s40]]
  %s42 = scalar_lea.smem %s0, 21
  %s43 = sld [smem:[%s42]]
  %s44 = scalar_lea.smem %s0, 22
  %s45 = sld [smem:[%s44]]
  %s46 = scalar_lea.smem %s0, 23
  %s47 = sld [smem:[%s46]]
  %s48 = scalar_lea.smem %s0, 24
  %s49 = sld [smem:[%s48]]
  %s50 = scalar_lea.smem %s0, 25
  %s51 = sld [smem:[%s50]]
  %s52 = scalar_lea.smem %s0, 26
  %s53 = sld [smem:[%s52]]
  %s54 = scalar_lea.smem %s0, 27
  %s55 = sld [smem:[%s54]]
  %s56 = scalar_lea.smem %s0, 28
  %s57 = sld [smem:[%s56]]
  %s58 = scalar_lea.smem %s0, 29
  %s59 = sld [smem:[%s58]]
  %s60 = scalar_lea.smem %s0, 30
  %s61 = sld [smem:[%s60]]
  %s62 = scalar_lea.smem %s0, 31
  %s63 = sld [smem:[%s62]]
  %s64 = scalar_lea.smem %s0, 32
  %s65 = sld [smem:[%s64]]
  %s66 = scalar_lea.smem %s0, 33
  %s67 = sld [smem:[%s66]]
  %s68 = scalar_lea.smem %s0, 34
  %s69 = sld [smem:[%s68]]
  %s70 = sld [smem:[#allocation0]]
  $region177: #{csiformer_student_forward.3} parent=0
    _
  %s72 = ssub.s32 1, %s70
  %s73 = scalar_select 0, %s72, %s70
  loop: start=0, step=1, limit=6
  $region2: #{csiformer_student_forward.3} parent=0 // loop_pre_header
    _
  $region3: #{csiformer_student_forward.3} parent=0 // loop_header
    %s75 = sphi 0, %s79
    %p76 = scmp.ge.s32.totalorder %s75, 6
    %s82 = sphi 0, %s94
    %s83 = sphi 0, %s90
    %s84 = sphi 0, %s82
    %s85 = sphi 0, %s83
    %s86 = sphi 0, %s84
    %s87 = sphi 0, %s85
    %s97 = sphi 0, %s99
    %s100 = sphi 0, %s97
    %s101 = sphi 0, %s100
    %s117 = sphi 0, %s101
    %s121 = sphi 0, %s121
    %s123 = sphi 0, %s121
    %s124 = sphi 0, %s123
    %s138 = sphi 0, %s124
    %s144 = sphi 0, %s146
    %s147 = sphi 0, %s144
    %s148 = sphi 0, %s147
    %s164 = sphi 0, %s148
    %s168 = sphi 0, %s168
    %s170 = sphi 0, %s168
    %s171 = sphi 0, %s170
    %s185 = sphi 0, %s171
    %s189 = sphi 0, %s189
    %s191 = sphi 0, %s189
    %s192 = sphi 0, %s191
    %s206 = sphi 0, %s192
    %s210 = sphi 0, %s210
    %s212 = sphi 0, %s210
    %s213 = sphi 0, %s212
    %s227 = sphi 0, %s213
    %s233 = sphi 0, %s235
    %s236 = sphi 0, %s233
    %s237 = sphi 0, %s236
    %s253 = sphi 0, %s237
    %s259 = sphi 0, %s261
    %s262 = sphi 0, %s259
    %s263 = sphi 0, %s262
    %s279 = sphi 0, %s263
    %s285 = sphi 0, %s287
    %s288 = sphi 0, %s285
    %s289 = sphi 0, %s288
    %s305 = sphi 0, %s289
    %s311 = sphi 0, %s313
    %s314 = sphi 0, %s311
    %s315 = sphi 0, %s314
    %s331 = sphi 0, %s315
    %s337 = sphi 0, %s339
    %s340 = sphi 0, %s337
    %s341 = sphi 0, %s340
    %s357 = sphi 0, %s341
    %s363 = sphi 0, %s365
    %s366 = sphi 0, %s363
    %s367 = sphi 0, %s366
    %s383 = sphi 0, %s367
    %s389 = sphi 0, %s391
    %s392 = sphi 0, %s389
    %s393 = sphi 0, %s392
    %s409 = sphi 0, %s393
    %s415 = sphi 0, %s417
    %s418 = sphi 0, %s415
    %s419 = sphi 0, %s418
    %s435 = sphi 0, %s419
    %s441 = sphi 0, %s443
    %s444 = sphi 0, %s441
    %s445 = sphi 0, %s444
    %s461 = sphi 0, %s445
    %s467 = sphi 0, %s469
    %s470 = sphi 0, %s467
    %s471 = sphi 0, %s470
    %s487 = sphi 0, %s471
    %s493 = sphi 0, %s495
    %s496 = sphi 0, %s493
    %s497 = sphi 0, %s496
    %s513 = sphi 0, %s497
    %s519 = sphi 0, %s521
    %s522 = sphi 0, %s519
    %s523 = sphi 0, %s522
    %s539 = sphi 0, %s523
    %s545 = sphi 0, %s547
    %s548 = sphi 0, %s545
    %s549 = sphi 0, %s548
    %s565 = sphi 0, %s549
    %s571 = sphi 0, %s573
    %s574 = sphi 0, %s571
    %s575 = sphi 0, %s574
    %s591 = sphi 0, %s575
    %s597 = sphi 0, %s599
    %s600 = sphi 0, %s597
    %s601 = sphi 0, %s600
    %s617 = sphi 0, %s601
    %s623 = sphi 0, %s625
    %s626 = sphi 0, %s623
    %s627 = sphi 0, %s626
    %s643 = sphi 0, %s627
    %s649 = sphi 0, %s651
    %s652 = sphi 0, %s649
    %s653 = sphi 0, %s652
    %s669 = sphi 0, %s653
    %s675 = sphi 0, %s677
    %s678 = sphi 0, %s675
    %s679 = sphi 0, %s678
    %s695 = sphi 0, %s679
    %s701 = sphi 0, %s703
    %s704 = sphi 0, %s701
    %s705 = sphi 0, %s704
    %s721 = sphi 0, %s705
    %s727 = sphi 0, %s729
    %s730 = sphi 0, %s727
    %s731 = sphi 0, %s730
    %s747 = sphi 0, %s731
    %s753 = sphi 0, %s755
    %s756 = sphi 0, %s753
    %s757 = sphi 0, %s756
    %s773 = sphi 0, %s757
    %s779 = sphi 0, %s781
    %s782 = sphi 0, %s779
    %s783 = sphi 0, %s782
    %s799 = sphi 0, %s783
    %s805 = sphi 0, %s807
    %s808 = sphi 0, %s805
    %s809 = sphi 0, %s808
    %s825 = sphi 0, %s809
    %s831 = sphi 0, %s833
    %s834 = sphi 0, %s831
    %s835 = sphi 0, %s834
    %s851 = sphi 0, %s835
    %s857 = sphi 0, %s859
    %s860 = sphi 0, %s857
    %s861 = sphi 0, %s860
    %s877 = sphi 0, %s861
    %s883 = sphi 0, %s885
    %s886 = sphi 0, %s883
    %s887 = sphi 0, %s886
    %s903 = sphi 0, %s887
    %s907 = sphi 0, %s907
    %s909 = sphi 0, %s907
    %s910 = sphi 0, %s909
    %s924 = sphi 0, %s910
    %s928 = sphi 0, %s928
    %s930 = sphi 0, %s928
    %s931 = sphi 0, %s930
    %s945 = sphi 0, %s931
    %s951 = sphi 0, %s953
    %s954 = sphi 0, %s951
    %s955 = sphi 0, %s954
    %s971 = sphi 0, %s955
  $region4: #{csiformer_student_forward.3} parent=0 // loop_header_branch
    %78 = sbr.rel (%p76) target = $region8
  $region5: #{csiformer_student_forward.3} parent=0 // loop_body
    %s80 = ssub.s32 %s75, 1
    %s81 = ssub.s32 %s75, 2
    %s88 = sadd.s32 1, %s83
    %p89 = scmp.ge.s32.totalorder %s88, 2
    %s90 = scalar_select %p89, 0, %s88
    %s91 = sadd.s32 1, %s82
    %s92 = scalar_select %p89, %s91, %s82
    %p93 = scmp.ge.s32.totalorder %s92, 2
    %s94 = scalar_select %p93, 0, %s92
    %s95 = ssub.s32 %s82, %s94
    %p96 = scmp.eq.s32.totalorder %s95, 0
    %s98 = sadd.s32 %s97, 1
    %s99 = scalar_select %p96, %s97, %s98
    %p102 = pneg %p96
    %p103 = scmp.eq.s32.totalorder %s75, 3
    %p104 = por %p102, %p103
    %p105 = scmp.ne.s32.totalorder %s97, %s100
    %p106 = scmp.eq.s32.totalorder %s75, 0
    %p107 = por %p105, %p106
    %p108 = scmp.ne.s32.totalorder %s97, %s100
    %p109 = scmp.eq.s32.totalorder %s80, 3
    %p110 = por %p108, %p109
    %p111 = scmp.ne.s32.totalorder %s100, %s101
    %p112 = scmp.eq.s32.totalorder %s80, 0
    %p113 = por %p111, %p112
    %p114 = scmp.ne.s32.totalorder %s100, %s101
    %p115 = scmp.eq.s32.totalorder %s81, 3
    %p116 = por %p114, %p115
    %p118 = scmp.ne.s32.totalorder %s101, %s117
    %p119 = scmp.eq.s32.totalorder %s81, 0
    %p120 = por %p118, %p119
    %s122 = sadd.s32 %s121, 1
    %p125 = scmp.eq.s32.totalorder %s75, 3
    %p126 = scmp.ne.s32.totalorder %s121, %s123
    %p127 = scmp.eq.s32.totalorder %s75, 0
    %p128 = por %p126, %p127
    %p129 = scmp.ne.s32.totalorder %s121, %s123
    %p130 = scmp.eq.s32.totalorder %s80, 3
    %p131 = por %p129, %p130
    %p132 = scmp.ne.s32.totalorder %s123, %s124
    %p133 = scmp.eq.s32.totalorder %s80, 0
    %p134 = por %p132, %p133
    %p135 = scmp.ne.s32.totalorder %s123, %s124
    %p136 = scmp.eq.s32.totalorder %s81, 3
    %p137 = por %p135, %p136
    %p139 = scmp.ne.s32.totalorder %s124, %s138
    %p140 = scmp.eq.s32.totalorder %s81, 0
    %p141 = por %p139, %p140
    %s142 = ssub.s32 %s82, %s94
    %p143 = scmp.eq.s32.totalorder %s142, 0
    %s145 = sadd.s32 %s144, 1
    %s146 = scalar_select %p143, %s144, %s145
    %p149 = pneg %p143
    %p150 = scmp.eq.s32.totalorder %s75, 3
    %p151 = por %p149, %p150
    %p152 = scmp.ne.s32.totalorder %s144, %s147
    %p153 = scmp.eq.s32.totalorder %s75, 0
    %p154 = por %p152, %p153
    %p155 = scmp.ne.s32.totalorder %s144, %s147
    %p156 = scmp.eq.s32.totalorder %s80, 3
    %p157 = por %p155, %p156
    %p158 = scmp.ne.s32.totalorder %s147, %s148
    %p159 = scmp.eq.s32.totalorder %s80, 0
    %p160 = por %p158, %p159
    %p161 = scmp.ne.s32.totalorder %s147, %s148
    %p162 = scmp.eq.s32.totalorder %s81, 3
    %p163 = por %p161, %p162
    %p165 = scmp.ne.s32.totalorder %s148, %s164
    %p166 = scmp.eq.s32.totalorder %s81, 0
    %p167 = por %p165, %p166
    %s169 = sadd.s32 %s168, 1
    %p172 = scmp.eq.s32.totalorder %s75, 3
    %p173 = scmp.ne.s32.totalorder %s168, %s170
    %p174 = scmp.eq.s32.totalorder %s75, 0
    %p175 = por %p173, %p174
    %p176 = scmp.ne.s32.totalorder %s168, %s170
    %p177 = scmp.eq.s32.totalorder %s80, 3
    %p178 = por %p176, %p177
    %p179 = scmp.ne.s32.totalorder %s170, %s171
    %p180 = scmp.eq.s32.totalorder %s80, 0
    %p181 = por %p179, %p180
    %p182 = scmp.ne.s32.totalorder %s170, %s171
    %p183 = scmp.eq.s32.totalorder %s81, 3
    %p184 = por %p182, %p183
    %p186 = scmp.ne.s32.totalorder %s171, %s185
    %p187 = scmp.eq.s32.totalorder %s81, 0
    %p188 = por %p186, %p187
    %s190 = sadd.s32 %s189, 1
    %p193 = scmp.eq.s32.totalorder %s75, 3
    %p194 = scmp.ne.s32.totalorder %s189, %s191
    %p195 = scmp.eq.s32.totalorder %s75, 0
    %p196 = por %p194, %p195
    %p197 = scmp.ne.s32.totalorder %s189, %s191
    %p198 = scmp.eq.s32.totalorder %s80, 3
    %p199 = por %p197, %p198
    %p200 = scmp.ne.s32.totalorder %s191, %s192
    %p201 = scmp.eq.s32.totalorder %s80, 0
    %p202 = por %p200, %p201
    %p203 = scmp.ne.s32.totalorder %s191, %s192
    %p204 = scmp.eq.s32.totalorder %s81, 3
    %p205 = por %p203, %p204
    %p207 = scmp.ne.s32.totalorder %s192, %s206
    %p208 = scmp.eq.s32.totalorder %s81, 0
    %p209 = por %p207, %p208
    %s211 = sadd.s32 %s210, 1
    %p214 = scmp.eq.s32.totalorder %s75, 3
    %p215 = scmp.ne.s32.totalorder %s210, %s212
    %p216 = scmp.eq.s32.totalorder %s75, 0
    %p217 = por %p215, %p216
    %p218 = scmp.ne.s32.totalorder %s210, %s212
    %p219 = scmp.eq.s32.totalorder %s80, 3
    %p220 = por %p218, %p219
    %p221 = scmp.ne.s32.totalorder %s212, %s213
    %p222 = scmp.eq.s32.totalorder %s80, 0
    %p223 = por %p221, %p222
    %p224 = scmp.ne.s32.totalorder %s212, %s213
    %p225 = scmp.eq.s32.totalorder %s81, 3
    %p226 = por %p224, %p225
    %p228 = scmp.ne.s32.totalorder %s213, %s227
    %p229 = scmp.eq.s32.totalorder %s81, 0
    %p230 = por %p228, %p229
    %s231 = ssub.s32 %s83, %s90
    %p232 = scmp.eq.s32.totalorder %s231, 0
    %s234 = sadd.s32 %s233, 1
    %s235 = scalar_select %p232, %s233, %s234
    %p238 = pneg %p232
    %p239 = scmp.eq.s32.totalorder %s75, 3
    %p240 = por %p238, %p239
    %p241 = scmp.ne.s32.totalorder %s233, %s236
    %p242 = scmp.eq.s32.totalorder %s75, 0
    %p243 = por %p241, %p242
    %p244 = scmp.ne.s32.totalorder %s233, %s236
    %p245 = scmp.eq.s32.totalorder %s80, 3
    %p246 = por %p244, %p245
    %p247 = scmp.ne.s32.totalorder %s236, %s237
    %p248 = scmp.eq.s32.totalorder %s80, 0
    %p249 = por %p247, %p248
    %p250 = scmp.ne.s32.totalorder %s236, %s237
    %p251 = scmp.eq.s32.totalorder %s81, 3
    %p252 = por %p250, %p251
    %p254 = scmp.ne.s32.totalorder %s237, %s253
    %p255 = scmp.eq.s32.totalorder %s81, 0
    %p256 = por %p254, %p255
    %s257 = ssub.s32 %s83, %s90
    %p258 = scmp.eq.s32.totalorder %s257, 0
    %s260 = sadd.s32 %s259, 1
    %s261 = scalar_select %p258, %s259, %s260
    %p264 = pneg %p258
    %p265 = scmp.eq.s32.totalorder %s75, 3
    %p266 = por %p264, %p265
    %p267 = scmp.ne.s32.totalorder %s259, %s262
    %p268 = scmp.eq.s32.totalorder %s75, 0
    %p269 = por %p267, %p268
    %p270 = scmp.ne.s32.totalorder %s259, %s262
    %p271 = scmp.eq.s32.totalorder %s80, 3
    %p272 = por %p270, %p271
    %p273 = scmp.ne.s32.totalorder %s262, %s263
    %p274 = scmp.eq.s32.totalorder %s80, 0
    %p275 = por %p273, %p274
    %p276 = scmp.ne.s32.totalorder %s262, %s263
    %p277 = scmp.eq.s32.totalorder %s81, 3
    %p278 = por %p276, %p277
    %p280 = scmp.ne.s32.totalorder %s263, %s279
    %p281 = scmp.eq.s32.totalorder %s81, 0
    %p282 = por %p280, %p281
    %s283 = ssub.s32 %s83, %s90
    %p284 = scmp.eq.s32.totalorder %s283, 0
    %s286 = sadd.s32 %s285, 1
    %s287 = scalar_select %p284, %s285, %s286
    %p290 = pneg %p284
    %p291 = scmp.eq.s32.totalorder %s75, 3
    %p292 = por %p290, %p291
    %p293 = scmp.ne.s32.totalorder %s285, %s288
    %p294 = scmp.eq.s32.totalorder %s75, 0
    %p295 = por %p293, %p294
    %p296 = scmp.ne.s32.totalorder %s285, %s288
    %p297 = scmp.eq.s32.totalorder %s80, 3
    %p298 = por %p296, %p297
    %p299 = scmp.ne.s32.totalorder %s288, %s289
    %p300 = scmp.eq.s32.totalorder %s80, 0
    %p301 = por %p299, %p300
    %p302 = scmp.ne.s32.totalorder %s288, %s289
    %p303 = scmp.eq.s32.totalorder %s81, 3
    %p304 = por %p302, %p303
    %p306 = scmp.ne.s32.totalorder %s289, %s305
    %p307 = scmp.eq.s32.totalorder %s81, 0
    %p308 = por %p306, %p307
    %s309 = ssub.s32 %s83, %s90
    %p310 = scmp.eq.s32.totalorder %s309, 0
    %s312 = sadd.s32 %s311, 1
    %s313 = scalar_select %p310, %s311, %s312
    %p316 = pneg %p310
    %p317 = scmp.eq.s32.totalorder %s75, 3
    %p318 = por %p316, %p317
    %p319 = scmp.ne.s32.totalorder %s311, %s314
    %p320 = scmp.eq.s32.totalorder %s75, 0
    %p321 = por %p319, %p320
    %p322 = scmp.ne.s32.totalorder %s311, %s314
    %p323 = scmp.eq.s32.totalorder %s80, 3
    %p324 = por %p322, %p323
    %p325 = scmp.ne.s32.totalorder %s314, %s315
    %p326 = scmp.eq.s32.totalorder %s80, 0
    %p327 = por %p325, %p326
    %p328 = scmp.ne.s32.totalorder %s314, %s315
    %p329 = scmp.eq.s32.totalorder %s81, 3
    %p330 = por %p328, %p329
    %p332 = scmp.ne.s32.totalorder %s315, %s331
    %p333 = scmp.eq.s32.totalorder %s81, 0
    %p334 = por %p332, %p333
    %s335 = ssub.s32 %s83, %s90
    %p336 = scmp.eq.s32.totalorder %s335, 0
    %s338 = sadd.s32 %s337, 1
    %s339 = scalar_select %p336, %s337, %s338
    %p342 = pneg %p336
    %p343 = scmp.eq.s32.totalorder %s75, 3
    %p344 = por %p342, %p343
    %p345 = scmp.ne.s32.totalorder %s337, %s340
    %p346 = scmp.eq.s32.totalorder %s75, 0
    %p347 = por %p345, %p346
    %p348 = scmp.ne.s32.totalorder %s337, %s340
    %p349 = scmp.eq.s32.totalorder %s80, 3
    %p350 = por %p348, %p349
    %p351 = scmp.ne.s32.totalorder %s340, %s341
    %p352 = scmp.eq.s32.totalorder %s80, 0
    %p353 = por %p351, %p352
    %p354 = scmp.ne.s32.totalorder %s340, %s341
    %p355 = scmp.eq.s32.totalorder %s81, 3
    %p356 = por %p354, %p355
    %p358 = scmp.ne.s32.totalorder %s341, %s357
    %p359 = scmp.eq.s32.totalorder %s81, 0
    %p360 = por %p358, %p359
    %s361 = ssub.s32 %s83, %s90
    %p362 = scmp.eq.s32.totalorder %s361, 0
    %s364 = sadd.s32 %s363, 1
    %s365 = scalar_select %p362, %s363, %s364
    %p368 = pneg %p362
    %p369 = scmp.eq.s32.totalorder %s75, 3
    %p370 = por %p368, %p369
    %p371 = scmp.ne.s32.totalorder %s363, %s366
    %p372 = scmp.eq.s32.totalorder %s75, 0
    %p373 = por %p371, %p372
    %p374 = scmp.ne.s32.totalorder %s363, %s366
    %p375 = scmp.eq.s32.totalorder %s80, 3
    %p376 = por %p374, %p375
    %p377 = scmp.ne.s32.totalorder %s366, %s367
    %p378 = scmp.eq.s32.totalorder %s80, 0
    %p379 = por %p377, %p378
    %p380 = scmp.ne.s32.totalorder %s366, %s367
    %p381 = scmp.eq.s32.totalorder %s81, 3
    %p382 = por %p380, %p381
    %p384 = scmp.ne.s32.totalorder %s367, %s383
    %p385 = scmp.eq.s32.totalorder %s81, 0
    %p386 = por %p384, %p385
    %s387 = ssub.s32 %s83, %s90
    %p388 = scmp.eq.s32.totalorder %s387, 0
    %s390 = sadd.s32 %s389, 1
    %s391 = scalar_select %p388, %s389, %s390
    %p394 = pneg %p388
    %p395 = scmp.eq.s32.totalorder %s75, 3
    %p396 = por %p394, %p395
    %p397 = scmp.ne.s32.totalorder %s389, %s392
    %p398 = scmp.eq.s32.totalorder %s75, 0
    %p399 = por %p397, %p398
    %p400 = scmp.ne.s32.totalorder %s389, %s392
    %p401 = scmp.eq.s32.totalorder %s80, 3
    %p402 = por %p400, %p401
    %p403 = scmp.ne.s32.totalorder %s392, %s393
    %p404 = scmp.eq.s32.totalorder %s80, 0
    %p405 = por %p403, %p404
    %p406 = scmp.ne.s32.totalorder %s392, %s393
    %p407 = scmp.eq.s32.totalorder %s81, 3
    %p408 = por %p406, %p407
    %p410 = scmp.ne.s32.totalorder %s393, %s409
    %p411 = scmp.eq.s32.totalorder %s81, 0
    %p412 = por %p410, %p411
    %s413 = ssub.s32 %s83, %s90
    %p414 = scmp.eq.s32.totalorder %s413, 0
    %s416 = sadd.s32 %s415, 1
    %s417 = scalar_select %p414, %s415, %s416
    %p420 = pneg %p414
    %p421 = scmp.eq.s32.totalorder %s75, 3
    %p422 = por %p420, %p421
    %p423 = scmp.ne.s32.totalorder %s415, %s418
    %p424 = scmp.eq.s32.totalorder %s75, 0
    %p425 = por %p423, %p424
    %p426 = scmp.ne.s32.totalorder %s415, %s418
    %p427 = scmp.eq.s32.totalorder %s80, 3
    %p428 = por %p426, %p427
    %p429 = scmp.ne.s32.totalorder %s418, %s419
    %p430 = scmp.eq.s32.totalorder %s80, 0
    %p431 = por %p429, %p430
    %p432 = scmp.ne.s32.totalorder %s418, %s419
    %p433 = scmp.eq.s32.totalorder %s81, 3
    %p434 = por %p432, %p433
    %p436 = scmp.ne.s32.totalorder %s419, %s435
    %p437 = scmp.eq.s32.totalorder %s81, 0
    %p438 = por %p436, %p437
    %s439 = ssub.s32 %s83, %s90
    %p440 = scmp.eq.s32.totalorder %s439, 0
    %s442 = sadd.s32 %s441, 1
    %s443 = scalar_select %p440, %s441, %s442
    %p446 = pneg %p440
    %p447 = scmp.eq.s32.totalorder %s75, 3
    %p448 = por %p446, %p447
    %p449 = scmp.ne.s32.totalorder %s441, %s444
    %p450 = scmp.eq.s32.totalorder %s75, 0
    %p451 = por %p449, %p450
    %p452 = scmp.ne.s32.totalorder %s441, %s444
    %p453 = scmp.eq.s32.totalorder %s80, 3
    %p454 = por %p452, %p453
    %p455 = scmp.ne.s32.totalorder %s444, %s445
    %p456 = scmp.eq.s32.totalorder %s80, 0
    %p457 = por %p455, %p456
    %p458 = scmp.ne.s32.totalorder %s444, %s445
    %p459 = scmp.eq.s32.totalorder %s81, 3
    %p460 = por %p458, %p459
    %p462 = scmp.ne.s32.totalorder %s445, %s461
    %p463 = scmp.eq.s32.totalorder %s81, 0
    %p464 = por %p462, %p463
    %s465 = ssub.s32 %s83, %s90
    %p466 = scmp.eq.s32.totalorder %s465, 0
    %s468 = sadd.s32 %s467, 1
    %s469 = scalar_select %p466, %s467, %s468
    %p472 = pneg %p466
    %p473 = scmp.eq.s32.totalorder %s75, 3
    %p474 = por %p472, %p473
    %p475 = scmp.ne.s32.totalorder %s467, %s470
    %p476 = scmp.eq.s32.totalorder %s75, 0
    %p477 = por %p475, %p476
    %p478 = scmp.ne.s32.totalorder %s467, %s470
    %p479 = scmp.eq.s32.totalorder %s80, 3
    %p480 = por %p478, %p479
    %p481 = scmp.ne.s32.totalorder %s470, %s471
    %p482 = scmp.eq.s32.totalorder %s80, 0
    %p483 = por %p481, %p482
    %p484 = scmp.ne.s32.totalorder %s470, %s471
    %p485 = scmp.eq.s32.totalorder %s81, 3
    %p486 = por %p484, %p485
    %p488 = scmp.ne.s32.totalorder %s471, %s487
    %p489 = scmp.eq.s32.totalorder %s81, 0
    %p490 = por %p488, %p489
    %s491 = ssub.s32 %s83, %s90
    %p492 = scmp.eq.s32.totalorder %s491, 0
    %s494 = sadd.s32 %s493, 1
    %s495 = scalar_select %p492, %s493, %s494
    %p498 = pneg %p492
    %p499 = scmp.eq.s32.totalorder %s75, 3
    %p500 = por %p498, %p499
    %p501 = scmp.ne.s32.totalorder %s493, %s496
    %p502 = scmp.eq.s32.totalorder %s75, 0
    %p503 = por %p501, %p502
    %p504 = scmp.ne.s32.totalorder %s493, %s496
    %p505 = scmp.eq.s32.totalorder %s80, 3
    %p506 = por %p504, %p505
    %p507 = scmp.ne.s32.totalorder %s496, %s497
    %p508 = scmp.eq.s32.totalorder %s80, 0
    %p509 = por %p507, %p508
    %p510 = scmp.ne.s32.totalorder %s496, %s497
    %p511 = scmp.eq.s32.totalorder %s81, 3
    %p512 = por %p510, %p511
    %p514 = scmp.ne.s32.totalorder %s497, %s513
    %p515 = scmp.eq.s32.totalorder %s81, 0
    %p516 = por %p514, %p515
    %s517 = ssub.s32 %s83, %s90
    %p518 = scmp.eq.s32.totalorder %s517, 0
    %s520 = sadd.s32 %s519, 1
    %s521 = scalar_select %p518, %s519, %s520
    %p524 = pneg %p518
    %p525 = scmp.eq.s32.totalorder %s75, 3
    %p526 = por %p524, %p525
    %p527 = scmp.ne.s32.totalorder %s519, %s522
    %p528 = scmp.eq.s32.totalorder %s75, 0
    %p529 = por %p527, %p528
    %p530 = scmp.ne.s32.totalorder %s519, %s522
    %p531 = scmp.eq.s32.totalorder %s80, 3
    %p532 = por %p530, %p531
    %p533 = scmp.ne.s32.totalorder %s522, %s523
    %p534 = scmp.eq.s32.totalorder %s80, 0
    %p535 = por %p533, %p534
    %p536 = scmp.ne.s32.totalorder %s522, %s523
    %p537 = scmp.eq.s32.totalorder %s81, 3
    %p538 = por %p536, %p537
    %p540 = scmp.ne.s32.totalorder %s523, %s539
    %p541 = scmp.eq.s32.totalorder %s81, 0
    %p542 = por %p540, %p541
    %s543 = ssub.s32 %s83, %s90
    %p544 = scmp.eq.s32.totalorder %s543, 0
    %s546 = sadd.s32 %s545, 1
    %s547 = scalar_select %p544, %s545, %s546
    %p550 = pneg %p544
    %p551 = scmp.eq.s32.totalorder %s75, 3
    %p552 = por %p550, %p551
    %p553 = scmp.ne.s32.totalorder %s545, %s548
    %p554 = scmp.eq.s32.totalorder %s75, 0
    %p555 = por %p553, %p554
    %p556 = scmp.ne.s32.totalorder %s545, %s548
    %p557 = scmp.eq.s32.totalorder %s80, 3
    %p558 = por %p556, %p557
    %p559 = scmp.ne.s32.totalorder %s548, %s549
    %p560 = scmp.eq.s32.totalorder %s80, 0
    %p561 = por %p559, %p560
    %p562 = scmp.ne.s32.totalorder %s548, %s549
    %p563 = scmp.eq.s32.totalorder %s81, 3
    %p564 = por %p562, %p563
    %p566 = scmp.ne.s32.totalorder %s549, %s565
    %p567 = scmp.eq.s32.totalorder %s81, 0
    %p568 = por %p566, %p567
    %s569 = ssub.s32 %s83, %s90
    %p570 = scmp.eq.s32.totalorder %s569, 0
    %s572 = sadd.s32 %s571, 1
    %s573 = scalar_select %p570, %s571, %s572
    %p576 = pneg %p570
    %p577 = scmp.eq.s32.totalorder %s75, 3
    %p578 = por %p576, %p577
    %p579 = scmp.ne.s32.totalorder %s571, %s574
    %p580 = scmp.eq.s32.totalorder %s75, 0
    %p581 = por %p579, %p580
    %p582 = scmp.ne.s32.totalorder %s571, %s574
    %p583 = scmp.eq.s32.totalorder %s80, 3
    %p584 = por %p582, %p583
    %p585 = scmp.ne.s32.totalorder %s574, %s575
    %p586 = scmp.eq.s32.totalorder %s80, 0
    %p587 = por %p585, %p586
    %p588 = scmp.ne.s32.totalorder %s574, %s575
    %p589 = scmp.eq.s32.totalorder %s81, 3
    %p590 = por %p588, %p589
    %p592 = scmp.ne.s32.totalorder %s575, %s591
    %p593 = scmp.eq.s32.totalorder %s81, 0
    %p594 = por %p592, %p593
    %s595 = ssub.s32 %s83, %s90
    %p596 = scmp.eq.s32.totalorder %s595, 0
    %s598 = sadd.s32 %s597, 1
    %s599 = scalar_select %p596, %s597, %s598
    %p602 = pneg %p596
    %p603 = scmp.eq.s32.totalorder %s75, 3
    %p604 = por %p602, %p603
    %p605 = scmp.ne.s32.totalorder %s597, %s600
    %p606 = scmp.eq.s32.totalorder %s75, 0
    %p607 = por %p605, %p606
    %p608 = scmp.ne.s32.totalorder %s597, %s600
    %p609 = scmp.eq.s32.totalorder %s80, 3
    %p610 = por %p608, %p609
    %p611 = scmp.ne.s32.totalorder %s600, %s601
    %p612 = scmp.eq.s32.totalorder %s80, 0
    %p613 = por %p611, %p612
    %p614 = scmp.ne.s32.totalorder %s600, %s601
    %p615 = scmp.eq.s32.totalorder %s81, 3
    %p616 = por %p614, %p615
    %p618 = scmp.ne.s32.totalorder %s601, %s617
    %p619 = scmp.eq.s32.totalorder %s81, 0
    %p620 = por %p618, %p619
    %s621 = ssub.s32 %s83, %s90
    %p622 = scmp.eq.s32.totalorder %s621, 0
    %s624 = sadd.s32 %s623, 1
    %s625 = scalar_select %p622, %s623, %s624
    %p628 = pneg %p622
    %p629 = scmp.eq.s32.totalorder %s75, 3
    %p630 = por %p628, %p629
    %p631 = scmp.ne.s32.totalorder %s623, %s626
    %p632 = scmp.eq.s32.totalorder %s75, 0
    %p633 = por %p631, %p632
    %p634 = scmp.ne.s32.totalorder %s623, %s626
    %p635 = scmp.eq.s32.totalorder %s80, 3
    %p636 = por %p634, %p635
    %p637 = scmp.ne.s32.totalorder %s626, %s627
    %p638 = scmp.eq.s32.totalorder %s80, 0
    %p639 = por %p637, %p638
    %p640 = scmp.ne.s32.totalorder %s626, %s627
    %p641 = scmp.eq.s32.totalorder %s81, 3
    %p642 = por %p640, %p641
    %p644 = scmp.ne.s32.totalorder %s627, %s643
    %p645 = scmp.eq.s32.totalorder %s81, 0
    %p646 = por %p644, %p645
    %s647 = ssub.s32 %s83, %s90
    %p648 = scmp.eq.s32.totalorder %s647, 0
    %s650 = sadd.s32 %s649, 1
    %s651 = scalar_select %p648, %s649, %s650
    %p654 = pneg %p648
    %p655 = scmp.eq.s32.totalorder %s75, 3
    %p656 = por %p654, %p655
    %p657 = scmp.ne.s32.totalorder %s649, %s652
    %p658 = scmp.eq.s32.totalorder %s75, 0
    %p659 = por %p657, %p658
    %p660 = scmp.ne.s32.totalorder %s649, %s652
    %p661 = scmp.eq.s32.totalorder %s80, 3
    %p662 = por %p660, %p661
    %p663 = scmp.ne.s32.totalorder %s652, %s653
    %p664 = scmp.eq.s32.totalorder %s80, 0
    %p665 = por %p663, %p664
    %p666 = scmp.ne.s32.totalorder %s652, %s653
    %p667 = scmp.eq.s32.totalorder %s81, 3
    %p668 = por %p666, %p667
    %p670 = scmp.ne.s32.totalorder %s653, %s669
    %p671 = scmp.eq.s32.totalorder %s81, 0
    %p672 = por %p670, %p671
    %s673 = ssub.s32 %s83, %s90
    %p674 = scmp.eq.s32.totalorder %s673, 0
    %s676 = sadd.s32 %s675, 1
    %s677 = scalar_select %p674, %s675, %s676
    %p680 = pneg %p674
    %p681 = scmp.eq.s32.totalorder %s75, 3
    %p682 = por %p680, %p681
    %p683 = scmp.ne.s32.totalorder %s675, %s678
    %p684 = scmp.eq.s32.totalorder %s75, 0
    %p685 = por %p683, %p684
    %p686 = scmp.ne.s32.totalorder %s675, %s678
    %p687 = scmp.eq.s32.totalorder %s80, 3
    %p688 = por %p686, %p687
    %p689 = scmp.ne.s32.totalorder %s678, %s679
    %p690 = scmp.eq.s32.totalorder %s80, 0
    %p691 = por %p689, %p690
    %p692 = scmp.ne.s32.totalorder %s678, %s679
    %p693 = scmp.eq.s32.totalorder %s81, 3
    %p694 = por %p692, %p693
    %p696 = scmp.ne.s32.totalorder %s679, %s695
    %p697 = scmp.eq.s32.totalorder %s81, 0
    %p698 = por %p696, %p697
    %s699 = ssub.s32 %s83, %s90
    %p700 = scmp.eq.s32.totalorder %s699, 0
    %s702 = sadd.s32 %s701, 1
    %s703 = scalar_select %p700, %s701, %s702
    %p706 = pneg %p700
    %p707 = scmp.eq.s32.totalorder %s75, 3
    %p708 = por %p706, %p707
    %p709 = scmp.ne.s32.totalorder %s701, %s704
    %p710 = scmp.eq.s32.totalorder %s75, 0
    %p711 = por %p709, %p710
    %p712 = scmp.ne.s32.totalorder %s701, %s704
    %p713 = scmp.eq.s32.totalorder %s80, 3
    %p714 = por %p712, %p713
    %p715 = scmp.ne.s32.totalorder %s704, %s705
    %p716 = scmp.eq.s32.totalorder %s80, 0
    %p717 = por %p715, %p716
    %p718 = scmp.ne.s32.totalorder %s704, %s705
    %p719 = scmp.eq.s32.totalorder %s81, 3
    %p720 = por %p718, %p719
    %p722 = scmp.ne.s32.totalorder %s705, %s721
    %p723 = scmp.eq.s32.totalorder %s81, 0
    %p724 = por %p722, %p723
    %s725 = ssub.s32 %s83, %s90
    %p726 = scmp.eq.s32.totalorder %s725, 0
    %s728 = sadd.s32 %s727, 1
    %s729 = scalar_select %p726, %s727, %s728
    %p732 = pneg %p726
    %p733 = scmp.eq.s32.totalorder %s75, 3
    %p734 = por %p732, %p733
    %p735 = scmp.ne.s32.totalorder %s727, %s730
    %p736 = scmp.eq.s32.totalorder %s75, 0
    %p737 = por %p735, %p736
    %p738 = scmp.ne.s32.totalorder %s727, %s730
    %p739 = scmp.eq.s32.totalorder %s80, 3
    %p740 = por %p738, %p739
    %p741 = scmp.ne.s32.totalorder %s730, %s731
    %p742 = scmp.eq.s32.totalorder %s80, 0
    %p743 = por %p741, %p742
    %p744 = scmp.ne.s32.totalorder %s730, %s731
    %p745 = scmp.eq.s32.totalorder %s81, 3
    %p746 = por %p744, %p745
    %p748 = scmp.ne.s32.totalorder %s731, %s747
    %p749 = scmp.eq.s32.totalorder %s81, 0
    %p750 = por %p748, %p749
    %s751 = ssub.s32 %s83, %s90
    %p752 = scmp.eq.s32.totalorder %s751, 0
    %s754 = sadd.s32 %s753, 1
    %s755 = scalar_select %p752, %s753, %s754
    %p758 = pneg %p752
    %p759 = scmp.eq.s32.totalorder %s75, 3
    %p760 = por %p758, %p759
    %p761 = scmp.ne.s32.totalorder %s753, %s756
    %p762 = scmp.eq.s32.totalorder %s75, 0
    %p763 = por %p761, %p762
    %p764 = scmp.ne.s32.totalorder %s753, %s756
    %p765 = scmp.eq.s32.totalorder %s80, 3
    %p766 = por %p764, %p765
    %p767 = scmp.ne.s32.totalorder %s756, %s757
    %p768 = scmp.eq.s32.totalorder %s80, 0
    %p769 = por %p767, %p768
    %p770 = scmp.ne.s32.totalorder %s756, %s757
    %p771 = scmp.eq.s32.totalorder %s81, 3
    %p772 = por %p770, %p771
    %p774 = scmp.ne.s32.totalorder %s757, %s773
    %p775 = scmp.eq.s32.totalorder %s81, 0
    %p776 = por %p774, %p775
    %s777 = ssub.s32 %s83, %s90
    %p778 = scmp.eq.s32.totalorder %s777, 0
    %s780 = sadd.s32 %s779, 1
    %s781 = scalar_select %p778, %s779, %s780
    %p784 = pneg %p778
    %p785 = scmp.eq.s32.totalorder %s75, 3
    %p786 = por %p784, %p785
    %p787 = scmp.ne.s32.totalorder %s779, %s782
    %p788 = scmp.eq.s32.totalorder %s75, 0
    %p789 = por %p787, %p788
    %p790 = scmp.ne.s32.totalorder %s779, %s782
    %p791 = scmp.eq.s32.totalorder %s80, 3
    %p792 = por %p790, %p791
    %p793 = scmp.ne.s32.totalorder %s782, %s783
    %p794 = scmp.eq.s32.totalorder %s80, 0
    %p795 = por %p793, %p794
    %p796 = scmp.ne.s32.totalorder %s782, %s783
    %p797 = scmp.eq.s32.totalorder %s81, 3
    %p798 = por %p796, %p797
    %p800 = scmp.ne.s32.totalorder %s783, %s799
    %p801 = scmp.eq.s32.totalorder %s81, 0
    %p802 = por %p800, %p801
    %s803 = ssub.s32 %s83, %s90
    %p804 = scmp.eq.s32.totalorder %s803, 0
    %s806 = sadd.s32 %s805, 1
    %s807 = scalar_select %p804, %s805, %s806
    %p810 = pneg %p804
    %p811 = scmp.eq.s32.totalorder %s75, 3
    %p812 = por %p810, %p811
    %p813 = scmp.ne.s32.totalorder %s805, %s808
    %p814 = scmp.eq.s32.totalorder %s75, 0
    %p815 = por %p813, %p814
    %p816 = scmp.ne.s32.totalorder %s805, %s808
    %p817 = scmp.eq.s32.totalorder %s80, 3
    %p818 = por %p816, %p817
    %p819 = scmp.ne.s32.totalorder %s808, %s809
    %p820 = scmp.eq.s32.totalorder %s80, 0
    %p821 = por %p819, %p820
    %p822 = scmp.ne.s32.totalorder %s808, %s809
    %p823 = scmp.eq.s32.totalorder %s81, 3
    %p824 = por %p822, %p823
    %p826 = scmp.ne.s32.totalorder %s809, %s825
    %p827 = scmp.eq.s32.totalorder %s81, 0
    %p828 = por %p826, %p827
    %s829 = ssub.s32 %s83, %s90
    %p830 = scmp.eq.s32.totalorder %s829, 0
    %s832 = sadd.s32 %s831, 1
    %s833 = scalar_select %p830, %s831, %s832
    %p836 = pneg %p830
    %p837 = scmp.eq.s32.totalorder %s75, 3
    %p838 = por %p836, %p837
    %p839 = scmp.ne.s32.totalorder %s831, %s834
    %p840 = scmp.eq.s32.totalorder %s75, 0
    %p841 = por %p839, %p840
    %p842 = scmp.ne.s32.totalorder %s831, %s834
    %p843 = scmp.eq.s32.totalorder %s80, 3
    %p844 = por %p842, %p843
    %p845 = scmp.ne.s32.totalorder %s834, %s835
    %p846 = scmp.eq.s32.totalorder %s80, 0
    %p847 = por %p845, %p846
    %p848 = scmp.ne.s32.totalorder %s834, %s835
    %p849 = scmp.eq.s32.totalorder %s81, 3
    %p850 = por %p848, %p849
    %p852 = scmp.ne.s32.totalorder %s835, %s851
    %p853 = scmp.eq.s32.totalorder %s81, 0
    %p854 = por %p852, %p853
    %s855 = ssub.s32 %s83, %s90
    %p856 = scmp.eq.s32.totalorder %s855, 0
    %s858 = sadd.s32 %s857, 1
    %s859 = scalar_select %p856, %s857, %s858
    %p862 = pneg %p856
    %p863 = scmp.eq.s32.totalorder %s75, 3
    %p864 = por %p862, %p863
    %p865 = scmp.ne.s32.totalorder %s857, %s860
    %p866 = scmp.eq.s32.totalorder %s75, 0
    %p867 = por %p865, %p866
    %p868 = scmp.ne.s32.totalorder %s857, %s860
    %p869 = scmp.eq.s32.totalorder %s80, 3
    %p870 = por %p868, %p869
    %p871 = scmp.ne.s32.totalorder %s860, %s861
    %p872 = scmp.eq.s32.totalorder %s80, 0
    %p873 = por %p871, %p872
    %p874 = scmp.ne.s32.totalorder %s860, %s861
    %p875 = scmp.eq.s32.totalorder %s81, 3
    %p876 = por %p874, %p875
    %p878 = scmp.ne.s32.totalorder %s861, %s877
    %p879 = scmp.eq.s32.totalorder %s81, 0
    %p880 = por %p878, %p879
    %s881 = ssub.s32 %s83, %s90
    %p882 = scmp.eq.s32.totalorder %s881, 0
    %s884 = sadd.s32 %s883, 1
    %s885 = scalar_select %p882, %s883, %s884
    %p888 = pneg %p882
    %p889 = scmp.eq.s32.totalorder %s75, 3
    %p890 = por %p888, %p889
    %p891 = scmp.ne.s32.totalorder %s883, %s886
    %p892 = scmp.eq.s32.totalorder %s75, 0
    %p893 = por %p891, %p892
    %p894 = scmp.ne.s32.totalorder %s883, %s886
    %p895 = scmp.eq.s32.totalorder %s80, 3
    %p896 = por %p894, %p895
    %p897 = scmp.ne.s32.totalorder %s886, %s887
    %p898 = scmp.eq.s32.totalorder %s80, 0
    %p899 = por %p897, %p898
    %p900 = scmp.ne.s32.totalorder %s886, %s887
    %p901 = scmp.eq.s32.totalorder %s81, 3
    %p902 = por %p900, %p901
    %p904 = scmp.ne.s32.totalorder %s887, %s903
    %p905 = scmp.eq.s32.totalorder %s81, 0
    %p906 = por %p904, %p905
    %s908 = sadd.s32 %s907, 1
    %p911 = scmp.eq.s32.totalorder %s75, 3
    %p912 = scmp.ne.s32.totalorder %s907, %s909
    %p913 = scmp.eq.s32.totalorder %s75, 0
    %p914 = por %p912, %p913
    %p915 = scmp.ne.s32.totalorder %s907, %s909
    %p916 = scmp.eq.s32.totalorder %s80, 3
    %p917 = por %p915, %p916
    %p918 = scmp.ne.s32.totalorder %s909, %s910
    %p919 = scmp.eq.s32.totalorder %s80, 0
    %p920 = por %p918, %p919
    %p921 = scmp.ne.s32.totalorder %s909, %s910
    %p922 = scmp.eq.s32.totalorder %s81, 3
    %p923 = por %p921, %p922
    %p925 = scmp.ne.s32.totalorder %s910, %s924
    %p926 = scmp.eq.s32.totalorder %s81, 0
    %p927 = por %p925, %p926
    %s929 = sadd.s32 %s928, 1
    %p932 = scmp.eq.s32.totalorder %s75, 3
    %p933 = scmp.ne.s32.totalorder %s928, %s930
    %p934 = scmp.eq.s32.totalorder %s75, 0
    %p935 = por %p933, %p934
    %p936 = scmp.ne.s32.totalorder %s928, %s930
    %p937 = scmp.eq.s32.totalorder %s80, 3
    %p938 = por %p936, %p937
    %p939 = scmp.ne.s32.totalorder %s930, %s931
    %p940 = scmp.eq.s32.totalorder %s80, 0
    %p941 = por %p939, %p940
    %p942 = scmp.ne.s32.totalorder %s930, %s931
    %p943 = scmp.eq.s32.totalorder %s81, 3
    %p944 = por %p942, %p943
    %p946 = scmp.ne.s32.totalorder %s931, %s945
    %p947 = scmp.eq.s32.totalorder %s81, 0
    %p948 = por %p946, %p947
    %s949 = ssub.s32 %s82, %s94
    %p950 = scmp.eq.s32.totalorder %s949, 0
    %s952 = sadd.s32 %s951, 1
    %s953 = scalar_select %p950, %s951, %s952
    %p956 = pneg %p950
    %p957 = scmp.eq.s32.totalorder %s75, 3
    %p958 = por %p956, %p957
    %p959 = scmp.ne.s32.totalorder %s951, %s954
    %p960 = scmp.eq.s32.totalorder %s75, 0
    %p961 = por %p959, %p960
    %p962 = scmp.ne.s32.totalorder %s951, %s954
    %p963 = scmp.eq.s32.totalorder %s80, 3
    %p964 = por %p962, %p963
    %p965 = scmp.ne.s32.totalorder %s954, %s955
    %p966 = scmp.eq.s32.totalorder %s80, 0
    %p967 = por %p965, %p966
    %p968 = scmp.ne.s32.totalorder %s954, %s955
    %p969 = scmp.eq.s32.totalorder %s81, 3
    %p970 = por %p968, %p969
    %p972 = scmp.ne.s32.totalorder %s955, %s971
    %p973 = scmp.eq.s32.totalorder %s81, 0
    %p974 = por %p972, %p973
    %p975 = scmp.le.s32.totalorder 1, %s75
    %p976 = scmp.lt.s32.totalorder %s75, 5
    %p977 = pnand %p975, %p976
    %p978 = pneg %p977
    // Predicated region
    $region9: #{csiformer_student_forward.3} parent=5 // pred_check
      _
    $region10: #{csiformer_student_forward.3} parent=5 // pred_check_branch
      %980 = sbr.rel (%p977) target = $region12
    $region11: #{csiformer_student_forward.3} parent=5 // pred_region
      %s981 = ssub.s32 %s75, 1
      // Predicated region
      $region13: #{csiformer_student_forward.3} parent=11 // pred_check
        %p982 = pneg %p134
      $region14: #{csiformer_student_forward.3} parent=11 // pred_check_branch
        %984 = sbr.rel (%p982) target = $region16
      $region15: #{csiformer_student_forward.3} parent=11 // pred_region
        _
      $region16: #{csiformer_student_forward.3} parent=11 // pred_fallthru
        _
      // Predicated region
      $region17: #{csiformer_student_forward.3} parent=11 // pred_check
        %p985 = pneg %p181
      $region18: #{csiformer_student_forward.3} parent=11 // pred_check_branch
        %987 = sbr.rel (%p985) target = $region20
      $region19: #{csiformer_student_forward.3} parent=11 // pred_region
        _
      $region20: #{csiformer_student_forward.3} parent=11 // pred_fallthru
        _
      // Predicated region
      $region21: #{csiformer_student_forward.3} parent=11 // pred_check
        %p988 = pneg %p202
      $region22: #{csiformer_student_forward.3} parent=11 // pred_check_branch
        %990 = sbr.rel (%p988) target = $region24
      $region23: #{csiformer_student_forward.3} parent=11 // pred_region
        _
      $region24: #{csiformer_student_forward.3} parent=11 // pred_fallthru
        _
      // Predicated region
      $region25: #{csiformer_student_forward.3} parent=11 // pred_check
        %p991 = pneg %p223
      $region26: #{csiformer_student_forward.3} parent=11 // pred_check_branch
        %993 = sbr.rel (%p991) target = $region28
      $region27: #{csiformer_student_forward.3} parent=11 // pred_region
        _
      $region28: #{csiformer_student_forward.3} parent=11 // pred_fallthru
        _
      // Predicated region
      $region29: #{csiformer_student_forward.3} parent=11 // pred_check
        %p994 = pneg %p920
      $region30: #{csiformer_student_forward.3} parent=11 // pred_check_branch
        %996 = sbr.rel (%p994) target = $region32
      $region31: #{csiformer_student_forward.3} parent=11 // pred_region
        _
      $region32: #{csiformer_student_forward.3} parent=11 // pred_fallthru
        _
      // Predicated region
      $region33: #{csiformer_student_forward.3} parent=11 // pred_check
        %p997 = pneg %p941
      $region34: #{csiformer_student_forward.3} parent=11 // pred_check_branch
        %999 = sbr.rel (%p997) target = $region36
      $region35: #{csiformer_student_forward.3} parent=11 // pred_region
        _
      $region36: #{csiformer_student_forward.3} parent=11 // pred_fallthru
        _
    $region12: #{csiformer_student_forward.3} parent=5 // pred_fallthru
      _
    %p1000 = scmp.lt.s32.totalorder %s75, 4
    // Predicated region
    $region37: #{csiformer_student_forward.3} parent=5 // pred_check
      %p1001 = pneg %p1000
    $region38: #{csiformer_student_forward.3} parent=5 // pred_check_branch
      %1003 = sbr.rel (%p1001) target = $region40
    $region39: #{csiformer_student_forward.3} parent=5 // pred_region
      // Predicated region
      $region41: #{csiformer_student_forward.3} parent=39 // pred_check
        %p1004 = pneg %p107
      $region42: #{csiformer_student_forward.3} parent=39 // pred_check_branch
        %1006 = sbr.rel (%p1004) target = $region44
      $region43: #{csiformer_student_forward.3} parent=39 // pred_region
        %p1007 = scmp.lt.s32.totalorder %s82, 1
        %s1008 = scalar_select %p1007, %s82, 1
        %s1009 = smul.addr %s1008, 8
        %s1010 = scalar_lea.vmem %s1, %s1009
      $region44: #{csiformer_student_forward.3} parent=39 // pred_fallthru
        _
      // Predicated region
      $region45: #{csiformer_student_forward.3} parent=39 // pred_check
        %p1011 = pneg %p154
      $region46: #{csiformer_student_forward.3} parent=39 // pred_check_branch
        %1013 = sbr.rel (%p1011) target = $region48
      $region47: #{csiformer_student_forward.3} parent=39 // pred_region
        %p1014 = scmp.lt.s32.totalorder %s82, 1
        %s1015 = scalar_select %p1014, %s82, 1
        %s1016 = smul.addr %s1015, 2
        %s1017 = smul.addr %s1016, 8
        %s1018 = scalar_lea.vmem %s5, %s1017
      $region48: #{csiformer_student_forward.3} parent=39 // pred_fallthru
        _
      // Predicated region
      $region49: #{csiformer_student_forward.3} parent=39 // pred_check
        %p1019 = pneg %p243
      $region50: #{csiformer_student_forward.3} parent=39 // pred_check_branch
        %1021 = sbr.rel (%p1019) target = $region52
      $region51: #{csiformer_student_forward.3} parent=39 // pred_region
        %p1022 = scmp.lt.s32.totalorder %s83, 1
        %s1023 = scalar_select %p1022, %s83, 1
        %s1024 = smul.addr %s1023, 8
        %s1025 = smul.addr %s1024, 8
        %s1026 = scalar_lea.vmem %s13, %s1025
      $region52: #{csiformer_student_forward.3} parent=39 // pred_fallthru
        _
      // Predicated region
      $region53: #{csiformer_student_forward.3} parent=39 // pred_check
        %p1027 = pneg %p269
      $region54: #{csiformer_student_forward.3} parent=39 // pred_check_branch
        %1029 = sbr.rel (%p1027) target = $region56
      $region55: #{csiformer_student_forward.3} parent=39 // pred_region
        %p1030 = scmp.lt.s32.totalorder %s83, 1
        %s1031 = scalar_select %p1030, %s83, 1
        %s1032 = smul.addr %s1031, 8
        %s1033 = smul.addr %s1032, 8
        %s1034 = scalar_lea.vmem %s15, %s1033
      $region56: #{csiformer_student_forward.3} parent=39 // pred_fallthru
        _
      // Predicated region
      $region57: #{csiformer_student_forward.3} parent=39 // pred_check
        %p1035 = pneg %p295
      $region58: #{csiformer_student_forward.3} parent=39 // pred_check_branch
        %1037 = sbr.rel (%p1035) target = $region60
      $region59: #{csiformer_student_forward.3} parent=39 // pred_region
        %p1038 = scmp.lt.s32.totalorder %s83, 1
        %s1039 = scalar_select %p1038, %s83, 1
        %s1040 = smul.addr %s1039, 8
        %s1041 = smul.addr %s1040, 8
        %s1042 = scalar_lea.vmem %s17, %s1041
      $region60: #{csiformer_student_forward.3} parent=39 // pred_fallthru
        _
      // Predicated region
      $region61: #{csiformer_student_forward.3} parent=39 // pred_check
        %p1043 = pneg %p321
      $region62: #{csiformer_student_forward.3} parent=39 // pred_check_branch
        %1045 = sbr.rel (%p1043) target = $region64
      $region63: #{csiformer_student_forward.3} parent=39 // pred_region
        %p1046 = scmp.lt.s32.totalorder %s83, 1
        %s1047 = scalar_select %p1046, %s83, 1
        %s1048 = smul.addr %s1047, 2
        %s1049 = scalar_lea.vmem %s19, %s1048
      $region64: #{csiformer_student_forward.3} parent=39 // pred_fallthru
        _
      // Predicated region
      $region65: #{csiformer_student_forward.3} parent=39 // pred_check
        %p1050 = pneg %p347
      $region66: #{csiformer_student_forward.3} parent=39 // pred_check_branch
        %1052 = sbr.rel (%p1050) target = $region68
      $region67: #{csiformer_student_forward.3} parent=39 // pred_region
        %p1053 = scmp.lt.s32.totalorder %s83, 1
        %s1054 = scalar_select %p1053, %s83, 1
        %s1055 = smul.addr %s1054, 2
        %s1056 = scalar_lea.vmem %s21, %s1055
      $region68: #{csiformer_student_forward.3} parent=39 // pred_fallthru
        _
      // Predicated region
      $region69: #{csiformer_student_forward.3} parent=39 // pred_check
        %p1057 = pneg %p373
      $region70: #{csiformer_student_forward.3} parent=39 // pred_check_branch
        %1059 = sbr.rel (%p1057) target = $region72
      $region71: #{csiformer_student_forward.3} parent=39 // pred_region
        %p1060 = scmp.lt.s32.totalorder %s83, 1
        %s1061 = scalar_select %p1060, %s83, 1
        %s1062 = smul.addr %s1061, 2
        %s1063 = scalar_lea.vmem %s23, %s1062
      $region72: #{csiformer_student_forward.3} parent=39 // pred_fallthru
        _
      // Predicated region
      $region73: #{csiformer_student_forward.3} parent=39 // pred_check
        %p1064 = pneg %p399
      $region74: #{csiformer_student_forward.3} parent=39 // pred_check_branch
        %1066 = sbr.rel (%p1064) target = $region76
      $region75: #{csiformer_student_forward.3} parent=39 // pred_region
        %p1067 = scmp.lt.s32.totalorder %s83, 1
        %s1068 = scalar_select %p1067, %s83, 1
        %s1069 = smul.addr %s1068, 4
        %s1070 = smul.addr %s1069, 8
        %s1071 = scalar_lea.vmem %s25, %s1070
      $region76: #{csiformer_student_forward.3} parent=39 // pred_fallthru
        _
      // Predicated region
      $region77: #{csiformer_student_forward.3} parent=39 // pred_check
        %p1072 = pneg %p425
      $region78: #{csiformer_student_forward.3} parent=39 // pred_check_branch
        %1074 = sbr.rel (%p1072) target = $region80
      $region79: #{csiformer_student_forward.3} parent=39 // pred_region
        %p1075 = scmp.lt.s32.totalorder %s83, 1
        %s1076 = scalar_select %p1075, %s83, 1
        %s1077 = scalar_lea.vmem %s27, %s1076
      $region80: #{csiformer_student_forward.3} parent=39 // pred_fallthru
        _
      // Predicated region
      $region81: #{csiformer_student_forward.3} parent=39 // pred_check
        %p1078 = pneg %p451
      $region82: #{csiformer_student_forward.3} parent=39 // pred_check_branch
        %1080 = sbr.rel (%p1078) target = $region84
      $region83: #{csiformer_student_forward.3} parent=39 // pred_region
        %p1081 = scmp.lt.s32.totalorder %s83, 1
        %s1082 = scalar_select %p1081, %s83, 1
        %s1083 = scalar_lea.vmem %s29, %s1082
      $region84: #{csiformer_student_forward.3} parent=39 // pred_fallthru
        _
      // Predicated region
      $region85: #{csiformer_student_forward.3} parent=39 // pred_check
        %p1084 = pneg %p477
      $region86: #{csiformer_student_forward.3} parent=39 // pred_check_branch
        %1086 = sbr.rel (%p1084) target = $region88
      $region87: #{csiformer_student_forward.3} parent=39 // pred_region
        %p1087 = scmp.lt.s32.totalorder %s83, 1
        %s1088 = scalar_select %p1087, %s83, 1
        %s1089 = scalar_lea.vmem %s31, %s1088
      $region88: #{csiformer_student_forward.3} parent=39 // pred_fallthru
        _
      // Predicated region
      $region89: #{csiformer_student_forward.3} parent=39 // pred_check
        %p1090 = pneg %p503
      $region90: #{csiformer_student_forward.3} parent=39 // pred_check_branch
        %1092 = sbr.rel (%p1090) target = $region92
      $region91: #{csiformer_student_forward.3} parent=39 // pred_region
        %p1093 = scmp.lt.s32.totalorder %s83, 1
        %s1094 = scalar_select %p1093, %s83, 1
        %s1095 = smul.addr %s1094, 8
        %s1096 = smul.addr %s1095, 8
        %s1097 = scalar_lea.vmem %s33, %s1096
      $region92: #{csiformer_student_forward.3} parent=39 // pred_fallthru
        _
      // Predicated region
      $region93: #{csiformer_student_forward.3} parent=39 // pred_check
        %p1098 = pneg %p529
      $region94: #{csiformer_student_forward.3} parent=39 // pred_check_branch
        %1100 = sbr.rel (%p1098) target = $region96
      $region95: #{csiformer_student_forward.3} parent=39 // pred_region
        %p1101 = scmp.lt.s32.totalorder %s83, 1
        %s1102 = scalar_select %p1101, %s83, 1
        %s1103 = smul.addr %s1102, 8
        %s1104 = smul.addr %s1103, 8
        %s1105 = scalar_lea.vmem %s35, %s1104
      $region96: #{csiformer_student_forward.3} parent=39 // pred_fallthru
        _
      // Predicated region
      $region97: #{csiformer_student_forward.3} parent=39 // pred_check
        %p1106 = pneg %p555
      $region98: #{csiformer_student_forward.3} parent=39 // pred_check_branch
        %1108 = sbr.rel (%p1106) target = $region100
      $region99: #{csiformer_student_forward.3} parent=39 // pred_region
        %p1109 = scmp.lt.s32.totalorder %s83, 1
        %s1110 = scalar_select %p1109, %s83, 1
        %s1111 = smul.addr %s1110, 8
        %s1112 = smul.addr %s1111, 8
        %s1113 = scalar_lea.vmem %s37, %s1112
      $region100: #{csiformer_student_forward.3} parent=39 // pred_fallthru
        _
      // Predicated region
      $region101: #{csiformer_student_forward.3} parent=39 // pred_check
        %p1114 = pneg %p581
      $region102: #{csiformer_student_forward.3} parent=39 // pred_check_branch
        %1116 = sbr.rel (%p1114) target = $region104
      $region103: #{csiformer_student_forward.3} parent=39 // pred_region
        %p1117 = scmp.lt.s32.totalorder %s83, 1
        %s1118 = scalar_select %p1117, %s83, 1
        %s1119 = smul.addr %s1118, 2
        %s1120 = scalar_lea.vmem %s39, %s1119
      $region104: #{csiformer_student_forward.3} parent=39 // pred_fallthru
        _
      // Predicated region
      $region105: #{csiformer_student_forward.3} parent=39 // pred_check
        %p1121 = pneg %p607
      $region106: #{csiformer_student_forward.3} parent=39 // pred_check_branch
        %1123 = sbr.rel (%p1121) target = $region108
      $region107: #{csiformer_student_forward.3} parent=39 // pred_region
        %p1124 = scmp.lt.s32.totalorder %s83, 1
        %s1125 = scalar_select %p1124, %s83, 1
        %s1126 = smul.addr %s1125, 2
        %s1127 = scalar_lea.vmem %s41, %s1126
      $region108: #{csiformer_student_forward.3} parent=39 // pred_fallthru
        _
      // Predicated region
      $region109: #{csiformer_student_forward.3} parent=39 // pred_check
        %p1128 = pneg %p633
      $region110: #{csiformer_student_forward.3} parent=39 // pred_check_branch
        %1130 = sbr.rel (%p1128) target = $region112
      $region111: #{csiformer_student_forward.3} parent=39 // pred_region
        %p1131 = scmp.lt.s32.totalorder %s83, 1
        %s1132 = scalar_select %p1131, %s83, 1
        %s1133 = smul.addr %s1132, 2
        %s1134 = scalar_lea.vmem %s43, %s1133
      $region112: #{csiformer_student_forward.3} parent=39 // pred_fallthru
        _
      // Predicated region
      $region113: #{csiformer_student_forward.3} parent=39 // pred_check
        %p1135 = pneg %p659
      $region114: #{csiformer_student_forward.3} parent=39 // pred_check_branch
        %1137 = sbr.rel (%p1135) target = $region116
      $region115: #{csiformer_student_forward.3} parent=39 // pred_region
        %p1138 = scmp.lt.s32.totalorder %s83, 1
        %s1139 = scalar_select %p1138, %s83, 1
        %s1140 = smul.addr %s1139, 4
        %s1141 = smul.addr %s1140, 8
        %s1142 = scalar_lea.vmem %s45, %s1141
      $region116: #{csiformer_student_forward.3} parent=39 // pred_fallthru
        _
      // Predicated region
      $region117: #{csiformer_student_forward.3} parent=39 // pred_check
        %p1143 = pneg %p685
      $region118: #{csiformer_student_forward.3} parent=39 // pred_check_branch
        %1145 = sbr.rel (%p1143) target = $region120
      $region119: #{csiformer_student_forward.3} parent=39 // pred_region
        %p1146 = scmp.lt.s32.totalorder %s83, 1
        %s1147 = scalar_select %p1146, %s83, 1
        %s1148 = scalar_lea.vmem %s47, %s1147
      $region120: #{csiformer_student_forward.3} parent=39 // pred_fallthru
        _
      // Predicated region
      $region121: #{csiformer_student_forward.3} parent=39 // pred_check
        %p1149 = pneg %p711
      $region122: #{csiformer_student_forward.3} parent=39 // pred_check_branch
        %1151 = sbr.rel (%p1149) target = $region124
      $region123: #{csiformer_student_forward.3} parent=39 // pred_region
        %p1152 = scmp.lt.s32.totalorder %s83, 1
        %s1153 = scalar_select %p1152, %s83, 1
        %s1154 = scalar_lea.vmem %s49, %s1153
      $region124: #{csiformer_student_forward.3} parent=39 // pred_fallthru
        _
      // Predicated region
      $region125: #{csiformer_student_forward.3} parent=39 // pred_check
        %p1155 = pneg %p737
      $region126: #{csiformer_student_forward.3} parent=39 // pred_check_branch
        %1157 = sbr.rel (%p1155) target = $region128
      $region127: #{csiformer_student_forward.3} parent=39 // pred_region
        %p1158 = scmp.lt.s32.totalorder %s83, 1
        %s1159 = scalar_select %p1158, %s83, 1
        %s1160 = scalar_lea.vmem %s51, %s1159
      $region128: #{csiformer_student_forward.3} parent=39 // pred_fallthru
        _
      // Predicated region
      $region129: #{csiformer_student_forward.3} parent=39 // pred_check
        %p1161 = pneg %p763
      $region130: #{csiformer_student_forward.3} parent=39 // pred_check_branch
        %1163 = sbr.rel (%p1161) target = $region132
      $region131: #{csiformer_student_forward.3} parent=39 // pred_region
        %p1164 = scmp.lt.s32.totalorder %s83, 1
        %s1165 = scalar_select %p1164, %s83, 1
        %s1166 = smul.addr %s1165, 4
        %s1167 = smul.addr %s1166, 8
        %s1168 = scalar_lea.vmem %s53, %s1167
      $region132: #{csiformer_student_forward.3} parent=39 // pred_fallthru
        _
      // Predicated region
      $region133: #{csiformer_student_forward.3} parent=39 // pred_check
        %p1169 = pneg %p789
      $region134: #{csiformer_student_forward.3} parent=39 // pred_check_branch
        %1171 = sbr.rel (%p1169) target = $region136
      $region135: #{csiformer_student_forward.3} parent=39 // pred_region
        %p1172 = scmp.lt.s32.totalorder %s83, 1
        %s1173 = scalar_select %p1172, %s83, 1
        %s1174 = scalar_lea.vmem %s55, %s1173
      $region136: #{csiformer_student_forward.3} parent=39 // pred_fallthru
        _
      // Predicated region
      $region137: #{csiformer_student_forward.3} parent=39 // pred_check
        %p1175 = pneg %p815
      $region138: #{csiformer_student_forward.3} parent=39 // pred_check_branch
        %1177 = sbr.rel (%p1175) target = $region140
      $region139: #{csiformer_student_forward.3} parent=39 // pred_region
        %p1178 = scmp.lt.s32.totalorder %s83, 1
        %s1179 = scalar_select %p1178, %s83, 1
        %s1180 = smul.addr %s1179, 8
        %s1181 = smul.addr %s1180, 8
        %s1182 = scalar_lea.vmem %s57, %s1181
      $region140: #{csiformer_student_forward.3} parent=39 // pred_fallthru
        _
      // Predicated region
      $region141: #{csiformer_student_forward.3} parent=39 // pred_check
        %p1183 = pneg %p841
      $region142: #{csiformer_student_forward.3} parent=39 // pred_check_branch
        %1185 = sbr.rel (%p1183) target = $region144
      $region143: #{csiformer_student_forward.3} parent=39 // pred_region
        %p1186 = scmp.lt.s32.totalorder %s83, 1
        %s1187 = scalar_select %p1186, %s83, 1
        %s1188 = scalar_lea.vmem %s59, %s1187
      $region144: #{csiformer_student_forward.3} parent=39 // pred_fallthru
        _
      // Predicated region
      $region145: #{csiformer_student_forward.3} parent=39 // pred_check
        %p1189 = pneg %p867
      $region146: #{csiformer_student_forward.3} parent=39 // pred_check_branch
        %1191 = sbr.rel (%p1189) target = $region148
      $region147: #{csiformer_student_forward.3} parent=39 // pred_region
        %p1192 = scmp.lt.s32.totalorder %s83, 1
        %s1193 = scalar_select %p1192, %s83, 1
        %s1194 = scalar_lea.vmem %s61, %s1193
      $region148: #{csiformer_student_forward.3} parent=39 // pred_fallthru
        _
      // Predicated region
      $region149: #{csiformer_student_forward.3} parent=39 // pred_check
        %p1195 = pneg %p893
      $region150: #{csiformer_student_forward.3} parent=39 // pred_check_branch
        %1197 = sbr.rel (%p1195) target = $region152
      $region151: #{csiformer_student_forward.3} parent=39 // pred_region
        %p1198 = scmp.lt.s32.totalorder %s83, 1
        %s1199 = scalar_select %p1198, %s83, 1
        %s1200 = scalar_lea.vmem %s63, %s1199
      $region152: #{csiformer_student_forward.3} parent=39 // pred_fallthru
        _
    $region40: #{csiformer_student_forward.3} parent=5 // pred_fallthru
      _
    %p1201 = scmp.le.s32.totalorder 1, %s75
    %p1202 = scmp.lt.s32.totalorder %s75, 5
    %p1203 = pnand %p1201, %p1202
    %p1204 = pneg %p1203
    // Predicated region
    $region153: #{csiformer_student_forward.3} parent=5 // pred_check
      _
    $region154: #{csiformer_student_forward.3} parent=5 // pred_check_branch
      %1206 = sbr.rel (%p1203) target = $region156
    $region155: #{csiformer_student_forward.3} parent=5 // pred_region
      %s1207 = ssub.s32 %s75, 1
      %p1208 = scmp.lt.s32.totalorder %s84, 1
      %s1209 = scalar_select %p1208, %s84, 1
      %s1210 = smul.addr %s1209, 8
      %s1211 = scalar_lea.vmem %s1, %s1210
      %p1212 = pneg %p113
      %p1213 = pneg %p110
      %p1214 = pneg %p134
      %p1215 = pneg %p131
      %p1216 = scmp.lt.s32.totalorder %s84, 1
      %s1217 = scalar_select %p1216, %s84, 1
      %s1218 = smul.addr %s1217, 2
      %s1219 = smul.addr %s1218, 8
      %s1220 = scalar_lea.vmem %s5, %s1219
      %p1221 = pneg %p160
      %p1222 = pneg %p157
      %p1223 = pneg %p181
      %p1224 = pneg %p178
      %p1225 = pneg %p202
      %p1226 = pneg %p199
      %p1227 = pneg %p223
      %p1228 = pneg %p220
      %p1229 = scmp.lt.s32.totalorder %s85, 1
      %s1230 = scalar_select %p1229, %s85, 1
      %s1231 = smul.addr %s1230, 8
      %s1232 = smul.addr %s1231, 8
      %s1233 = scalar_lea.vmem %s13, %s1232
      %p1234 = pneg %p249
      %p1235 = pneg %p246
      %p1236 = scmp.lt.s32.totalorder %s85, 1
      %s1237 = scalar_select %p1236, %s85, 1
      %s1238 = smul.addr %s1237, 8
      %s1239 = smul.addr %s1238, 8
      %s1240 = scalar_lea.vmem %s15, %s1239
      %p1241 = pneg %p275
      %p1242 = pneg %p272
      %p1243 = scmp.lt.s32.totalorder %s85, 1
      %s1244 = scalar_select %p1243, %s85, 1
      %s1245 = smul.addr %s1244, 8
      %s1246 = smul.addr %s1245, 8
      %s1247 = scalar_lea.vmem %s17, %s1246
      %p1248 = pneg %p301
      %p1249 = pneg %p298
      %p1250 = scmp.lt.s32.totalorder %s85, 1
      %s1251 = scalar_select %p1250, %s85, 1
      %s1252 = smul.addr %s1251, 2
      %s1253 = scalar_lea.vmem %s19, %s1252
      %p1254 = pneg %p327
      %p1255 = pneg %p324
      %p1256 = scmp.lt.s32.totalorder %s85, 1
      %s1257 = scalar_select %p1256, %s85, 1
      %s1258 = smul.addr %s1257, 2
      %s1259 = scalar_lea.vmem %s21, %s1258
      %p1260 = pneg %p353
      %p1261 = pneg %p350
      %p1262 = scmp.lt.s32.totalorder %s85, 1
      %s1263 = scalar_select %p1262, %s85, 1
      %s1264 = smul.addr %s1263, 2
      %s1265 = scalar_lea.vmem %s23, %s1264
      %p1266 = pneg %p379
      %p1267 = pneg %p376
      %p1268 = scmp.lt.s32.totalorder %s85, 1
      %s1269 = scalar_select %p1268, %s85, 1
      %s1270 = smul.addr %s1269, 4
      %s1271 = smul.addr %s1270, 8
      %s1272 = scalar_lea.vmem %s25, %s1271
      %p1273 = pneg %p405
      %p1274 = pneg %p402
      %p1275 = scmp.lt.s32.totalorder %s85, 1
      %s1276 = scalar_select %p1275, %s85, 1
      %s1277 = scalar_lea.vmem %s27, %s1276
      %p1278 = pneg %p431
      %p1279 = pneg %p428
      %p1280 = scmp.lt.s32.totalorder %s85, 1
      %s1281 = scalar_select %p1280, %s85, 1
      %s1282 = scalar_lea.vmem %s29, %s1281
      %p1283 = pneg %p457
      %p1284 = pneg %p454
      %p1285 = scmp.lt.s32.totalorder %s85, 1
      %s1286 = scalar_select %p1285, %s85, 1
      %s1287 = scalar_lea.vmem %s31, %s1286
      %p1288 = pneg %p483
      %p1289 = pneg %p480
      %p1290 = scmp.lt.s32.totalorder %s85, 1
      %s1291 = scalar_select %p1290, %s85, 1
      %s1292 = smul.addr %s1291, 8
      %s1293 = smul.addr %s1292, 8
      %s1294 = scalar_lea.vmem %s33, %s1293
      %p1295 = pneg %p509
      %p1296 = pneg %p506
      %p1297 = scmp.lt.s32.totalorder %s85, 1
      %s1298 = scalar_select %p1297, %s85, 1
      %s1299 = smul.addr %s1298, 8
      %s1300 = smul.addr %s1299, 8
      %s1301 = scalar_lea.vmem %s35, %s1300
      %p1302 = pneg %p535
      %p1303 = pneg %p532
      %p1304 = scmp.lt.s32.totalorder %s85, 1
      %s1305 = scalar_select %p1304, %s85, 1
      %s1306 = smul.addr %s1305, 8
      %s1307 = smul.addr %s1306, 8
      %s1308 = scalar_lea.vmem %s37, %s1307
      %p1309 = pneg %p561
      %p1310 = pneg %p558
      %p1311 = scmp.lt.s32.totalorder %s85, 1
      %s1312 = scalar_select %p1311, %s85, 1
      %s1313 = smul.addr %s1312, 2
      %s1314 = scalar_lea.vmem %s39, %s1313
      %p1315 = pneg %p587
      %p1316 = pneg %p584
      %p1317 = scmp.lt.s32.totalorder %s85, 1
      %s1318 = scalar_select %p1317, %s85, 1
      %s1319 = smul.addr %s1318, 2
      %s1320 = scalar_lea.vmem %s41, %s1319
      %p1321 = pneg %p613
      %p1322 = pneg %p610
      %p1323 = scmp.lt.s32.totalorder %s85, 1
      %s1324 = scalar_select %p1323, %s85, 1
      %s1325 = smul.addr %s1324, 2
      %s1326 = scalar_lea.vmem %s43, %s1325
      %p1327 = pneg %p639
      %p1328 = pneg %p636
      %p1329 = scmp.lt.s32.totalorder %s85, 1
      %s1330 = scalar_select %p1329, %s85, 1
      %s1331 = smul.addr %s1330, 4
      %s1332 = smul.addr %s1331, 8
      %s1333 = scalar_lea.vmem %s45, %s1332
      %p1334 = pneg %p665
      %p1335 = pneg %p662
      %p1336 = scmp.lt.s32.totalorder %s85, 1
      %s1337 = scalar_select %p1336, %s85, 1
      %s1338 = scalar_lea.vmem %s47, %s1337
      %p1339 = pneg %p691
      %p1340 = pneg %p688
      %p1341 = scmp.lt.s32.totalorder %s85, 1
      %s1342 = scalar_select %p1341, %s85, 1
      %s1343 = scalar_lea.vmem %s49, %s1342
      %p1344 = pneg %p717
      %p1345 = pneg %p714
      %p1346 = scmp.lt.s32.totalorder %s85, 1
      %s1347 = scalar_select %p1346, %s85, 1
      %s1348 = scalar_lea.vmem %s51, %s1347
      %p1349 = pneg %p743
      %p1350 = pneg %p740
      %p1351 = scmp.lt.s32.totalorder %s85, 1
      %s1352 = scalar_select %p1351, %s85, 1
      %s1353 = smul.addr %s1352, 4
      %s1354 = smul.addr %s1353, 8
      %s1355 = scalar_lea.vmem %s53, %s1354
      %p1356 = pneg %p769
      %p1357 = pneg %p766
      %p1358 = scmp.lt.s32.totalorder %s85, 1
      %s1359 = scalar_select %p1358, %s85, 1
      %s1360 = scalar_lea.vmem %s55, %s1359
      %p1361 = pneg %p795
      %p1362 = pneg %p792
      %p1363 = scmp.lt.s32.totalorder %s85, 1
      %s1364 = scalar_select %p1363, %s85, 1
      %s1365 = smul.addr %s1364, 8
      %s1366 = smul.addr %s1365, 8
      %s1367 = scalar_lea.vmem %s57, %s1366
      %p1368 = pneg %p821
      %p1369 = pneg %p818
      %p1370 = scmp.lt.s32.totalorder %s85, 1
      %s1371 = scalar_select %p1370, %s85, 1
      %s1372 = scalar_lea.vmem %s59, %s1371
      %p1373 = pneg %p847
      %p1374 = pneg %p844
      %p1375 = scmp.lt.s32.totalorder %s85, 1
      %s1376 = scalar_select %p1375, %s85, 1
      %s1377 = scalar_lea.vmem %s61, %s1376
      %p1378 = pneg %p873
      %p1379 = pneg %p870
      %p1380 = scmp.lt.s32.totalorder %s85, 1
      %s1381 = scalar_select %p1380, %s85, 1
      %s1382 = scalar_lea.vmem %s63, %s1381
      %p1383 = pneg %p899
      %p1384 = pneg %p896
      %p1385 = pneg %p920
      %p1386 = pneg %p917
      %p1387 = pneg %p941
      %p1388 = pneg %p938
      %p1389 = pneg %p967
      %p1390 = pneg %p964
      %p1391 = scmp.lt.s32.totalorder %s84, 1
      %s1392 = scalar_select %p1391, %s84, 1
      %s1393 = smul.addr %s1392, 8
      %s1394 = scalar_lea.vmem %s69, %s1393
      %p1395 = scmp.lt.s32.totalorder %s84, 1
      %s1396 = scalar_select %p1395, %s84, 1
      %s1397 = smul.addr %s1396, 8
      %s1398 = scalar_lea.vmem %s1, %s1397
      %p1399 = scmp.lt.s32.totalorder %s84, 1
      %s1400 = scalar_select %p1399, %s84, 1
      %s1401 = smul.addr %s1400, 2
      %s1402 = smul.addr %s1401, 8
      %s1403 = scalar_lea.vmem %s5, %s1402
      %p1404 = scmp.lt.s32.totalorder %s85, 1
      %s1405 = scalar_select %p1404, %s85, 1
      %s1406 = smul.addr %s1405, 8
      %s1407 = smul.addr %s1406, 8
      %s1408 = scalar_lea.vmem %s13, %s1407
      %p1409 = scmp.lt.s32.totalorder %s85, 1
      %s1410 = scalar_select %p1409, %s85, 1
      %s1411 = smul.addr %s1410, 8
      %s1412 = smul.addr %s1411, 8
      %s1413 = scalar_lea.vmem %s15, %s1412
      %p1414 = scmp.lt.s32.totalorder %s85, 1
      %s1415 = scalar_select %p1414, %s85, 1
      %s1416 = smul.addr %s1415, 8
      %s1417 = smul.addr %s1416, 8
      %s1418 = scalar_lea.vmem %s17, %s1417
      %p1419 = scmp.lt.s32.totalorder %s85, 1
      %s1420 = scalar_select %p1419, %s85, 1
      %s1421 = smul.addr %s1420, 2
      %s1422 = scalar_lea.vmem %s19, %s1421
      %p1423 = scmp.lt.s32.totalorder %s85, 1
      %s1424 = scalar_select %p1423, %s85, 1
      %s1425 = smul.addr %s1424, 2
      %s1426 = scalar_lea.vmem %s21, %s1425
      %p1427 = scmp.lt.s32.totalorder %s85, 1
      %s1428 = scalar_select %p1427, %s85, 1
      %s1429 = smul.addr %s1428, 2
      %s1430 = scalar_lea.vmem %s23, %s1429
      %p1431 = scmp.lt.s32.totalorder %s85, 1
      %s1432 = scalar_select %p1431, %s85, 1
      %s1433 = smul.addr %s1432, 4
      %s1434 = smul.addr %s1433, 8
      %s1435 = scalar_lea.vmem %s25, %s1434
      %p1436 = scmp.lt.s32.totalorder %s85, 1
      %s1437 = scalar_select %p1436, %s85, 1
      %s1438 = scalar_lea.vmem %s27, %s1437
      %p1439 = scmp.lt.s32.totalorder %s85, 1
      %s1440 = scalar_select %p1439, %s85, 1
      %s1441 = scalar_lea.vmem %s29, %s1440
      %p1442 = scmp.lt.s32.totalorder %s85, 1
      %s1443 = scalar_select %p1442, %s85, 1
      %s1444 = scalar_lea.vmem %s31, %s1443
      %p1445 = scmp.lt.s32.totalorder %s85, 1
      %s1446 = scalar_select %p1445, %s85, 1
      %s1447 = smul.addr %s1446, 8
      %s1448 = smul.addr %s1447, 8
      %s1449 = scalar_lea.vmem %s33, %s1448
      %p1450 = scmp.lt.s32.totalorder %s85, 1
      %s1451 = scalar_select %p1450, %s85, 1
      %s1452 = smul.addr %s1451, 8
      %s1453 = smul.addr %s1452, 8
      %s1454 = scalar_lea.vmem %s35, %s1453
      %p1455 = scmp.lt.s32.totalorder %s85, 1
      %s1456 = scalar_select %p1455, %s85, 1
      %s1457 = smul.addr %s1456, 8
      %s1458 = smul.addr %s1457, 8
      %s1459 = scalar_lea.vmem %s37, %s1458
      %p1460 = scmp.lt.s32.totalorder %s85, 1
      %s1461 = scalar_select %p1460, %s85, 1
      %s1462 = smul.addr %s1461, 2
      %s1463 = scalar_lea.vmem %s39, %s1462
      %p1464 = scmp.lt.s32.totalorder %s85, 1
      %s1465 = scalar_select %p1464, %s85, 1
      %s1466 = smul.addr %s1465, 2
      %s1467 = scalar_lea.vmem %s41, %s1466
      %p1468 = scmp.lt.s32.totalorder %s85, 1
      %s1469 = scalar_select %p1468, %s85, 1
      %s1470 = smul.addr %s1469, 2
      %s1471 = scalar_lea.vmem %s43, %s1470
      %p1472 = scmp.lt.s32.totalorder %s85, 1
      %s1473 = scalar_select %p1472, %s85, 1
      %s1474 = smul.addr %s1473, 4
      %s1475 = smul.addr %s1474, 8
      %s1476 = scalar_lea.vmem %s45, %s1475
      %p1477 = scmp.lt.s32.totalorder %s85, 1
      %s1478 = scalar_select %p1477, %s85, 1
      %s1479 = scalar_lea.vmem %s47, %s1478
      %p1480 = scmp.lt.s32.totalorder %s85, 1
      %s1481 = scalar_select %p1480, %s85, 1
      %s1482 = scalar_lea.vmem %s49, %s1481
      %p1483 = scmp.lt.s32.totalorder %s85, 1
      %s1484 = scalar_select %p1483, %s85, 1
      %s1485 = scalar_lea.vmem %s51, %s1484
      %p1486 = scmp.lt.s32.totalorder %s85, 1
      %s1487 = scalar_select %p1486, %s85, 1
      %s1488 = smul.addr %s1487, 4
      %s1489 = smul.addr %s1488, 8
      %s1490 = scalar_lea.vmem %s53, %s1489
      %p1491 = scmp.lt.s32.totalorder %s85, 1
      %s1492 = scalar_select %p1491, %s85, 1
      %s1493 = scalar_lea.vmem %s55, %s1492
      %p1494 = scmp.lt.s32.totalorder %s85, 1
      %s1495 = scalar_select %p1494, %s85, 1
      %s1496 = smul.addr %s1495, 8
      %s1497 = smul.addr %s1496, 8
      %s1498 = scalar_lea.vmem %s57, %s1497
      %p1499 = scmp.lt.s32.totalorder %s85, 1
      %s1500 = scalar_select %p1499, %s85, 1
      %s1501 = scalar_lea.vmem %s59, %s1500
      %p1502 = scmp.lt.s32.totalorder %s85, 1
      %s1503 = scalar_select %p1502, %s85, 1
      %s1504 = scalar_lea.vmem %s61, %s1503
      %p1505 = scmp.lt.s32.totalorder %s85, 1
      %s1506 = scalar_select %p1505, %s85, 1
      %s1507 = scalar_lea.vmem %s63, %s1506
      %p1508 = scmp.lt.s32.totalorder %s84, 1
      %s1509 = scalar_select %p1508, %s84, 1
      %s1510 = smul.addr %s1509, 8
      %s1511 = scalar_lea.vmem %s69, %s1510
      %p1512 = scmp.eq.s32.totalorder %s85, 0
      // Predicated region
      $region157: #{csiformer_student_forward.3} parent=155 // pred_check
        %p1513 = pneg %p1512
      $region158: #{csiformer_student_forward.3} parent=155 // pred_check_branch
        %1515 = sbr.rel (%p1513) target = $region160
      $region159: #{csiformer_student_forward.3} parent=155 // pred_region
        %v1516 = vld [vmem:[%s1398] sm:$0xff]
        %v1517 = vld [vmem:[%s3] sm:$0xff]
        %v1518 = vadd.f32 %v1516, %v1517
        %vm1519 = vcmask 261120
        %1520 = vst.msk [vmem:[#allocation2] sm:$0xff] %vm1519, %v1518
        %v1521 = vld [vmem:[%s1403] sm:$0xff]
        %v1522 = vld [vmem:[%s1403 + $0x8] sm:$0xff]
        %v1523 = vld [vmem:[%s7] sm:$0xff]
        %v1524 = vld [vmem:[%s9] sm:$0x1]
        %v1526 = vperm.slane %v1524, 0
        %vm1528 = vcmask 64512
        %v1530 = vsel %vm1528, %v1521, 0
        %v1533 = vsel %vm1528, %v1522, 0
        %1535 = vmatpush.msra.mxu0 0.0
        %1536 = vmatpush.msra.mxu0 0.0
        %1537 = vmatpush.msra.mxu0 0.0
        %1538 = vmatpush.msra.mxu0 0.0
        %1539 = vmatpush.msra.mxu0 0.0
        %1540 = vmatpush.msra.mxu0 0.0
        %1541 = vmatpush.msra.mxu0 0.0
        %1542 = vmatpush.msra.mxu0 0.0
        %1543 = vmatpush.msra.mxu0 0.0
        %1544 = vmatpush.msra.mxu0 0.0
        %1545 = vmatpush.msra.mxu0 0.0
        %1546 = vmatpush.msra.mxu0 0.0
        %1547 = vmatpush.msra.mxu0 0.0
        %1548 = vmatpush.msra.mxu0 0.0
        %1549 = vmatpush.msra.mxu0 0.0
        %1550 = vmatpush.msra.mxu0 %v1523
        %1551 = vmatmul.f32.gmra.mxu0 %v1530
        %v1552 = vpop.f32.mrf.mxu0
        %v1553 = vadd.f32 %v1526, %v1552
        %1554 = vmatmul.f32.gmra.mxu0 %v1533
        %v1555 = vpop.f32.mrf.mxu0
        %v1556 = vadd.f32 %v1526, %v1555
        %1557 = vdwg.mxu0
        %v1558 = vld [vmem:[%s11] sm:$0xff]
        %v1559 = vld [vmem:[%s11 + $0x8] sm:$0xff]
        %v1560 = vadd.f32 %v1553, %v1558
        %v1561 = vadd.f32 %v1556, %v1559
        %1562 = vst.msk [vmem:[#allocation3] sm:$0xff] %vm1519, %v1560
        %1563 = vst.msk [vmem:[#allocation3 + $0x8] sm:$0xff] %vm1519, %v1561
      $region160: #{csiformer_student_forward.3} parent=155 // pred_fallthru
        _
      %v1564 = vld [vmem:[#allocation2] sm:$0xff]
      %v1565 = vld [vmem:[#allocation3] sm:$0xff]
      %v1566 = vld [vmem:[#allocation3 + $0x8] sm:$0xff]
      %v1567 = vld [vmem:[%s1408] sm:$0xff]
      %v1568 = vld [vmem:[%s1408 + $0x8] sm:$0xff]
      %v1569 = vld [vmem:[%s1408 + $0x10] sm:$0xff]
      %v1570 = vld [vmem:[%s1408 + $0x18] sm:$0xff]
      %v1571 = vld [vmem:[%s1422] sm:$0x1]
      %v1573 = vperm.slane %v1571, 0
      %vm1575 = vcmask 261120
      %v1577 = vsel %vm1575, %v1564, 0
      %1579 = vmatpush.msra.mxu0 0.0
      %1580 = vmatpush.msra.mxu0 0.0
      %1581 = vmatpush.msra.mxu0 0.0
      %1582 = vmatpush.msra.mxu0 0.0
      %1583 = vmatpush.msra.mxu0 0.0
      %1584 = vmatpush.msra.mxu0 0.0
      %1585 = vmatpush.msra.mxu0 0.0
      %1586 = vmatpush.msra.mxu0 0.0
      %1587 = vmatpush.msra.mxu0 0.0
      %1588 = vmatpush.msra.mxu0 0.0
      %1589 = vmatpush.msra.mxu0 0.0
      %1590 = vmatpush.msra.mxu0 0.0
      %1591 = vmatpush.msra.mxu0 %v1570
      %1592 = vmatpush.msra.mxu0 %v1569
      %1593 = vmatpush.msra.mxu0 %v1568
      %1594 = vmatpush.msra.mxu0 %v1567
      %1595 = vmatmul.f32.gmra.mxu0 %v1577
      %v1596 = vpop.f32.mrf.mxu0
      %v1597 = vadd.f32 %v1573, %v1596
      %1598 = vdwg.mxu0
      %v1599 = vld [vmem:[%s1413] sm:$0xff]
      %v1600 = vld [vmem:[%s1413 + $0x8] sm:$0xff]
      %v1601 = vld [vmem:[%s1413 + $0x10] sm:$0xff]
      %v1602 = vld [vmem:[%s1413 + $0x18] sm:$0xff]
      %v1603 = vld [vmem:[%s1426] sm:$0x1]
      %v1605 = vperm.slane %v1603, 0
      %1607 = vmatpush.msra.mxu0 0.0
      %1608 = vmatpush.msra.mxu0 0.0
      %1609 = vmatpush.msra.mxu0 0.0
      %1610 = vmatpush.msra.mxu0 0.0
      %1611 = vmatpush.msra.mxu0 0.0
      %1612 = vmatpush.msra.mxu0 0.0
      %1613 = vmatpush.msra.mxu0 0.0
      %1614 = vmatpush.msra.mxu0 0.0
      %1615 = vmatpush.msra.mxu0 0.0
      %1616 = vmatpush.msra.mxu0 0.0
      %1617 = vmatpush.msra.mxu0 0.0
      %1618 = vmatpush.msra.mxu0 0.0
      %1619 = vmatpush.msra.mxu0 %v1602
      %1620 = vmatpush.msra.mxu0 %v1601
      %1621 = vmatpush.msra.mxu0 %v1600
      %1622 = vmatpush.msra.mxu0 %v1599
      %1623 = vmatmul.f32.gmra.mxu0 %v1577
      %v1624 = vpop.f32.mrf.mxu0
      %v1625 = vadd.f32 %v1605, %v1624
      %1626 = vdwg.mxu0
      %v1627 = vld [vmem:[%s1418] sm:$0xff]
      %v1628 = vld [vmem:[%s1418 + $0x8] sm:$0xff]
      %v1629 = vld [vmem:[%s1418 + $0x10] sm:$0xff]
      %v1630 = vld [vmem:[%s1418 + $0x18] sm:$0xff]
      %v1631 = vld [vmem:[%s1430] sm:$0x1]
      %v1633 = vperm.slane %v1631, 0
      %1635 = vmatpush.msra.mxu0 0.0
      %1636 = vmatpush.msra.mxu0 0.0
      %1637 = vmatpush.msra.mxu0 0.0
      %1638 = vmatpush.msra.mxu0 0.0
      %1639 = vmatpush.msra.mxu0 0.0
      %1640 = vmatpush.msra.mxu0 0.0
      %1641 = vmatpush.msra.mxu0 0.0
      %1642 = vmatpush.msra.mxu0 0.0
      %1643 = vmatpush.msra.mxu0 0.0
      %1644 = vmatpush.msra.mxu0 0.0
      %1645 = vmatpush.msra.mxu0 0.0
      %1646 = vmatpush.msra.mxu0 0.0
      %1647 = vmatpush.msra.mxu0 %v1630
      %1648 = vmatpush.msra.mxu0 %v1629
      %1649 = vmatpush.msra.mxu0 %v1628
      %1650 = vmatpush.msra.mxu0 %v1627
      %1651 = vmatmul.f32.gmra.mxu0 %v1577
      %v1652 = vpop.f32.mrf.mxu0
      %v1653 = vadd.f32 %v1633, %v1652
      %1654 = vdwg.mxu0
      %vm1655 = vcmask 130048
      %v1657 = vsel %vm1655, %v1597, 0
      %v1660 = vsel %vm1655, %v1625, 0
      %1662 = vmatpush.xpose.msra.mxu0 0.0
      %1663 = vmatpush.xpose.msra.mxu0 0.0
      %1664 = vmatpush.xpose.msra.mxu0 0.0
      %1665 = vmatpush.xpose.msra.mxu0 0.0
      %1666 = vmatpush.xpose.msra.mxu0 0.0
      %1667 = vmatpush.xpose.msra.mxu0 0.0
      %1668 = vmatpush.xpose.msra.mxu0 0.0
      %1669 = vmatpush.xpose.msra.mxu0 0.0
      %1670 = vmatpush.xpose.msra.mxu0 0.0
      %1671 = vmatpush.xpose.msra.mxu0 0.0
      %1672 = vmatpush.xpose.msra.mxu0 0.0
      %1673 = vmatpush.xpose.msra.mxu0 0.0
      %1674 = vmatpush.xpose.msra.mxu0 0.0
      %1675 = vmatpush.xpose.msra.mxu0 0.0
      %1676 = vmatpush.xpose.msra.mxu0 0.0
      %1677 = vmatpush.xpose.msra.mxu0 %v1660
      %1678 = vmatmul.f32.gmra.mxu0 %v1657
      %v1679 = vpop.f32.mrf.mxu0
      %v1680 = vadd.f32 0.0, %v1679
      %1681 = vdwg.mxu0
      %v1682 = vmul.f32 %v1680, 0.25
      %vm1683 = vcmask 64512
      %v1684 = vsel %vm1683, %v1682, -inf
      %1685 = vmax.xlane.f32.xlu0 %v1684
      %v1686 = vpop.xlane.xlu0 %1685
      %v1687 = vsub.f32 %v1682, %v1686
      %v1688 = vmul.f32 %v1687, 1.442695
      %v1689 = vpow.pop %v1688
      %v1690 = vsel %vm1683, %v1689, 0.0
      %1691 = vadd.xlane.f32.xlu0 %v1690
      %v1692 = vpop.xlane.xlu0 %1691
      %v1693 = vrcp.pop %v1692
      %v1694 = vmul.f32 %v1692, %v1693
      %v1695 = vsub.f32 1.0, %v1694
      %v1696 = vmul.f32 %v1693, %v1695
      %v1697 = vadd.f32 %v1693, %v1696
      %vm1698 = vweird.f32 %v1692
      %vm1699 = vweird.f32 %v1693
      %vm1700 = vmor %vm1698, %vm1699
      %v1701 = vsel %vm1700, %v1693, %v1697
      %v1702 = vand.u32 2147483647, %v1692
      %vm1703 = vcmp.eq.f32.partialorder %v1702, 8.507059e+37
      %v1704 = vand.u32 %v1692, 2147483648
      %v1705 = vor.u32 1.1754944e-38, %v1704
      %v1706 = vsel %vm1703, %v1705, %v1701
      %v1707 = vmul.f32 %v1689, %v1706
      %v1709 = vsel %vm1683, %v1707, 0
      %1711 = vmatpush.msra.mxu0 0.0
      %1712 = vmatpush.msra.mxu0 0.0
      %1713 = vmatpush.msra.mxu0 0.0
      %1714 = vmatpush.msra.mxu0 0.0
      %1715 = vmatpush.msra.mxu0 0.0
      %1716 = vmatpush.msra.mxu0 0.0
      %1717 = vmatpush.msra.mxu0 0.0
      %1718 = vmatpush.msra.mxu0 0.0
      %1719 = vmatpush.msra.mxu0 0.0
      %1720 = vmatpush.msra.mxu0 0.0
      %1721 = vmatpush.msra.mxu0 0.0
      %1722 = vmatpush.msra.mxu0 0.0
      %1723 = vmatpush.msra.mxu0 0.0
      %1724 = vmatpush.msra.mxu0 0.0
      %1725 = vmatpush.msra.mxu0 0.0
      %1726 = vmatpush.msra.mxu0 %v1653
      %1727 = vmatmul.f32.gmra.mxu0 %v1709
      %v1728 = vpop.f32.mrf.mxu0
      %v1729 = vadd.f32 0.0, %v1728
      %1730 = vdwg.mxu0
      %v1731 = vld [vmem:[%s1435] sm:$0xff]
      %v1732 = vld [vmem:[%s1435 + $0x8] sm:$0xff]
      %s1733 = scalar_lea.vmem %s1408, 32
      %v1734 = vld [vmem:[%s1733] sm:$0xff]
      %v1735 = vld [vmem:[%s1733 + $0x8] sm:$0xff]
      %v1736 = vld [vmem:[%s1733 + $0x10] sm:$0xff]
      %v1737 = vld [vmem:[%s1733 + $0x18] sm:$0xff]
      %s1738 = scalar_lea.vmem %s1422, 1
      %v1739 = vld [vmem:[%s1738] sm:$0x1]
      %v1741 = vperm.slane %v1739, 0
      %1743 = vmatpush.msra.mxu0 0.0
      %1744 = vmatpush.msra.mxu0 0.0
      %1745 = vmatpush.msra.mxu0 0.0
      %1746 = vmatpush.msra.mxu0 0.0
      %1747 = vmatpush.msra.mxu0 0.0
      %1748 = vmatpush.msra.mxu0 0.0
      %1749 = vmatpush.msra.mxu0 0.0
      %1750 = vmatpush.msra.mxu0 0.0
      %1751 = vmatpush.msra.mxu0 0.0
      %1752 = vmatpush.msra.mxu0 0.0
      %1753 = vmatpush.msra.mxu0 0.0
      %1754 = vmatpush.msra.mxu0 0.0
      %1755 = vmatpush.msra.mxu0 %v1737
      %1756 = vmatpush.msra.mxu0 %v1736
      %1757 = vmatpush.msra.mxu0 %v1735
      %1758 = vmatpush.msra.mxu0 %v1734
      %1759 = vmatmul.f32.gmra.mxu0 %v1577
      %v1760 = vpop.f32.mrf.mxu0
      %v1761 = vadd.f32 %v1741, %v1760
      %1762 = vdwg.mxu0
      %s1763 = scalar_lea.vmem %s1413, 32
      %v1764 = vld [vmem:[%s1763] sm:$0xff]
      %v1765 = vld [vmem:[%s1763 + $0x8] sm:$0xff]
      %v1766 = vld [vmem:[%s1763 + $0x10] sm:$0xff]
      %v1767 = vld [vmem:[%s1763 + $0x18] sm:$0xff]
      %s1768 = scalar_lea.vmem %s1426, 1
      %v1769 = vld [vmem:[%s1768] sm:$0x1]
      %v1771 = vperm.slane %v1769, 0
      %1773 = vmatpush.msra.mxu0 0.0
      %1774 = vmatpush.msra.mxu0 0.0
      %1775 = vmatpush.msra.mxu0 0.0
      %1776 = vmatpush.msra.mxu0 0.0
      %1777 = vmatpush.msra.mxu0 0.0
      %1778 = vmatpush.msra.mxu0 0.0
      %1779 = vmatpush.msra.mxu0 0.0
      %1780 = vmatpush.msra.mxu0 0.0
      %1781 = vmatpush.msra.mxu0 0.0
      %1782 = vmatpush.msra.mxu0 0.0
      %1783 = vmatpush.msra.mxu0 0.0
      %1784 = vmatpush.msra.mxu0 0.0
      %1785 = vmatpush.msra.mxu0 %v1767
      %1786 = vmatpush.msra.mxu0 %v1766
      %1787 = vmatpush.msra.mxu0 %v1765
      %1788 = vmatpush.msra.mxu0 %v1764
      %1789 = vmatmul.f32.gmra.mxu0 %v1577
      %v1790 = vpop.f32.mrf.mxu0
      %v1791 = vadd.f32 %v1771, %v1790
      %1792 = vdwg.mxu0
      %s1793 = scalar_lea.vmem %s1418, 32
      %v1794 = vld [vmem:[%s1793] sm:$0xff]
      %v1795 = vld [vmem:[%s1793 + $0x8] sm:$0xff]
      %v1796 = vld [vmem:[%s1793 + $0x10] sm:$0xff]
      %v1797 = vld [vmem:[%s1793 + $0x18] sm:$0xff]
      %s1798 = scalar_lea.vmem %s1430, 1
      %v1799 = vld [vmem:[%s1798] sm:$0x1]
      %v1801 = vperm.slane %v1799, 0
      %1803 = vmatpush.msra.mxu0 0.0
      %1804 = vmatpush.msra.mxu0 0.0
      %1805 = vmatpush.msra.mxu0 0.0
      %1806 = vmatpush.msra.mxu0 0.0
      %1807 = vmatpush.msra.mxu0 0.0
      %1808 = vmatpush.msra.mxu0 0.0
      %1809 = vmatpush.msra.mxu0 0.0
      %1810 = vmatpush.msra.mxu0 0.0
      %1811 = vmatpush.msra.mxu0 0.0
      %1812 = vmatpush.msra.mxu0 0.0
      %1813 = vmatpush.msra.mxu0 0.0
      %1814 = vmatpush.msra.mxu0 0.0
      %1815 = vmatpush.msra.mxu0 %v1797
      %1816 = vmatpush.msra.mxu0 %v1796
      %1817 = vmatpush.msra.mxu0 %v1795
      %1818 = vmatpush.msra.mxu0 %v1794
      %1819 = vmatmul.f32.gmra.mxu0 %v1577
      %v1820 = vpop.f32.mrf.mxu0
      %v1821 = vadd.f32 %v1801, %v1820
      %1822 = vdwg.mxu0
      %v1824 = vsel %vm1655, %v1761, 0
      %v1827 = vsel %vm1655, %v1791, 0
      %1829 = vmatpush.xpose.msra.mxu0 0.0
      %1830 = vmatpush.xpose.msra.mxu0 0.0
      %1831 = vmatpush.xpose.msra.mxu0 0.0
      %1832 = vmatpush.xpose.msra.mxu0 0.0
      %1833 = vmatpush.xpose.msra.mxu0 0.0
      %1834 = vmatpush.xpose.msra.mxu0 0.0
      %1835 = vmatpush.xpose.msra.mxu0 0.0
      %1836 = vmatpush.xpose.msra.mxu0 0.0
      %1837 = vmatpush.xpose.msra.mxu0 0.0
      %1838 = vmatpush.xpose.msra.mxu0 0.0
      %1839 = vmatpush.xpose.msra.mxu0 0.0
      %1840 = vmatpush.xpose.msra.mxu0 0.0
      %1841 = vmatpush.xpose.msra.mxu0 0.0
      %1842 = vmatpush.xpose.msra.mxu0 0.0
      %1843 = vmatpush.xpose.msra.mxu0 0.0
      %1844 = vmatpush.xpose.msra.mxu0 %v1827
      %1845 = vmatmul.f32.gmra.mxu0 %v1824
      %v1846 = vpop.f32.mrf.mxu0
      %v1847 = vadd.f32 0.0, %v1846
      %1848 = vdwg.mxu0
      %v1849 = vmul.f32 %v1847, 0.25
      %v1850 = vsel %vm1683, %v1849, -inf
      %1851 = vmax.xlane.f32.xlu0 %v1850
      %v1852 = vpop.xlane.xlu0 %1851
      %v1853 = vsub.f32 %v1849, %v1852
      %v1854 = vmul.f32 %v1853, 1.442695
      %v1855 = vpow.pop %v1854
      %v1856 = vsel %vm1683, %v1855, 0.0
      %1857 = vadd.xlane.f32.xlu0 %v1856
      %v1858 = vpop.xlane.xlu0 %1857
      %v1859 = vrcp.pop %v1858
      %v1860 = vmul.f32 %v1858, %v1859
      %v1861 = vsub.f32 1.0, %v1860
      %v1862 = vmul.f32 %v1859, %v1861
      %v1863 = vadd.f32 %v1859, %v1862
      %vm1864 = vweird.f32 %v1858
      %vm1865 = vweird.f32 %v1859
      %vm1866 = vmor %vm1864, %vm1865
      %v1867 = vsel %vm1866, %v1859, %v1863
      %v1868 = vand.u32 2147483647, %v1858
      %vm1869 = vcmp.eq.f32.partialorder %v1868, 8.507059e+37
      %v1870 = vand.u32 %v1858, 2147483648
      %v1871 = vor.u32 1.1754944e-38, %v1870
      %v1872 = vsel %vm1869, %v1871, %v1867
      %v1873 = vmul.f32 %v1855, %v1872
      %v1875 = vsel %vm1683, %v1873, 0
      %1877 = vmatpush.msra.mxu0 0.0
      %1878 = vmatpush.msra.mxu0 0.0
      %1879 = vmatpush.msra.mxu0 0.0
      %1880 = vmatpush.msra.mxu0 0.0
      %1881 = vmatpush.msra.mxu0 0.0
      %1882 = vmatpush.msra.mxu0 0.0
      %1883 = vmatpush.msra.mxu0 0.0
      %1884 = vmatpush.msra.mxu0 0.0
      %1885 = vmatpush.msra.mxu0 0.0
      %1886 = vmatpush.msra.mxu0 0.0
      %1887 = vmatpush.msra.mxu0 0.0
      %1888 = vmatpush.msra.mxu0 0.0
      %1889 = vmatpush.msra.mxu0 0.0
      %1890 = vmatpush.msra.mxu0 0.0
      %1891 = vmatpush.msra.mxu0 0.0
      %1892 = vmatpush.msra.mxu0 %v1821
      %1893 = vmatmul.f32.gmra.mxu0 %v1875
      %v1894 = vpop.f32.mrf.mxu0
      %v1895 = vadd.f32 0.0, %v1894
      %1896 = vdwg.mxu0
      %s1897 = scalar_lea.vmem %s1435, 16
      %v1898 = vld [vmem:[%s1897] sm:$0xff]
      %v1899 = vld [vmem:[%s1897 + $0x8] sm:$0xff]
      %v1901 = vsel %vm1655, %v1895, 0
      %1903 = vmatpush.msra.mxu0 0.0
      %1904 = vmatpush.msra.mxu0 0.0
      %1905 = vmatpush.msra.mxu0 0.0
      %1906 = vmatpush.msra.mxu0 0.0
      %1907 = vmatpush.msra.mxu0 0.0
      %1908 = vmatpush.msra.mxu0 0.0
      %1909 = vmatpush.msra.mxu0 0.0
      %1910 = vmatpush.msra.mxu0 0.0
      %1911 = vmatpush.msra.mxu0 0.0
      %1912 = vmatpush.msra.mxu0 0.0
      %1913 = vmatpush.msra.mxu0 0.0
      %1914 = vmatpush.msra.mxu0 0.0
      %1915 = vmatpush.msra.mxu0 0.0
      %1916 = vmatpush.msra.mxu0 0.0
      %1917 = vmatpush.msra.mxu0 %v1899
      %1918 = vmatpush.msra.mxu0 %v1898
      %1919 = vmatmul.f32.gmra.mxu0 %v1901
      %v1920 = vpop.f32.mrf.mxu0
      %v1921 = vadd.f32 0.0, %v1920
      %1922 = vdwg.mxu0
      %v1924 = vsel %vm1655, %v1729, 0
      %1926 = vmatpush.msra.mxu0 0.0
      %1927 = vmatpush.msra.mxu0 0.0
      %1928 = vmatpush.msra.mxu0 0.0
      %1929 = vmatpush.msra.mxu0 0.0
      %1930 = vmatpush.msra.mxu0 0.0
      %1931 = vmatpush.msra.mxu0 0.0
      %1932 = vmatpush.msra.mxu0 0.0
      %1933 = vmatpush.msra.mxu0 0.0
      %1934 = vmatpush.msra.mxu0 0.0
      %1935 = vmatpush.msra.mxu0 0.0
      %1936 = vmatpush.msra.mxu0 0.0
      %1937 = vmatpush.msra.mxu0 0.0
      %1938 = vmatpush.msra.mxu0 0.0
      %1939 = vmatpush.msra.mxu0 0.0
      %1940 = vmatpush.msra.mxu0 %v1732
      %1941 = vmatpush.msra.mxu0 %v1731
      %1942 = vmatmul.f32.gmra.mxu0 %v1924
      %v1943 = vpop.f32.mrf.mxu0
      %v1944 = vadd.f32 %v1921, %v1943
      %1945 = vdwg.mxu0
      %v1946 = vld [vmem:[%s1438] sm:$0x1]
      %v1948 = vperm.slane %v1946, 0
      %v1950 = vadd.f32 %v1944, %v1948
      %v1951 = vadd.f32 %v1564, %v1950
      %v1952 = vld [vmem:[%s1441] sm:$0x1]
      %v1953 = vld [vmem:[%s1444] sm:$0x1]
      %v1954 = vsel %vm1575, %v1951, 0.0
      %1955 = vadd.xlane.f32.xlu0 %v1954
      %v1956 = vpop.xlane.xlu0 %1955
      %v1957 = vrcp.pop 32.0
      %v1958 = vmul.f32 32.0, %v1957
      %v1959 = vsub.f32 1.0, %v1958
      %v1960 = vmul.f32 %v1957, %v1959
      %v1961 = vadd.f32 %v1957, %v1960
      %vm1962 = vweird.f32 %v1957
      %v1963 = vsel %vm1962, %v1957, %v1961
      %v1964 = vmul.f32 %v1956, %v1963
      %v1965 = vsub.f32 %v1951, %v1964
      %v1966 = vmul.f32 %v1965, %v1965
      %v1967 = vsel %vm1575, %v1966, 0.0
      %1968 = vadd.xlane.f32.xlu0 %v1967
      %v1969 = vpop.xlane.xlu0 %1968
      %v1970 = vmul.f32 %v1969, %v1963
      %v1971 = vadd.f32 %v1970, 1e-05
      %v1972 = vrsqrt.pop %v1971
      %v1973 = vmul.f32 %v1972, %v1971
      %v1974 = vmul.f32 %v1973, %v1972
      %v1975 = vmul.f32 0.5, %v1974
      %v1976 = vsub.f32 1.5, %v1975
      %v1977 = vmul.f32 %v1972, %v1976
      %vm1978 = vweird.f32 %v1971
      %vm1979 = vweird.f32 %v1972
      %vm1980 = vmor %vm1978, %vm1979
      %v1981 = vsel %vm1980, %v1972, %v1977
      %v1982 = vmul.f32 %v1965, %v1981
      %v1984 = vperm.slane %v1952, 0
      %v1986 = vmul.f32 %v1982, %v1984
      %v1988 = vperm.slane %v1953, 0
      %v1990 = vadd.f32 %v1986, %v1988
      %v1991 = vld [vmem:[%s1449] sm:$0xff]
      %v1992 = vld [vmem:[%s1449 + $0x8] sm:$0xff]
      %v1993 = vld [vmem:[%s1449 + $0x10] sm:$0xff]
      %v1994 = vld [vmem:[%s1449 + $0x18] sm:$0xff]
      %v1995 = vld [vmem:[%s1463] sm:$0x1]
      %v1997 = vperm.slane %v1995, 0
      %v2000 = vsel %vm1575, %v1990, 0
      %2002 = vmatpush.msra.mxu0 0.0
      %2003 = vmatpush.msra.mxu0 0.0
      %2004 = vmatpush.msra.mxu0 0.0
      %2005 = vmatpush.msra.mxu0 0.0
      %2006 = vmatpush.msra.mxu0 0.0
      %2007 = vmatpush.msra.mxu0 0.0
      %2008 = vmatpush.msra.mxu0 0.0
      %2009 = vmatpush.msra.mxu0 0.0
      %2010 = vmatpush.msra.mxu0 0.0
      %2011 = vmatpush.msra.mxu0 0.0
      %2012 = vmatpush.msra.mxu0 0.0
      %2013 = vmatpush.msra.mxu0 0.0
      %2014 = vmatpush.msra.mxu0 %v1994
      %2015 = vmatpush.msra.mxu0 %v1993
      %2016 = vmatpush.msra.mxu0 %v1992
      %2017 = vmatpush.msra.mxu0 %v1991
      %2018 = vmatmul.f32.gmra.mxu0 %v2000
      %v2019 = vpop.f32.mrf.mxu0
      %v2020 = vadd.f32 %v1997, %v2019
      %2021 = vdwg.mxu0
      %v2022 = vld [vmem:[%s1454] sm:$0xff]
      %v2023 = vld [vmem:[%s1454 + $0x8] sm:$0xff]
      %v2024 = vld [vmem:[%s1454 + $0x10] sm:$0xff]
      %v2025 = vld [vmem:[%s1454 + $0x18] sm:$0xff]
      %v2026 = vld [vmem:[%s1467] sm:$0x1]
      %v2028 = vperm.slane %v2026, 0
      %v2031 = vsel %vm1575, %v1565, 0
      %v2034 = vsel %vm1575, %v1566, 0
      %2036 = vmatpush.msra.mxu0 0.0
      %2037 = vmatpush.msra.mxu0 0.0
      %2038 = vmatpush.msra.mxu0 0.0
      %2039 = vmatpush.msra.mxu0 0.0
      %2040 = vmatpush.msra.mxu0 0.0
      %2041 = vmatpush.msra.mxu0 0.0
      %2042 = vmatpush.msra.mxu0 0.0
      %2043 = vmatpush.msra.mxu0 0.0
      %2044 = vmatpush.msra.mxu0 0.0
      %2045 = vmatpush.msra.mxu0 0.0
      %2046 = vmatpush.msra.mxu0 0.0
      %2047 = vmatpush.msra.mxu0 0.0
      %2048 = vmatpush.msra.mxu0 %v2025
      %2049 = vmatpush.msra.mxu0 %v2024
      %2050 = vmatpush.msra.mxu0 %v2023
      %2051 = vmatpush.msra.mxu0 %v2022
      %2052 = vmatmul.f32.gmra.mxu0 %v2031
      %v2053 = vpop.f32.mrf.mxu0
      %v2054 = vadd.f32 %v2028, %v2053
      %2055 = vmatmul.f32.gmra.mxu0 %v2034
      %v2056 = vpop.f32.mrf.mxu0
      %v2057 = vadd.f32 %v2028, %v2056
      %2058 = vdwg.mxu0
      %v2059 = vld [vmem:[%s1459] sm:$0xff]
      %v2060 = vld [vmem:[%s1459 + $0x8] sm:$0xff]
      %v2061 = vld [vmem:[%s1459 + $0x10] sm:$0xff]
      %v2062 = vld [vmem:[%s1459 + $0x18] sm:$0xff]
      %v2063 = vld [vmem:[%s1471] sm:$0x1]
      %v2065 = vperm.slane %v2063, 0
      %2067 = vmatpush.msra.mxu0 0.0
      %2068 = vmatpush.msra.mxu0 0.0
      %2069 = vmatpush.msra.mxu0 0.0
      %2070 = vmatpush.msra.mxu0 0.0
      %2071 = vmatpush.msra.mxu0 0.0
      %2072 = vmatpush.msra.mxu0 0.0
      %2073 = vmatpush.msra.mxu0 0.0
      %2074 = vmatpush.msra.mxu0 0.0
      %2075 = vmatpush.msra.mxu0 0.0
      %2076 = vmatpush.msra.mxu0 0.0
      %2077 = vmatpush.msra.mxu0 0.0
      %2078 = vmatpush.msra.mxu0 0.0
      %2079 = vmatpush.msra.mxu0 %v2062
      %2080 = vmatpush.msra.mxu0 %v2061
      %2081 = vmatpush.msra.mxu0 %v2060
      %2082 = vmatpush.msra.mxu0 %v2059
      %2083 = vmatmul.f32.gmra.mxu0 %v2031
      %v2084 = vpop.f32.mrf.mxu0
      %v2085 = vadd.f32 %v2065, %v2084
      %2086 = vmatmul.f32.gmra.mxu0 %v2034
      %v2087 = vpop.f32.mrf.mxu0
      %v2088 = vadd.f32 %v2065, %v2087
      %2089 = vdwg.mxu0
      %v2091 = vsel %vm1655, %v2020, 0
      %v2094 = vsel %vm1655, %v2054, 0
      %v2097 = vsel %vm1655, %v2057, 0
      %2099 = vmatpush.xpose.msra.mxu0 0.0
      %2100 = vmatpush.xpose.msra.mxu0 0.0
      %2101 = vmatpush.xpose.msra.mxu0 0.0
      %2102 = vmatpush.xpose.msra.mxu0 0.0
      %2103 = vmatpush.xpose.msra.mxu0 0.0
      %2104 = vmatpush.xpose.msra.mxu0 0.0
      %2105 = vmatpush.xpose.msra.mxu0 0.0
      %2106 = vmatpush.xpose.msra.mxu0 0.0
      %2107 = vmatpush.xpose.msra.mxu0 0.0
      %2108 = vmatpush.xpose.msra.mxu0 0.0
      %2109 = vmatpush.xpose.msra.mxu0 0.0
      %2110 = vmatpush.xpose.msra.mxu0 0.0
      %2111 = vmatpush.xpose.msra.mxu0 0.0
      %2112 = vmatpush.xpose.msra.mxu0 0.0
      %2113 = vmatpush.xpose.msra.mxu0 %v2097
      %2114 = vmatpush.xpose.msra.mxu0 %v2094
      %2115 = vmatmul.f32.gmra.mxu0 %v2091
      %v2116 = vpop.f32.mrf.mxu0
      %v2117 = vadd.f32 0.0, %v2116
      %2118 = vdwg.mxu0
      %v2119 = vmul.f32 %v2117, 0.25
      %v2120 = vsel %vm1655, %v2119, -inf
      %2121 = vmax.xlane.f32.xlu0 %v2120
      %v2122 = vpop.xlane.xlu0 %2121
      %v2123 = vsub.f32 %v2119, %v2122
      %v2124 = vmul.f32 %v2123, 1.442695
      %v2125 = vpow.pop %v2124
      %v2126 = vsel %vm1655, %v2125, 0.0
      %2127 = vadd.xlane.f32.xlu0 %v2126
      %v2128 = vpop.xlane.xlu0 %2127
      %v2129 = vrcp.pop %v2128
      %v2130 = vmul.f32 %v2128, %v2129
      %v2131 = vsub.f32 1.0, %v2130
      %v2132 = vmul.f32 %v2129, %v2131
      %v2133 = vadd.f32 %v2129, %v2132
      %vm2134 = vweird.f32 %v2128
      %vm2135 = vweird.f32 %v2129
      %vm2136 = vmor %vm2134, %vm2135
      %v2137 = vsel %vm2136, %v2129, %v2133
      %v2138 = vand.u32 2147483647, %v2128
      %vm2139 = vcmp.eq.f32.partialorder %v2138, 8.507059e+37
      %v2140 = vand.u32 %v2128, 2147483648
      %v2141 = vor.u32 1.1754944e-38, %v2140
      %v2142 = vsel %vm2139, %v2141, %v2137
      %v2143 = vmul.f32 %v2125, %v2142
      %v2145 = vsel %vm1655, %v2143, 0
      %2147 = vmatpush.msra.mxu0 0.0
      %2148 = vmatpush.msra.mxu0 0.0
      %2149 = vmatpush.msra.mxu0 0.0
      %2150 = vmatpush.msra.mxu0 0.0
      %2151 = vmatpush.msra.mxu0 0.0
      %2152 = vmatpush.msra.mxu0 0.0
      %2153 = vmatpush.msra.mxu0 0.0
      %2154 = vmatpush.msra.mxu0 0.0
      %2155 = vmatpush.msra.mxu0 0.0
      %2156 = vmatpush.msra.mxu0 0.0
      %2157 = vmatpush.msra.mxu0 0.0
      %2158 = vmatpush.msra.mxu0 0.0
      %2159 = vmatpush.msra.mxu0 0.0
      %2160 = vmatpush.msra.mxu0 0.0
      %2161 = vmatpush.msra.mxu0 %v2088
      %2162 = vmatpush.msra.mxu0 %v2085
      %2163 = vmatmul.f32.gmra.mxu0 %v2145
      %v2164 = vpop.f32.mrf.mxu0
      %v2165 = vadd.f32 0.0, %v2164
      %2166 = vdwg.mxu0
      %v2167 = vld [vmem:[%s1476] sm:$0xff]
      %v2168 = vld [vmem:[%s1476 + $0x8] sm:$0xff]
      %s2169 = scalar_lea.vmem %s1449, 32
      %v2170 = vld [vmem:[%s2169] sm:$0xff]
      %v2171 = vld [vmem:[%s2169 + $0x8] sm:$0xff]
      %v2172 = vld [vmem:[%s2169 + $0x10] sm:$0xff]
      %v2173 = vld [vmem:[%s2169 + $0x18] sm:$0xff]
      %s2174 = scalar_lea.vmem %s1463, 1
      %v2175 = vld [vmem:[%s2174] sm:$0x1]
      %v2177 = vperm.slane %v2175, 0
      %2179 = vmatpush.msra.mxu0 0.0
      %2180 = vmatpush.msra.mxu0 0.0
      %2181 = vmatpush.msra.mxu0 0.0
      %2182 = vmatpush.msra.mxu0 0.0
      %2183 = vmatpush.msra.mxu0 0.0
      %2184 = vmatpush.msra.mxu0 0.0
      %2185 = vmatpush.msra.mxu0 0.0
      %2186 = vmatpush.msra.mxu0 0.0
      %2187 = vmatpush.msra.mxu0 0.0
      %2188 = vmatpush.msra.mxu0 0.0
      %2189 = vmatpush.msra.mxu0 0.0
      %2190 = vmatpush.msra.mxu0 0.0
      %2191 = vmatpush.msra.mxu0 %v2173
      %2192 = vmatpush.msra.mxu0 %v2172
      %2193 = vmatpush.msra.mxu0 %v2171
      %2194 = vmatpush.msra.mxu0 %v2170
      %2195 = vmatmul.f32.gmra.mxu0 %v2000
      %v2196 = vpop.f32.mrf.mxu0
      %v2197 = vadd.f32 %v2177, %v2196
      %2198 = vdwg.mxu0
      %s2199 = scalar_lea.vmem %s1454, 32
      %v2200 = vld [vmem:[%s2199] sm:$0xff]
      %v2201 = vld [vmem:[%s2199 + $0x8] sm:$0xff]
      %v2202 = vld [vmem:[%s2199 + $0x10] sm:$0xff]
      %v2203 = vld [vmem:[%s2199 + $0x18] sm:$0xff]
      %s2204 = scalar_lea.vmem %s1467, 1
      %v2205 = vld [vmem:[%s2204] sm:$0x1]
      %v2207 = vperm.slane %v2205, 0
      %2209 = vmatpush.msra.mxu0 0.0
      %2210 = vmatpush.msra.mxu0 0.0
      %2211 = vmatpush.msra.mxu0 0.0
      %2212 = vmatpush.msra.mxu0 0.0
      %2213 = vmatpush.msra.mxu0 0.0
      %2214 = vmatpush.msra.mxu0 0.0
      %2215 = vmatpush.msra.mxu0 0.0
      %2216 = vmatpush.msra.mxu0 0.0
      %2217 = vmatpush.msra.mxu0 0.0
      %2218 = vmatpush.msra.mxu0 0.0
      %2219 = vmatpush.msra.mxu0 0.0
      %2220 = vmatpush.msra.mxu0 0.0
      %2221 = vmatpush.msra.mxu0 %v2203
      %2222 = vmatpush.msra.mxu0 %v2202
      %2223 = vmatpush.msra.mxu0 %v2201
      %2224 = vmatpush.msra.mxu0 %v2200
      %2225 = vmatmul.f32.gmra.mxu0 %v2031
      %v2226 = vpop.f32.mrf.mxu0
      %v2227 = vadd.f32 %v2207, %v2226
      %2228 = vmatmul.f32.gmra.mxu0 %v2034
      %v2229 = vpop.f32.mrf.mxu0
      %v2230 = vadd.f32 %v2207, %v2229
      %2231 = vdwg.mxu0
      %s2232 = scalar_lea.vmem %s1459, 32
      %v2233 = vld [vmem:[%s2232] sm:$0xff]
      %v2234 = vld [vmem:[%s2232 + $0x8] sm:$0xff]
      %v2235 = vld [vmem:[%s2232 + $0x10] sm:$0xff]
      %v2236 = vld [vmem:[%s2232 + $0x18] sm:$0xff]
      %s2237 = scalar_lea.vmem %s1471, 1
      %v2238 = vld [vmem:[%s2237] sm:$0x1]
      %v2240 = vperm.slane %v2238, 0
      %2242 = vmatpush.msra.mxu0 0.0
      %2243 = vmatpush.msra.mxu0 0.0
      %2244 = vmatpush.msra.mxu0 0.0
      %2245 = vmatpush.msra.mxu0 0.0
      %2246 = vmatpush.msra.mxu0 0.0
      %2247 = vmatpush.msra.mxu0 0.0
      %2248 = vmatpush.msra.mxu0 0.0
      %2249 = vmatpush.msra.mxu0 0.0
      %2250 = vmatpush.msra.mxu0 0.0
      %2251 = vmatpush.msra.mxu0 0.0
      %2252 = vmatpush.msra.mxu0 0.0
      %2253 = vmatpush.msra.mxu0 0.0
      %2254 = vmatpush.msra.mxu0 %v2236
      %2255 = vmatpush.msra.mxu0 %v2235
      %2256 = vmatpush.msra.mxu0 %v2234
      %2257 = vmatpush.msra.mxu0 %v2233
      %2258 = vmatmul.f32.gmra.mxu0 %v2031
      %v2259 = vpop.f32.mrf.mxu0
      %v2260 = vadd.f32 %v2240, %v2259
      %2261 = vmatmul.f32.gmra.mxu0 %v2034
      %v2262 = vpop.f32.mrf.mxu0
      %v2263 = vadd.f32 %v2240, %v2262
      %2264 = vdwg.mxu0
      %v2266 = vsel %vm1655, %v2197, 0
      %v2269 = vsel %vm1655, %v2227, 0
      %v2272 = vsel %vm1655, %v2230, 0
      %2274 = vmatpush.xpose.msra.mxu0 0.0
      %2275 = vmatpush.xpose.msra.mxu0 0.0
      %2276 = vmatpush.xpose.msra.mxu0 0.0
      %2277 = vmatpush.xpose.msra.mxu0 0.0
      %2278 = vmatpush.xpose.msra.mxu0 0.0
      %2279 = vmatpush.xpose.msra.mxu0 0.0
      %2280 = vmatpush.xpose.msra.mxu0 0.0
      %2281 = vmatpush.xpose.msra.mxu0 0.0
      %2282 = vmatpush.xpose.msra.mxu0 0.0
      %2283 = vmatpush.xpose.msra.mxu0 0.0
      %2284 = vmatpush.xpose.msra.mxu0 0.0
      %2285 = vmatpush.xpose.msra.mxu0 0.0
      %2286 = vmatpush.xpose.msra.mxu0 0.0
      %2287 = vmatpush.xpose.msra.mxu0 0.0
      %2288 = vmatpush.xpose.msra.mxu0 %v2272
      %2289 = vmatpush.xpose.msra.mxu0 %v2269
      %2290 = vmatmul.f32.gmra.mxu0 %v2266
      %v2291 = vpop.f32.mrf.mxu0
      %v2292 = vadd.f32 0.0, %v2291
      %2293 = vdwg.mxu0
      %v2294 = vmul.f32 %v2292, 0.25
      %v2295 = vsel %vm1655, %v2294, -inf
      %2296 = vmax.xlane.f32.xlu0 %v2295
      %v2297 = vpop.xlane.xlu0 %2296
      %v2298 = vsub.f32 %v2294, %v2297
      %v2299 = vmul.f32 %v2298, 1.442695
      %v2300 = vpow.pop %v2299
      %v2301 = vsel %vm1655, %v2300, 0.0
      %2302 = vadd.xlane.f32.xlu0 %v2301
      %v2303 = vpop.xlane.xlu0 %2302
      %v2304 = vrcp.pop %v2303
      %v2305 = vmul.f32 %v2303, %v2304
      %v2306 = vsub.f32 1.0, %v2305
      %v2307 = vmul.f32 %v2304, %v2306
      %v2308 = vadd.f32 %v2304, %v2307
      %vm2309 = vweird.f32 %v2303
      %vm2310 = vweird.f32 %v2304
      %vm2311 = vmor %vm2309, %vm2310
      %v2312 = vsel %vm2311, %v2304, %v2308
      %v2313 = vand.u32 2147483647, %v2303
      %vm2314 = vcmp.eq.f32.partialorder %v2313, 8.507059e+37
      %v2315 = vand.u32 %v2303, 2147483648
      %v2316 = vor.u32 1.1754944e-38, %v2315
      %v2317 = vsel %vm2314, %v2316, %v2312
      %v2318 = vmul.f32 %v2300, %v2317
      %v2320 = vsel %vm1655, %v2318, 0
      %2322 = vmatpush.msra.mxu0 0.0
      %2323 = vmatpush.msra.mxu0 0.0
      %2324 = vmatpush.msra.mxu0 0.0
      %2325 = vmatpush.msra.mxu0 0.0
      %2326 = vmatpush.msra.mxu0 0.0
      %2327 = vmatpush.msra.mxu0 0.0
      %2328 = vmatpush.msra.mxu0 0.0
      %2329 = vmatpush.msra.mxu0 0.0
      %2330 = vmatpush.msra.mxu0 0.0
      %2331 = vmatpush.msra.mxu0 0.0
      %2332 = vmatpush.msra.mxu0 0.0
      %2333 = vmatpush.msra.mxu0 0.0
      %2334 = vmatpush.msra.mxu0 0.0
      %2335 = vmatpush.msra.mxu0 0.0
      %2336 = vmatpush.msra.mxu0 %v2263
      %2337 = vmatpush.msra.mxu0 %v2260
      %2338 = vmatmul.f32.gmra.mxu0 %v2320
      %v2339 = vpop.f32.mrf.mxu0
      %v2340 = vadd.f32 0.0, %v2339
      %2341 = vdwg.mxu0
      %s2342 = scalar_lea.vmem %s1476, 16
      %v2343 = vld [vmem:[%s2342] sm:$0xff]
      %v2344 = vld [vmem:[%s2342 + $0x8] sm:$0xff]
      %v2346 = vsel %vm1655, %v2340, 0
      %2348 = vmatpush.msra.mxu0 0.0
      %2349 = vmatpush.msra.mxu0 0.0
      %2350 = vmatpush.msra.mxu0 0.0
      %2351 = vmatpush.msra.mxu0 0.0
      %2352 = vmatpush.msra.mxu0 0.0
      %2353 = vmatpush.msra.mxu0 0.0
      %2354 = vmatpush.msra.mxu0 0.0
      %2355 = vmatpush.msra.mxu0 0.0
      %2356 = vmatpush.msra.mxu0 0.0
      %2357 = vmatpush.msra.mxu0 0.0
      %2358 = vmatpush.msra.mxu0 0.0
      %2359 = vmatpush.msra.mxu0 0.0
      %2360 = vmatpush.msra.mxu0 0.0
      %2361 = vmatpush.msra.mxu0 0.0
      %2362 = vmatpush.msra.mxu0 %v2344
      %2363 = vmatpush.msra.mxu0 %v2343
      %2364 = vmatmul.f32.gmra.mxu0 %v2346
      %v2365 = vpop.f32.mrf.mxu0
      %v2366 = vadd.f32 0.0, %v2365
      %2367 = vdwg.mxu0
      %v2369 = vsel %vm1655, %v2165, 0
      %2371 = vmatpush.msra.mxu0 0.0
      %2372 = vmatpush.msra.mxu0 0.0
      %2373 = vmatpush.msra.mxu0 0.0
      %2374 = vmatpush.msra.mxu0 0.0
      %2375 = vmatpush.msra.mxu0 0.0
      %2376 = vmatpush.msra.mxu0 0.0
      %2377 = vmatpush.msra.mxu0 0.0
      %2378 = vmatpush.msra.mxu0 0.0
      %2379 = vmatpush.msra.mxu0 0.0
      %2380 = vmatpush.msra.mxu0 0.0
      %2381 = vmatpush.msra.mxu0 0.0
      %2382 = vmatpush.msra.mxu0 0.0
      %2383 = vmatpush.msra.mxu0 0.0
      %2384 = vmatpush.msra.mxu0 0.0
      %2385 = vmatpush.msra.mxu0 %v2168
      %2386 = vmatpush.msra.mxu0 %v2167
      %2387 = vmatmul.f32.gmra.mxu0 %v2369
      %v2388 = vpop.f32.mrf.mxu0
      %v2389 = vadd.f32 %v2366, %v2388
      %2390 = vdwg.mxu0
      %v2391 = vld [vmem:[%s1479] sm:$0x1]
      %v2393 = vperm.slane %v2391, 0
      %v2395 = vadd.f32 %v2389, %v2393
      %v2396 = vadd.f32 %v1990, %v2395
      %v2397 = vld [vmem:[%s1482] sm:$0x1]
      %v2398 = vld [vmem:[%s1485] sm:$0x1]
      %v2399 = vsel %vm1575, %v2396, 0.0
      %2400 = vadd.xlane.f32.xlu0 %v2399
      %v2401 = vpop.xlane.xlu0 %2400
      %v2402 = vmul.f32 %v2401, %v1963
      %v2403 = vsub.f32 %v2396, %v2402
      %v2404 = vmul.f32 %v2403, %v2403
      %v2405 = vsel %vm1575, %v2404, 0.0
      %2406 = vadd.xlane.f32.xlu0 %v2405
      %v2407 = vpop.xlane.xlu0 %2406
      %v2408 = vmul.f32 %v2407, %v1963
      %v2409 = vadd.f32 %v2408, 1e-05
      %v2410 = vrsqrt.pop %v2409
      %v2411 = vmul.f32 %v2410, %v2409
      %v2412 = vmul.f32 %v2411, %v2410
      %v2413 = vmul.f32 0.5, %v2412
      %v2414 = vsub.f32 1.5, %v2413
      %v2415 = vmul.f32 %v2410, %v2414
      %vm2416 = vweird.f32 %v2409
      %vm2417 = vweird.f32 %v2410
      %vm2418 = vmor %vm2416, %vm2417
      %v2419 = vsel %vm2418, %v2410, %v2415
      %v2420 = vmul.f32 %v2403, %v2419
      %v2422 = vperm.slane %v2397, 0
      %v2424 = vmul.f32 %v2420, %v2422
      %v2426 = vperm.slane %v2398, 0
      %v2428 = vadd.f32 %v2424, %v2426
      %v2429 = vld [vmem:[%s1490] sm:$0xff]
      %v2430 = vld [vmem:[%s1490 + $0x8] sm:$0xff]
      %v2431 = vld [vmem:[%s1490 + $0x10] sm:$0xff]
      %v2432 = vld [vmem:[%s1490 + $0x18] sm:$0xff]
      %v2433 = vld [vmem:[%s1493] sm:$0x1]
      %v2435 = vperm.slane %v2433, 0
      %v2438 = vsel %vm1575, %v2428, 0
      %2440 = vmatpush.msra.mxu0 0.0
      %2441 = vmatpush.msra.mxu0 0.0
      %2442 = vmatpush.msra.mxu0 0.0
      %2443 = vmatpush.msra.mxu0 0.0
      %2444 = vmatpush.msra.mxu0 0.0
      %2445 = vmatpush.msra.mxu0 0.0
      %2446 = vmatpush.msra.mxu0 0.0
      %2447 = vmatpush.msra.mxu0 0.0
      %2448 = vmatpush.msra.mxu0 0.0
      %2449 = vmatpush.msra.mxu0 0.0
      %2450 = vmatpush.msra.mxu0 0.0
      %2451 = vmatpush.msra.mxu0 0.0
      %2452 = vmatpush.msra.mxu0 %v2432
      %2453 = vmatpush.msra.mxu0 %v2431
      %2454 = vmatpush.msra.mxu0 %v2430
      %2455 = vmatpush.msra.mxu0 %v2429
      %2456 = vmatmul.f32.gmra.mxu0 %v2438
      %v2457 = vpop.f32.mrf.mxu0
      %v2458 = vadd.f32 %v2435, %v2457
      %2459 = vdwg.mxu0
      %v2460 = vmax.f32 %v2458, 0.0
      %v2461 = vld [vmem:[%s1498] sm:$0xff]
      %v2462 = vld [vmem:[%s1498 + $0x8] sm:$0xff]
      %v2463 = vld [vmem:[%s1498 + $0x10] sm:$0xff]
      %v2464 = vld [vmem:[%s1498 + $0x18] sm:$0xff]
      %v2465 = vld [vmem:[%s1498 + $0x20] sm:$0xff]
      %v2466 = vld [vmem:[%s1498 + $0x28] sm:$0xff]
      %v2467 = vld [vmem:[%s1498 + $0x30] sm:$0xff]
      %v2468 = vld [vmem:[%s1498 + $0x38] sm:$0xff]
      %v2469 = vld [vmem:[%s1501] sm:$0x1]
      %v2471 = vperm.slane %v2469, 0
      %vm2473 = vcmask 523264
      %v2475 = vsel %vm2473, %v2460, 0
      %2477 = vmatpush.msra.mxu0 0.0
      %2478 = vmatpush.msra.mxu0 0.0
      %2479 = vmatpush.msra.mxu0 0.0
      %2480 = vmatpush.msra.mxu0 0.0
      %2481 = vmatpush.msra.mxu0 0.0
      %2482 = vmatpush.msra.mxu0 0.0
      %2483 = vmatpush.msra.mxu0 0.0
      %2484 = vmatpush.msra.mxu0 0.0
      %2485 = vmatpush.msra.mxu0 %v2468
      %2486 = vmatpush.msra.mxu0 %v2467
      %2487 = vmatpush.msra.mxu0 %v2466
      %2488 = vmatpush.msra.mxu0 %v2465
      %2489 = vmatpush.msra.mxu0 %v2464
      %2490 = vmatpush.msra.mxu0 %v2463
      %2491 = vmatpush.msra.mxu0 %v2462
      %2492 = vmatpush.msra.mxu0 %v2461
      %2493 = vmatmul.f32.gmra.mxu0 %v2475
      %v2494 = vpop.f32.mrf.mxu0
      %v2495 = vadd.f32 %v2471, %v2494
      %2496 = vdwg.mxu0
      %v2497 = vadd.f32 %v2428, %v2495
      %v2498 = vld [vmem:[%s1504] sm:$0x1]
      %v2499 = vld [vmem:[%s1507] sm:$0x1]
      %v2500 = vsel %vm1575, %v2497, 0.0
      %2501 = vadd.xlane.f32.xlu0 %v2500
      %v2502 = vpop.xlane.xlu0 %2501
      %v2503 = vmul.f32 %v2502, %v1963
      %v2504 = vsub.f32 %v2497, %v2503
      %v2505 = vmul.f32 %v2504, %v2504
      %v2506 = vsel %vm1575, %v2505, 0.0
      %2507 = vadd.xlane.f32.xlu0 %v2506
      %v2508 = vpop.xlane.xlu0 %2507
      %v2509 = vmul.f32 %v2508, %v1963
      %v2510 = vadd.f32 %v2509, 1e-05
      %v2511 = vrsqrt.pop %v2510
      %v2512 = vmul.f32 %v2511, %v2510
      %v2513 = vmul.f32 %v2512, %v2511
      %v2514 = vmul.f32 0.5, %v2513
      %v2515 = vsub.f32 1.5, %v2514
      %v2516 = vmul.f32 %v2511, %v2515
      %vm2517 = vweird.f32 %v2510
      %vm2518 = vweird.f32 %v2511
      %vm2519 = vmor %vm2517, %vm2518
      %v2520 = vsel %vm2519, %v2511, %v2516
      %v2521 = vmul.f32 %v2504, %v2520
      %v2523 = vperm.slane %v2498, 0
      %v2525 = vmul.f32 %v2521, %v2523
      %v2527 = vperm.slane %v2499, 0
      %v2529 = vadd.f32 %v2525, %v2527
      %2530 = vst.msk [vmem:[#allocation2] sm:$0xff] %vm1575, %v2529
      %p2531 = scmp.eq.s32.totalorder %s85, 1
      // Predicated region
      $region161: #{csiformer_student_forward.3} parent=155 // pred_check
        %p2532 = pneg %p2531
      $region162: #{csiformer_student_forward.3} parent=155 // pred_check_branch
        %2534 = sbr.rel (%p2532) target = $region164
      $region163: #{csiformer_student_forward.3} parent=155 // pred_region
        %v2535 = vld [vmem:[%s65] sm:$0xff]
        %v2536 = vld [vmem:[%s65 + $0x8] sm:$0xff]
        %v2537 = vld [vmem:[%s65 + $0x10] sm:$0xff]
        %v2538 = vld [vmem:[%s65 + $0x18] sm:$0xff]
        %v2539 = vld [vmem:[%s67] sm:$0x1]
        %v2541 = vperm.slane %v2539, 0
        %v2544 = vsel %vm1575, %v2529, 0
        %2546 = vmatpush.msra.mxu0 0.0
        %2547 = vmatpush.msra.mxu0 0.0
        %2548 = vmatpush.msra.mxu0 0.0
        %2549 = vmatpush.msra.mxu0 0.0
        %2550 = vmatpush.msra.mxu0 0.0
        %2551 = vmatpush.msra.mxu0 0.0
        %2552 = vmatpush.msra.mxu0 0.0
        %2553 = vmatpush.msra.mxu0 0.0
        %2554 = vmatpush.msra.mxu0 0.0
        %2555 = vmatpush.msra.mxu0 0.0
        %2556 = vmatpush.msra.mxu0 0.0
        %2557 = vmatpush.msra.mxu0 0.0
        %2558 = vmatpush.msra.mxu0 %v2538
        %2559 = vmatpush.msra.mxu0 %v2537
        %2560 = vmatpush.msra.mxu0 %v2536
        %2561 = vmatpush.msra.mxu0 %v2535
        %2562 = vmatmul.f32.gmra.mxu0 %v2544
        %v2563 = vpop.f32.mrf.mxu0
        %v2564 = vadd.f32 %v2541, %v2563
        %2565 = vdwg.mxu0
        %2566 = vst.msk [vmem:[%s1511] sm:$0xff] %vm1683, %v2564
      $region164: #{csiformer_student_forward.3} parent=155 // pred_fallthru
        _
      %p2567 = scmp.lt.s32.totalorder %s84, 1
      %s2568 = scalar_select %p2567, %s84, 1
      %s2569 = smul.addr %s2568, 8
      %s2570 = scalar_lea.vmem %s69, %s2569
      // Predicated region
      $region165: #{csiformer_student_forward.3} parent=155 // pred_check
        %p2571 = pneg %p964
      $region166: #{csiformer_student_forward.3} parent=155 // pred_check_branch
        %2573 = sbr.rel (%p2571) target = $region168
      $region167: #{csiformer_student_forward.3} parent=155 // pred_region
        _
      $region168: #{csiformer_student_forward.3} parent=155 // pred_fallthru
        _
    $region156: #{csiformer_student_forward.3} parent=5 // pred_fallthru
      _
    %p2574 = scmp.le.s32.totalorder 2, %s75
    // Predicated region
    $region169: #{csiformer_student_forward.3} parent=5 // pred_check
      %p2575 = pneg %p2574
    $region170: #{csiformer_student_forward.3} parent=5 // pred_check_branch
      %2577 = sbr.rel (%p2575) target = $region172
    $region171: #{csiformer_student_forward.3} parent=5 // pred_region
      %s2578 = ssub.s32 %s75, 2
      // Predicated region
      $region173: #{csiformer_student_forward.3} parent=171 // pred_check
        %p2579 = pneg %p970
      $region174: #{csiformer_student_forward.3} parent=171 // pred_check_branch
        %2581 = sbr.rel (%p2579) target = $region176
      $region175: #{csiformer_student_forward.3} parent=171 // pred_region
        %p2582 = scmp.lt.s32.totalorder %s86, 1
        %s2583 = scalar_select %p2582, %s86, 1
        %s2584 = smul.addr %s2583, 8
        %s2585 = scalar_lea.vmem %s69, %s2584
      $region176: #{csiformer_student_forward.3} parent=171 // pred_fallthru
        _
    $region172: #{csiformer_student_forward.3} parent=5 // pred_fallthru
      _
  $region6: #{csiformer_student_forward.3} parent=0 // loop_footer
    %s79 = sadd.s32 1, %s75
  $region7: #{csiformer_student_forward.3} parent=0 // loop_footer_branch
    %74 = sbr.rel target = $region3
  $region8: #{csiformer_student_forward.3} parent=0 // loop_exit
    _

</llo_original>
